<compile_context>
chip_gen: v7x
topology: tpu7x:2x2x1
jax: 0.10.0
libtpu: 0.0.40
codegen_flags: <defaults>
</compile_context>

<pallas_src>
import functools

import jax
import jax.numpy as jnp
from jax import lax
from jax.experimental import pallas as pl
from jax.experimental.pallas import tpu as pltpu

_EPS = 1e-5
_LANE = 128


# ---------------------------------------------------------------------------
# small helpers
# ---------------------------------------------------------------------------
def _round_up(n, m):
    return ((n + m - 1) // m) * m


def _hw_budget():
    """(vmem_limit_bytes, row_tile_cap) from the chip's physical VMEM."""
    try:
        vmem = int(getattr(pltpu.get_tpu_info(), "vmem_capacity_bytes", 0))
    except Exception:
        vmem = 0
    if vmem >= 96 * 1024 * 1024:          # v5e / v6e: 128 MiB physical VMEM
        return 64 * 1024 * 1024, 1024
    return 28 * 1024 * 1024, 512          # v7x (64 MiB) or unknown: stay tight


def _pick_row_tile(m, cap):
    """Row tile for flat (rows, channels) streaming kernels.

    Returns (tile, needs_tail_mask).  Tiles are multiples of 16 (bf16 sublane
    packing) unless a single whole-array tile is used.  When no dividing tile
    exists, a pl.cdiv grid with an in-kernel masked tail tile is used.
    """
    cap = max(16, (cap // 16) * 16)
    if m <= cap:
        return m, False
    for c in range(cap, 15, -16):
        if m % c == 0:
            return c, False
    return cap, True


def _cparams(n_axes, vmem_limit):
    return pltpu.CompilerParams(
        dimension_semantics=("parallel",) * n_axes,
        vmem_limit_bytes=vmem_limit,
    )


def _bn_affine(stats, count, gamma, beta):
    """Fold batch statistics into a per-channel affine: y = scale*x + shift."""
    # TODO(synk): E[x^2]-E[x]^2 in f32 can cancel for huge low-variance
    # channels; a Welford / mean-centred partial would be more robust.
    mean = stats[0] / count
    var = jnp.maximum(stats[1] / count - mean * mean, 0.0)
    scale = gamma * lax.rsqrt(var + _EPS)
    shift = beta - mean * scale
    return scale, shift


# ---------------------------------------------------------------------------
# Kernels
# ---------------------------------------------------------------------------
def _expand_kernel(x_ref, w_ref, h_ref, st_ref, *, mt, valid_rows):
    # 1x1 expand conv on the MXU (bias dropped: it cancels in the batch-stat
    # BN).  BN1 partials come from the f32 accumulator; only the stored copy
    # of h narrows to the io dtype.  Tail rows (cdiv grid) are zeroed so the
    # partial sums stay exact.
    x = x_ref[...]
    if valid_rows is not None:
        rows = lax.broadcasted_iota(jnp.int32, (x.shape[0], 1), 0) \
            + pl.program_id(0) * mt
        x = jnp.where(rows < valid_rows, x, 0.0)
    h = jnp.dot(x.astype(w_ref.dtype), w_ref[...],
                preferred_element_type=jnp.float32)
    h_ref[...] = h.astype(h_ref.dtype)
    st_ref[0, 0:1, :] = jnp.sum(h, axis=0, keepdims=True)
    st_ref[0, 1:2, :] = jnp.sum(h * h, axis=0, keepdims=True)


def _dw_s1_kernel(h_ref, sc_ref, sh_ref, w_ref, d_ref, st_ref, pad_ref, *, H, W):
    # BN1 affine + ReLU6, then depthwise 3x3 (stride 1, pad 1) on one
    # (image, 128-channel) tile via a zero-bordered VMEM scratch.
    CT = sc_ref.shape[1]
    sc = sc_ref[...].reshape(1, 1, CT)
    sh = sh_ref[...].reshape(1, 1, CT)
    a = jnp.clip(h_ref[0].astype(jnp.float32) * sc + sh, 0.0, 6.0)   # (H,W,CT)
    # Zero only the 1-wide border; the interior is fully overwritten below.
    z_row = jnp.zeros((1, W + 2, CT), jnp.float32)
    z_col = jnp.zeros((H + 2, 1, CT), jnp.float32)
    pad_ref[0:1, :, :] = z_row
    pad_ref[H + 1:H + 2, :, :] = z_row
    pad_ref[:, 0:1, :] = z_col
    pad_ref[:, W + 1:W + 2, :] = z_col
    pad_ref[1:H + 1, 1:W + 1, :] = a
    w = w_ref[...]                                                    # (9, CT)

    def tap(k):
        ky, kx = divmod(k, 3)
        return pad_ref[ky:ky + H, kx:kx + W, :] * w[k].reshape(1, 1, CT)

    # three partial accumulators -> shorter serial VALU dependency chain
    acc0 = tap(0) + tap(3) + tap(6)
    acc1 = tap(1) + tap(4) + tap(7)
    acc2 = tap(2) + tap(5) + tap(8)
    d = acc0 + acc1 + acc2
    d_ref[0] = d.astype(d_ref.dtype)
    st_ref[0, 0, 0:1, :] = jnp.sum(jnp.sum(d, axis=0), axis=0, keepdims=True)
    st_ref[0, 0, 1:2, :] = jnp.sum(jnp.sum(d * d, axis=0), axis=0, keepdims=True)


def _dw_s2_kernel(hA_ref, hB_ref, sc_ref, sh_ref, w_ref, d_ref, st_ref, pad_ref,
                  *, Ho, Wo):
    # Stride-2 depthwise via row/column parity fields (space-to-batch).
    # hA/hB are the even-col / odd-col lane-dense halves of the (free)
    # (N, Ho, 2, Wo, 2*Cep) reshape; every 3x3 tap becomes a unit-stride slice
    # of one of the four parity fields padded with a zero top row / left col.
    CT = sc_ref.shape[1]
    sc = sc_ref[...].reshape(1, 1, 1, CT)
    sh = sh_ref[...].reshape(1, 1, 1, CT)
    aA = jnp.clip(hA_ref[0].astype(jnp.float32) * sc + sh, 0.0, 6.0)  # even col
    aB = jnp.clip(hB_ref[0].astype(jnp.float32) * sc + sh, 0.0, 6.0)  # odd col
    # Only the top row / left col of each field are read as padding.
    pad_ref[:, 0:1, :, :] = jnp.zeros((4, 1, Wo + 1, CT), jnp.float32)
    pad_ref[:, :, 0:1, :] = jnp.zeros((4, Ho + 1, 1, CT), jnp.float32)
    pad_ref[0, 1:Ho + 1, 1:Wo + 1, :] = aA[:, 0]     # even row, even col
    pad_ref[2, 1:Ho + 1, 1:Wo + 1, :] = aA[:, 1]     # odd row,  even col
    pad_ref[1, 1:Ho + 1, 1:Wo + 1, :] = aB[:, 0]     # even row, odd col
    pad_ref[3, 1:Ho + 1, 1:Wo + 1, :] = aB[:, 1]     # odd row,  odd col
    w = w_ref[...]                                                    # (9, CT)

    def tap(k):
        ky, kx = divmod(k, 3)
        pr = 0 if ky == 1 else 1          # row parity used by this tap
        pc = 0 if kx == 1 else 1          # col parity used by this tap
        ry = 0 if ky == 0 else 1          # 0 => shifted (uses the zero border)
        rx = 0 if kx == 0 else 1
        f = 2 * pr + pc
        return pad_ref[f, ry:ry + Ho, rx:rx + Wo, :] * w[k].reshape(1, 1, CT)

    acc0 = tap(0) + tap(3) + tap(6)
    acc1 = tap(1) + tap(4) + tap(7)
    acc2 = tap(2) + tap(5) + tap(8)
    d = acc0 + acc1 + acc2
    d_ref[0] = d.astype(d_ref.dtype)
    st_ref[0, 0, 0:1, :] = jnp.sum(jnp.sum(d, axis=0), axis=0, keepdims=True)
    st_ref[0, 0, 1:2, :] = jnp.sum(jnp.sum(d * d, axis=0), axis=0, keepdims=True)


def _project_kernel(d_ref, sc_ref, sh_ref, w_ref, y_ref, st_ref, *, mt,
                    valid_rows):
    # BN2 affine + ReLU6 + 1x1 project conv (MXU); BN3 partials in f32.
    a = jnp.clip(d_ref[...].astype(jnp.float32) * sc_ref[...] + sh_ref[...],
                 0.0, 6.0)
    if valid_rows is not None:
        rows = lax.broadcasted_iota(jnp.int32, (a.shape[0], 1), 0) \
            + pl.program_id(0) * mt
        a = jnp.where(rows < valid_rows, a, 0.0)
    y = jnp.dot(a.astype(w_ref.dtype), w_ref[...],
                preferred_element_type=jnp.float32)
    y_ref[...] = y
    st_ref[0, 0:1, :] = jnp.sum(y, axis=0, keepdims=True)
    st_ref[0, 1:2, :] = jnp.sum(y * y, axis=0, keepdims=True)


def _finalize_res_kernel(y_ref, sc_ref, sh_ref, x_ref, o_ref, *, cpad):
    # BN3 affine + skip connection; the Cin-wide residual is zero-padded to
    # Coutp lanes in VMEM (no materialized padded residual in HBM).
    res = x_ref[...].astype(jnp.float32)
    if cpad:
        res = jnp.concatenate(
            [res, jnp.zeros((res.shape[0], cpad), jnp.float32)], axis=1)
    o_ref[...] = y_ref[...] * sc_ref[...] + sh_ref[...] + res


def _finalize_kernel(y_ref, sc_ref, sh_ref, o_ref):
    o_ref[...] = y_ref[...] * sc_ref[...] + sh_ref[...]


# ---------------------------------------------------------------------------
# pallas_call wrappers
# ---------------------------------------------------------------------------
def _expand(x2d, w1p, io_dtype, vmem_limit, cap):
    M, Cin = x2d.shape
    Cep = w1p.shape[1]
    mt, tail = _pick_row_tile(M, cap)
    gm = pl.cdiv(M, mt)
    kern = functools.partial(_expand_kernel, mt=mt,
                             valid_rows=M if tail else None)
    h, st = pl.pallas_call(
        kern,
        grid=(gm,),
        in_specs=[
            pl.BlockSpec((mt, Cin), lambda i: (i, 0)),
            pl.BlockSpec((Cin, Cep), lambda i: (0, 0)),
        ],
        out_specs=[
            pl.BlockSpec((mt, Cep), lambda i: (i, 0)),
            pl.BlockSpec((1, 2, Cep), lambda i: (i, 0, 0)),
        ],
        out_shape=[
            jax.ShapeDtypeStruct((M, Cep), io_dtype),
            jax.ShapeDtypeStruct((gm, 2, Cep), jnp.float32),
        ],
        compiler_params=_cparams(1, vmem_limit),
    )(x2d, w1p)
    return h, jnp.sum(st, axis=0)


def _depthwise(h1, N, H, W, Cep, scale1, shift1, wdw9, stride, io_dtype,
               vmem_limit):
    CT = _LANE
    nct = Cep // CT
    sc = scale1.reshape(1, Cep)
    sh = shift1.reshape(1, Cep)
    vec_spec = pl.BlockSpec((1, CT), lambda n, c: (0, c))
    w_spec = pl.BlockSpec((9, CT), lambda n, c: (0, c))
    st_spec = pl.BlockSpec((1, 1, 2, CT), lambda n, c: (n, c, 0, 0))

    if stride == 1:
        Ho, Wo = H, W
        hin = h1.reshape(N, H, W, Cep)
        kern = functools.partial(_dw_s1_kernel, H=H, W=W)
        in_specs = [
            pl.BlockSpec((1, H, W, CT), lambda n, c: (n, 0, 0, c)),
            vec_spec, vec_spec, w_spec,
        ]
        operands = (hin, sc, sh, wdw9)
        scratch = [pltpu.VMEM((H + 2, W + 2, CT), jnp.float32)]
    else:
        # TODO(synk): odd H/W with stride 2 (PyTorch pads then floors) is not
        # handled; MobileNetV2 never hits it.
        assert stride == 2 and H % 2 == 0 and W % 2 == 0, (stride, H, W)
        Ho, Wo = H // 2, W // 2
        hin = h1.reshape(N, Ho, 2, Wo, 2 * Cep)     # free reshape, no HBM copy
        kern = functools.partial(_dw_s2_kernel, Ho=Ho, Wo=Wo)
        in_specs = [
            pl.BlockSpec((1, Ho, 2, Wo, CT), lambda n, c: (n, 0, 0, 0, c)),
            pl.BlockSpec((1, Ho, 2, Wo, CT),
                         lambda n, c: (n, 0, 0, 0, c + nct)),
            vec_spec, vec_spec, w_spec,
        ]
        operands = (hin, hin, sc, sh, wdw9)
        scratch = [pltpu.VMEM((4, Ho + 1, Wo + 1, CT), jnp.float32)]

    d, st = pl.pallas_call(
        kern,
        grid=(N, nct),
        in_specs=in_specs,
        out_specs=[
            pl.BlockSpec((1, Ho, Wo, CT), lambda n, c: (n, 0, 0, c)),
            st_spec,
        ],
        out_shape=[
            jax.ShapeDtypeStruct((N, Ho, Wo, Cep), io_dtype),
            jax.ShapeDtypeStruct((N, nct, 2, CT), jnp.float32),
        ],
        scratch_shapes=scratch,
        compiler_params=_cparams(2, vmem_limit),
    )(*operands)
    st = jnp.transpose(jnp.sum(st, axis=0), (1, 0, 2)).reshape(2, Cep)
    return d.reshape(N * Ho * Wo, Cep), st, Ho, Wo


def _project(d2, sc2, sh2, w3p, vmem_limit, cap):
    M2, Cep = d2.shape
    Coutp = w3p.shape[1]
    mt, tail = _pick_row_tile(M2, cap)
    gm = pl.cdiv(M2, mt)
    kern = functools.partial(_project_kernel, mt=mt,
                             valid_rows=M2 if tail else None)
    y, st = pl.pallas_call(
        kern,
        grid=(gm,),
        in_specs=[
            pl.BlockSpec((mt, Cep), lambda i: (i, 0)),
            pl.BlockSpec((1, Cep), lambda i: (0, 0)),
            pl.BlockSpec((1, Cep), lambda i: (0, 0)),
            pl.BlockSpec((Cep, Coutp), lambda i: (0, 0)),
        ],
        out_specs=[
            pl.BlockSpec((mt, Coutp), lambda i: (i, 0)),
            pl.BlockSpec((1, 2, Coutp), lambda i: (i, 0, 0)),
        ],
        out_shape=[
            jax.ShapeDtypeStruct((M2, Coutp), jnp.float32),
            jax.ShapeDtypeStruct((gm, 2, Coutp), jnp.float32),
        ],
        compiler_params=_cparams(1, vmem_limit),
    )(d2, sc2, sh2, w3p)
    return y, jnp.sum(st, axis=0)


def _finalize(y, sc3, sh3, res, vmem_limit, cap):
    M2, Coutp = y.shape
    mt, _ = _pick_row_tile(M2, cap)
    gm = pl.cdiv(M2, mt)
    row = pl.BlockSpec((mt, Coutp), lambda i: (i, 0))
    vec = pl.BlockSpec((1, Coutp), lambda i: (0, 0))
    out_shape = jax.ShapeDtypeStruct((M2, Coutp), jnp.float32)
    if res is not None:
        Cin = res.shape[1]
        kern = functools.partial(_finalize_res_kernel, cpad=Coutp - Cin)
        return pl.pallas_call(
            kern, grid=(gm,),
            in_specs=[row, vec, vec, pl.BlockSpec((mt, Cin), lambda i: (i, 0))],
            out_specs=row, out_shape=out_shape,
            compiler_params=_cparams(1, vmem_limit),
        )(y, sc3, sh3, res)
    return pl.pallas_call(
        _finalize_kernel, grid=(gm,),
        in_specs=[row, vec, vec], out_specs=row, out_shape=out_shape,
        compiler_params=_cparams(1, vmem_limit),
    )(y, sc3, sh3)


# ---------------------------------------------------------------------------
# Module forward
# ---------------------------------------------------------------------------
def linear_bottleneck_forward(x_nchw, p, stride, mxu_dtype=jnp.bfloat16,
                              io_dtype=jnp.bfloat16):
    N, Cin, H, W = x_nchw.shape
    Ce = p["w1"].shape[0]
    Cout = p["w3"].shape[0]
    Cep = _round_up(Ce, _LANE)
    Coutp = _round_up(Cout, _LANE)
    vmem_limit, cap = _hw_budget()

    x2d = jnp.transpose(x_nchw, (0, 2, 3, 1)).reshape(N * H * W, Cin)
    M = N * H * W

    # lane-dense (128-padded) parameters; padded channels stay exactly zero.
    # Conv biases are dropped: each one cancels in the following batch-stat BN.
    w1p = jnp.zeros((Cin, Cep), mxu_dtype).at[:, :Ce].set(
        p["w1"].reshape(Ce, Cin).T.astype(mxu_dtype))
    g1p = jnp.zeros((Cep,), jnp.float32).at[:Ce].set(p["g1"])
    be1p = jnp.zeros((Cep,), jnp.float32).at[:Ce].set(p["be1"])
    wdw9 = jnp.zeros((9, Cep), jnp.float32).at[:, :Ce].set(
        p["wdw"].reshape(Ce, 9).T)                    # k = 3*ky + kx
    g2p = jnp.zeros((Cep,), jnp.float32).at[:Ce].set(p["g2"])
    be2p = jnp.zeros((Cep,), jnp.float32).at[:Ce].set(p["be2"])
    w3p = jnp.zeros((Cep, Coutp), mxu_dtype).at[:Ce, :Cout].set(
        p["w3"].reshape(Cout, Ce).T.astype(mxu_dtype))
    g3p = jnp.zeros((Coutp,), jnp.float32).at[:Cout].set(p["g3"])
    be3p = jnp.zeros((Coutp,), jnp.float32).at[:Cout].set(p["be3"])

    # stage A: expand 1x1 conv (MXU), BN1 batch statistics from the f32 acc
    h1, st1 = _expand(x2d, w1p, io_dtype, vmem_limit, cap)
    sc1, sh1 = _bn_affine(st1, M, g1p, be1p)

    # stage B: BN1 affine + ReLU6 + depthwise 3x3, BN2 batch statistics
    d2, st2, Ho, Wo = _depthwise(h1, N, H, W, Cep, sc1, sh1, wdw9, stride,
                                 io_dtype, vmem_limit)
    M2 = N * Ho * Wo
    sc2, sh2 = _bn_affine(st2, M2, g2p, be2p)

    # stage C: BN2 affine + ReLU6 + project 1x1 conv (MXU), BN3 statistics
    y, st3 = _project(d2, sc2.reshape(1, Cep), sh2.reshape(1, Cep), w3p,
                      vmem_limit, cap)
    sc3, sh3 = _bn_affine(st3, M2, g3p, be3p)

    # stage D: BN3 affine (+ residual streamed straight from x2d)
    res = x2d if (stride == 1 and Cin == Cout) else None
    out = _finalize(y, sc3.reshape(1, Coutp), sh3.reshape(1, Coutp), res,
                    vmem_limit, cap)

    out = out.reshape(N, Ho, Wo, Coutp)[..., :Cout]
    return jnp.transpose(out, (0, 3, 1, 2))           # back to NCHW


# ---------------------------------------------------------------------------
# Deterministic parameter init (PyTorch weight shapes), pure-JAX reference
# ---------------------------------------------------------------------------
def init_params(key, cin, cout, t):
    ce = cin * t
    ks = jax.random.split(key, 12)
    s = 0.1
    return dict(
        w1=jax.random.normal(ks[0], (ce, cin, 1, 1), jnp.float32) * s,
        b1=jax.random.normal(ks[1], (ce,), jnp.float32) * s,
        g1=1.0 + jax.random.normal(ks[2], (ce,), jnp.float32) * s,
        be1=jax.random.normal(ks[3], (ce,), jnp.float32) * s,
        wdw=jax.random.normal(ks[4], (ce, 1, 3, 3), jnp.float32) * s,
        bdw=jax.random.normal(ks[5], (ce,), jnp.float32) * s,
        g2=1.0 + jax.random.normal(ks[6], (ce,), jnp.float32) * s,
        be2=jax.random.normal(ks[7], (ce,), jnp.float32) * s,
        w3=jax.random.normal(ks[8], (cout, ce, 1, 1), jnp.float32) * s,
        b3=jax.random.normal(ks[9], (cout,), jnp.float32) * s,
        g3=1.0 + jax.random.normal(ks[10], (cout,), jnp.float32) * s,
        be3=jax.random.normal(ks[11], (cout,), jnp.float32) * s,
    )


def torch_like_reference(x, p, stride, mxu_dtype=jnp.bfloat16):
    # Faithful PyTorch-semantics forward (biases kept, batch-stat BN, f32),
    # with the 1x1 conv operands routed through mxu_dtype to mirror the MXU
    # precision.  The kernel additionally narrows h1/d2 to bf16 and drops the
    # (mathematically cancelled) biases, hence the looser bf16 tolerance.
    def bn(h, g, b):
        m = jnp.mean(h, axis=(0, 2, 3), keepdims=True)
        v = jnp.mean((h - m) ** 2, axis=(0, 2, 3), keepdims=True)
        return g.reshape(1, -1, 1, 1) * (h - m) / jnp.sqrt(v + _EPS) \
            + b.reshape(1, -1, 1, 1)

    def cast(a):
        return a.astype(mxu_dtype).astype(jnp.float32)

    dn = ("NCHW", "OIHW", "NCHW")
    hp = lax.Precision.HIGHEST
    ce = p["wdw"].shape[0]
    h = lax.conv_general_dilated(cast(x), cast(p["w1"]), (1, 1), "VALID",
                                 dimension_numbers=dn, precision=hp)
    h = jnp.clip(bn(h + p["b1"].reshape(1, -1, 1, 1), p["g1"], p["be1"]), 0, 6)
    h = lax.conv_general_dilated(h, p["wdw"], (stride, stride),
                                 ((1, 1), (1, 1)), dimension_numbers=dn,
                                 feature_group_count=ce, precision=hp)
    h = jnp.clip(bn(h + p["bdw"].reshape(1, -1, 1, 1), p["g2"], p["be2"]), 0, 6)
    h = lax.conv_general_dilated(cast(h), cast(p["w3"]), (1, 1), "VALID",
                                 dimension_numbers=dn, precision=hp)
    h = bn(h + p["b3"].reshape(1, -1, 1, 1), p["g3"], p["be3"])
    if stride == 1 and x.shape[1] == h.shape[1]:
        h = h + x
    return h


if __name__ == "__main__":
    key = jax.random.PRNGKey(0)
    kx, kp = jax.random.split(key)

    fwd = jax.jit(linear_bottleneck_forward,
                  static_argnames=("stride", "mxu_dtype", "io_dtype"))
    ref_fn = jax.jit(torch_like_reference,
                     static_argnames=("stride", "mxu_dtype"))

    configs = [
        # (N, Cin, H, W, t, Cout)
        (2, 4, 16, 16, 6, 4),    # divisible row tiles; exercises the residual
        (6, 4, 14, 14, 6, 8),    # M=1176: exercises the masked tail row tiles
    ]
    for (N, Cin, H, W, t, Cout) in configs:
        kx, kxi = jax.random.split(kx)
        kp, kpi = jax.random.split(kp)
        x = jax.random.normal(kxi, (N, Cin, H, W), jnp.float32)
        params = init_params(kpi, Cin, Cout, t)
        for stride in (1, 2):
            for mxu_dtype, io_dtype, tol in (
                    (jnp.float32, jnp.float32, 5e-3),     # tight numeric check
                    (jnp.bfloat16, jnp.bfloat16, 4e-2)):  # perf configuration
                out = jax.block_until_ready(
                    fwd(x, params, stride=stride, mxu_dtype=mxu_dtype,
                        io_dtype=io_dtype))
                ref = jax.block_until_ready(
                    ref_fn(x, params, stride=stride, mxu_dtype=mxu_dtype))
                assert out.shape == ref.shape, (out.shape, ref.shape)
                if not bool(jnp.allclose(out, ref, atol=tol, rtol=tol)):
                    raise AssertionError(
                        f"shape={tuple(x.shape)} stride={stride} "
                        f"mxu={jnp.dtype(mxu_dtype).name} "
                        f"io={jnp.dtype(io_dtype).name}: max abs err "
                        f"{float(jnp.max(jnp.abs(out - ref)))}")

    print("KERNEL_OK")
</pallas_src>

<mosaic_0001>
module attributes {stable_mosaic.version = 11 : i64} {
  func.func @_expand_kernel(%arg0: i32, %arg1: memref<512x4xf32, #tpu.memory_space<vmem>>, %arg2: memref<4x128xf32, #tpu.memory_space<vmem>>, %arg3: memref<512x128xf32, #tpu.memory_space<vmem>>, %arg4: memref<1x2x128xf32, #tpu.memory_space<vmem>>) attributes {dimension_semantics = [#tpu.dimension_semantics<parallel>], iteration_bounds = array<i64: 1>, scalar_prefetch = 0 : i64, scratch_operands = 0 : i64, tpu.core_type = #tpu.core_type<tc>, window_params = [{transform_indices = @transform_0, window_bounds = array<i64: 512, 4>}, {pipeline_mode = #tpu.pipeline_mode<synchronous>, transform_indices = @transform_1, window_bounds = array<i64: 4, 128>}, {transform_indices = @transform_2, window_bounds = array<i64: 512, 128>}, {transform_indices = @transform_3, window_bounds = array<i64: 1, 2, 128>}]} {
    %c0 = arith.constant 0 : index
    %c0_0 = arith.constant 0 : index
    %0 = vector.load %arg1[%c0, %c0_0] : memref<512x4xf32, #tpu.memory_space<vmem>>, vector<512x4xf32>
    %c0_1 = arith.constant 0 : index
    %c0_2 = arith.constant 0 : index
    %1 = vector.load %arg2[%c0_1, %c0_2] : memref<4x128xf32, #tpu.memory_space<vmem>>, vector<4x128xf32>
    %cst = arith.constant dense<0.000000e+00> : vector<512x128xf32>
    %2 = tpu.matmul %0, %1, %cst {dimension_numbers = #tpu.dot_dimension_numbers<[1], [0], [0], [1], [0, 0, 1, 1], [], []>} : vector<512x4xf32>, vector<4x128xf32>, vector<512x128xf32> -> vector<512x128xf32>
    %c0_3 = arith.constant 0 : index
    %c0_4 = arith.constant 0 : index
    %3 = vector.load %arg3[%c0_3, %c0_4] : memref<512x128xf32, #tpu.memory_space<vmem>>, vector<512x128xf32>
    tpu.vector_store %arg3[%c0_3, %c0_4], %2 {strides = array<i32>} : memref<512x128xf32, #tpu.memory_space<vmem>>, vector<512x128xf32>,
    %cst_5 = arith.constant dense<0.000000e+00> : vector<128xf32>
    %4 = vector.multi_reduction <add>, %2, %cst_5 [0] : vector<512x128xf32> to vector<128xf32>
    %5 = vector.shape_cast %4 : vector<128xf32> to vector<1x128xf32>
    %c0_6 = arith.constant 0 : index
    %c0_7 = arith.constant 0 : index
    %c0_8 = arith.constant 0 : index
    %6 = vector.load %arg4[%c0_6, %c0_7, %c0_8] : memref<1x2x128xf32, #tpu.memory_space<vmem>>, vector<1x1x128xf32>
    %7 = vector.shape_cast %6 : vector<1x1x128xf32> to vector<1x128xf32>
    %8 = vector.shape_cast %5 : vector<1x128xf32> to vector<1x1x128xf32>
    tpu.vector_store %arg4[%c0_6, %c0_7, %c0_8], %8 {strides = array<i32>} : memref<1x2x128xf32, #tpu.memory_space<vmem>>, vector<1x1x128xf32>,
    %9 = arith.mulf %2, %2 : vector<512x128xf32>
    %cst_9 = arith.constant dense<0.000000e+00> : vector<128xf32>
    %10 = vector.multi_reduction <add>, %9, %cst_9 [0] : vector<512x128xf32> to vector<128xf32>
    %11 = vector.shape_cast %10 : vector<128xf32> to vector<1x128xf32>
    %c0_10 = arith.constant 0 : index
    %c1 = arith.constant 1 : index
    %c0_11 = arith.constant 0 : index
    %12 = vector.load %arg4[%c0_10, %c1, %c0_11] : memref<1x2x128xf32, #tpu.memory_space<vmem>>, vector<1x1x128xf32>
    %13 = vector.shape_cast %12 : vector<1x1x128xf32> to vector<1x128xf32>
    %14 = vector.shape_cast %11 : vector<1x128xf32> to vector<1x1x128xf32>
    tpu.vector_store %arg4[%c0_10, %c1, %c0_11], %14 {strides = array<i32>} : memref<1x2x128xf32, #tpu.memory_space<vmem>>, vector<1x1x128xf32>,
    return
  }
  func.func @transform_0(%arg0: i32) -> (i32, i32) {
    %c0_i32 = arith.constant 0 : i32
    %c0_i32_0 = arith.constant 0 : i32
    return %arg0, %c0_i32 : i32, i32
  }
  func.func @transform_1(%arg0: i32) -> (i32, i32) {
    %c0_i32 = arith.constant 0 : i32
    %c0_i32_0 = arith.constant 0 : i32
    %c0_i32_1 = arith.constant 0 : i32
    return %c0_i32, %c0_i32_0 : i32, i32
  }
  func.func @transform_2(%arg0: i32) -> (i32, i32) {
    %c0_i32 = arith.constant 0 : i32
    %c0_i32_0 = arith.constant 0 : i32
    return %arg0, %c0_i32 : i32, i32
  }
  func.func @transform_3(%arg0: i32) -> (i32, i32, i32) {
    %c0_i32 = arith.constant 0 : i32
    %c0_i32_0 = arith.constant 0 : i32
    %c0_i32_1 = arith.constant 0 : i32
    return %arg0, %c0_i32, %c0_i32_0 : i32, i32, i32
  }
}

module attributes {stable_mosaic.version = 11 : i64} {
  func.func @_dw_s1_kernel(%arg0: i32, %arg1: i32, %arg2: memref<1x16x16x128xf32, #tpu.memory_space<vmem>>, %arg3: memref<1x128xf32, #tpu.memory_space<vmem>>, %arg4: memref<1x128xf32, #tpu.memory_space<vmem>>, %arg5: memref<9x128xf32, #tpu.memory_space<vmem>>, %arg6: memref<1x16x16x128xf32, #tpu.memory_space<vmem>>, %arg7: memref<1x1x2x128xf32, #tpu.memory_space<vmem>>, %arg8: memref<18x18x128xf32, #tpu.memory_space<vmem>>) attributes {dimension_semantics = [#tpu.dimension_semantics<parallel>, #tpu.dimension_semantics<parallel>], iteration_bounds = array<i64: 2, 1>, scalar_prefetch = 0 : i64, scratch_operands = 1 : i64, tpu.core_type = #tpu.core_type<tc>, window_params = [{transform_indices = @transform_0, window_bounds = array<i64: 1, 16, 16, 128>}, {transform_indices = @transform_1, window_bounds = array<i64: 1, 128>}, {transform_indices = @transform_2, window_bounds = array<i64: 1, 128>}, {transform_indices = @transform_3, window_bounds = array<i64: 9, 128>}, {transform_indices = @transform_4, window_bounds = array<i64: 1, 16, 16, 128>}, {transform_indices = @transform_5, window_bounds = array<i64: 1, 1, 2, 128>}]} {
    %c0 = arith.constant 0 : index
    %c0_0 = arith.constant 0 : index
    %0 = vector.load %arg3[%c0, %c0_0] : memref<1x128xf32, #tpu.memory_space<vmem>>, vector<1x128xf32>
    %1 = vector.shape_cast %0 : vector<1x128xf32> to vector<1x1x128xf32>
    %c0_1 = arith.constant 0 : index
    %c0_2 = arith.constant 0 : index
    %2 = vector.load %arg4[%c0_1, %c0_2] : memref<1x128xf32, #tpu.memory_space<vmem>>, vector<1x128xf32>
    %3 = vector.shape_cast %2 : vector<1x128xf32> to vector<1x1x128xf32>
    %c0_3 = arith.constant 0 : index
    %c0_4 = arith.constant 0 : index
    %c0_5 = arith.constant 0 : index
    %c0_6 = arith.constant 0 : index
    %4 = vector.load %arg2[%c0_3, %c0_4, %c0_5, %c0_6] : memref<1x16x16x128xf32, #tpu.memory_space<vmem>>, vector<1x16x16x128xf32>
    %5 = vector.shape_cast %4 : vector<1x16x16x128xf32> to vector<16x16x128xf32>
    %6 = vector.broadcast %1 : vector<1x1x128xf32> to vector<16x16x128xf32>
    %7 = arith.mulf %5, %6 : vector<16x16x128xf32>
    %8 = vector.broadcast %3 : vector<1x1x128xf32> to vector<16x16x128xf32>
    %9 = arith.addf %7, %8 : vector<16x16x128xf32>
    %cst = arith.constant 0.000000e+00 : f32
    %cst_7 = arith.constant 6.000000e+00 : f32
    %10 = vector.broadcast %cst : f32 to vector<16x16x128xf32>
    %11 = arith.maximumf %10, %9 : vector<16x16x128xf32>
    %12 = vector.broadcast %cst_7 : f32 to vector<16x16x128xf32>
    %13 = arith.minimumf %12, %11 : vector<16x16x128xf32>
    %cst_8 = arith.constant 0.000000e+00 : f32
    %14 = vector.broadcast %cst_8 : f32 to vector<1x18x128xf32>
    %cst_9 = arith.constant 0.000000e+00 : f32
    %15 = vector.broadcast %cst_9 : f32 to vector<18x1x128xf32>
    %c0_10 = arith.constant 0 : index
    %c0_11 = arith.constant 0 : index
    %c0_12 = arith.constant 0 : index
    %16 = vector.load %arg8[%c0_10, %c0_11, %c0_12] : memref<18x18x128xf32, #tpu.memory_space<vmem>>, vector<1x18x128xf32>
    tpu.vector_store %arg8[%c0_10, %c0_11, %c0_12], %14 {strides = array<i32>} : memref<18x18x128xf32, #tpu.memory_space<vmem>>, vector<1x18x128xf32>,
    %c17 = arith.constant 17 : index
    %c0_13 = arith.constant 0 : index
    %c0_14 = arith.constant 0 : index
    %17 = vector.load %arg8[%c17, %c0_13, %c0_14] : memref<18x18x128xf32, #tpu.memory_space<vmem>>, vector<1x18x128xf32>
    tpu.vector_store %arg8[%c17, %c0_13, %c0_14], %14 {strides = array<i32>} : memref<18x18x128xf32, #tpu.memory_space<vmem>>, vector<1x18x128xf32>,
    %c0_15 = arith.constant 0 : index
    %c0_16 = arith.constant 0 : index
    %c0_17 = arith.constant 0 : index
    %18 = vector.load %arg8[%c0_15, %c0_16, %c0_17] : memref<18x18x128xf32, #tpu.memory_space<vmem>>, vector<18x1x128xf32>
    tpu.vector_store %arg8[%c0_15, %c0_16, %c0_17], %15 {strides = array<i32>} : memref<18x18x128xf32, #tpu.memory_space<vmem>>, vector<18x1x128xf32>,
    %c0_18 = arith.constant 0 : index
    %c17_19 = arith.constant 17 : index
    %c0_20 = arith.constant 0 : index
    %19 = vector.load %arg8[%c0_18, %c17_19, %c0_20] : memref<18x18x128xf32, #tpu.memory_space<vmem>>, vector<18x1x128xf32>
    tpu.vector_store %arg8[%c0_18, %c17_19, %c0_20], %15 {strides = array<i32>} : memref<18x18x128xf32, #tpu.memory_space<vmem>>, vector<18x1x128xf32>,
    %c1 = arith.constant 1 : index
    %c1_21 = arith.constant 1 : index
    %c0_22 = arith.constant 0 : index
    %20 = vector.load %arg8[%c1, %c1_21, %c0_22] : memref<18x18x128xf32, #tpu.memory_space<vmem>>, vector<16x16x128xf32>
    tpu.vector_store %arg8[%c1, %c1_21, %c0_22], %13 {strides = array<i32>} : memref<18x18x128xf32, #tpu.memory_space<vmem>>, vector<16x16x128xf32>,
    %c0_23 = arith.constant 0 : index
    %c0_24 = arith.constant 0 : index
    %21 = vector.load %arg5[%c0_23, %c0_24] : memref<9x128xf32, #tpu.memory_space<vmem>>, vector<9x128xf32>
    %c0_25 = arith.constant 0 : index
    %c0_26 = arith.constant 0 : index
    %c0_27 = arith.constant 0 : index
    %22 = vector.load %arg8[%c0_25, %c0_26, %c0_27] : memref<18x18x128xf32, #tpu.memory_space<vmem>>, vector<16x16x128xf32>
    %23 = vector.extract_strided_slice %21 {offsets = [0, 0], sizes = [1, 128], strides = [1, 1]} : vector<9x128xf32> to vector<1x128xf32>
    %24 = vector.shape_cast %23 : vector<1x128xf32> to vector<128xf32>
    %25 = vector.shape_cast %24 : vector<128xf32> to vector<1x1x128xf32>
    %26 = vector.broadcast %25 : vector<1x1x128xf32> to vector<16x16x128xf32>
    %27 = arith.mulf %22, %26 : vector<16x16x128xf32>
    %c1_28 = arith.constant 1 : index
    %c0_29 = arith.constant 0 : index
    %c0_30 = arith.constant 0 : index
    %28 = vector.load %arg8[%c1_28, %c0_29, %c0_30] : memref<18x18x128xf32, #tpu.memory_space<vmem>>, vector<16x16x128xf32>
    %29 = vector.extract_strided_slice %21 {offsets = [3, 0], sizes = [1, 128], strides = [1, 1]} : vector<9x128xf32> to vector<1x128xf32>
    %30 = vector.shape_cast %29 : vector<1x128xf32> to vector<128xf32>
    %31 = vector.shape_cast %30 : vector<128xf32> to vector<1x1x128xf32>
    %32 = vector.broadcast %31 : vector<1x1x128xf32> to vector<16x16x128xf32>
    %33 = arith.mulf %28, %32 : vector<16x16x128xf32>
    %34 = arith.addf %27, %33 : vector<16x16x128xf32>
    %c2 = arith.constant 2 : index
    %c0_31 = arith.constant 0 : index
    %c0_32 = arith.constant 0 : index
    %35 = vector.load %arg8[%c2, %c0_31, %c0_32] : memref<18x18x128xf32, #tpu.memory_space<vmem>>, vector<16x16x128xf32>
    %36 = vector.extract_strided_slice %21 {offsets = [6, 0], sizes = [1, 128], strides = [1, 1]} : vector<9x128xf32> to vector<1x128xf32>
    %37 = vector.shape_cast %36 : vector<1x128xf32> to vector<128xf32>
    %38 = vector.shape_cast %37 : vector<128xf32> to vector<1x1x128xf32>
    %39 = vector.broadcast %38 : vector<1x1x128xf32> to vector<16x16x128xf32>
    %40 = arith.mulf %35, %39 : vector<16x16x128xf32>
    %41 = arith.addf %34, %40 : vector<16x16x128xf32>
    %c0_33 = arith.constant 0 : index
    %c1_34 = arith.constant 1 : index
    %c0_35 = arith.constant 0 : index
    %42 = vector.load %arg8[%c0_33, %c1_34, %c0_35] : memref<18x18x128xf32, #tpu.memory_space<vmem>>, vector<16x16x128xf32>
    %43 = vector.extract_strided_slice %21 {offsets = [1, 0], sizes = [1, 128], strides = [1, 1]} : vector<9x128xf32> to vector<1x128xf32>
    %44 = vector.shape_cast %43 : vector<1x128xf32> to vector<128xf32>
    %45 = vector.shape_cast %44 : vector<128xf32> to vector<1x1x128xf32>
    %46 = vector.broadcast %45 : vector<1x1x128xf32> to vector<16x16x128xf32>
    %47 = arith.mulf %42, %46 : vector<16x16x128xf32>
    %c1_36 = arith.constant 1 : index
    %c1_37 = arith.constant 1 : index
    %c0_38 = arith.constant 0 : index
    %48 = vector.load %arg8[%c1_36, %c1_37, %c0_38] : memref<18x18x128xf32, #tpu.memory_space<vmem>>, vector<16x16x128xf32>
    %49 = vector.extract_strided_slice %21 {offsets = [4, 0], sizes = [1, 128], strides = [1, 1]} : vector<9x128xf32> to vector<1x128xf32>
    %50 = vector.shape_cast %49 : vector<1x128xf32> to vector<128xf32>
    %51 = vector.shape_cast %50 : vector<128xf32> to vector<1x1x128xf32>
    %52 = vector.broadcast %51 : vector<1x1x128xf32> to vector<16x16x128xf32>
    %53 = arith.mulf %48, %52 : vector<16x16x128xf32>
    %54 = arith.addf %47, %53 : vector<16x16x128xf32>
    %c2_39 = arith.constant 2 : index
    %c1_40 = arith.constant 1 : index
    %c0_41 = arith.constant 0 : index
    %55 = vector.load %arg8[%c2_39, %c1_40, %c0_41] : memref<18x18x128xf32, #tpu.memory_space<vmem>>, vector<16x16x128xf32>
    %56 = vector.extract_strided_slice %21 {offsets = [7, 0], sizes = [1, 128], strides = [1, 1]} : vector<9x128xf32> to vector<1x128xf32>
    %57 = vector.shape_cast %56 : vector<1x128xf32> to vector<128xf32>
    %58 = vector.shape_cast %57 : vector<128xf32> to vector<1x1x128xf32>
    %59 = vector.broadcast %58 : vector<1x1x128xf32> to vector<16x16x128xf32>
    %60 = arith.mulf %55, %59 : vector<16x16x128xf32>
    %61 = arith.addf %54, %60 : vector<16x16x128xf32>
    %c0_42 = arith.constant 0 : index
    %c2_43 = arith.constant 2 : index
    %c0_44 = arith.constant 0 : index
    %62 = vector.load %arg8[%c0_42, %c2_43, %c0_44] : memref<18x18x128xf32, #tpu.memory_space<vmem>>, vector<16x16x128xf32>
    %63 = vector.extract_strided_slice %21 {offsets = [2, 0], sizes = [1, 128], strides = [1, 1]} : vector<9x128xf32> to vector<1x128xf32>
    %64 = vector.shape_cast %63 : vector<1x128xf32> to vector<128xf32>
    %65 = vector.shape_cast %64 : vector<128xf32> to vector<1x1x128xf32>
    %66 = vector.broadcast %65 : vector<1x1x128xf32> to vector<16x16x128xf32>
    %67 = arith.mulf %62, %66 : vector<16x16x128xf32>
    %c1_45 = arith.constant 1 : index
    %c2_46 = arith.constant 2 : index
    %c0_47 = arith.constant 0 : index
    %68 = vector.load %arg8[%c1_45, %c2_46, %c0_47] : memref<18x18x128xf32, #tpu.memory_space<vmem>>, vector<16x16x128xf32>
    %69 = vector.extract_strided_slice %21 {offsets = [5, 0], sizes = [1, 128], strides = [1, 1]} : vector<9x128xf32> to vector<1x128xf32>
    %70 = vector.shape_cast %69 : vector<1x128xf32> to vector<128xf32>
    %71 = vector.shape_cast %70 : vector<128xf32> to vector<1x1x128xf32>
    %72 = vector.broadcast %71 : vector<1x1x128xf32> to vector<16x16x128xf32>
    %73 = arith.mulf %68, %72 : vector<16x16x128xf32>
    %74 = arith.addf %67, %73 : vector<16x16x128xf32>
    %c2_48 = arith.constant 2 : index
    %c2_49 = arith.constant 2 : index
    %c0_50 = arith.constant 0 : index
    %75 = vector.load %arg8[%c2_48, %c2_49, %c0_50] : memref<18x18x128xf32, #tpu.memory_space<vmem>>, vector<16x16x128xf32>
    %76 = vector.extract_strided_slice %21 {offsets = [8, 0], sizes = [1, 128], strides = [1, 1]} : vector<9x128xf32> to vector<1x128xf32>
    %77 = vector.shape_cast %76 : vector<1x128xf32> to vector<128xf32>
    %78 = vector.shape_cast %77 : vector<128xf32> to vector<1x1x128xf32>
    %79 = vector.broadcast %78 : vector<1x1x128xf32> to vector<16x16x128xf32>
    %80 = arith.mulf %75, %79 : vector<16x16x128xf32>
    %81 = arith.addf %74, %80 : vector<16x16x128xf32>
    %82 = arith.addf %41, %61 : vector<16x16x128xf32>
    %83 = arith.addf %82, %81 : vector<16x16x128xf32>
    %c0_51 = arith.constant 0 : index
    %c0_52 = arith.constant 0 : index
    %c0_53 = arith.constant 0 : index
    %c0_54 = arith.constant 0 : index
    %84 = vector.load %arg6[%c0_51, %c0_52, %c0_53, %c0_54] : memref<1x16x16x128xf32, #tpu.memory_space<vmem>>, vector<1x16x16x128xf32>
    %85 = vector.shape_cast %84 : vector<1x16x16x128xf32> to vector<16x16x128xf32>
    %86 = vector.shape_cast %83 : vector<16x16x128xf32> to vector<1x16x16x128xf32>
    tpu.vector_store %arg6[%c0_51, %c0_52, %c0_53, %c0_54], %86 {strides = array<i32>} : memref<1x16x16x128xf32, #tpu.memory_space<vmem>>, vector<1x16x16x128xf32>,
    %cst_55 = arith.constant dense<0.000000e+00> : vector<16x128xf32>
    %87 = vector.multi_reduction <add>, %83, %cst_55 [0] : vector<16x16x128xf32> to vector<16x128xf32>
    %cst_56 = arith.constant dense<0.000000e+00> : vector<128xf32>
    %88 = vector.multi_reduction <add>, %87, %cst_56 [0] : vector<16x128xf32> to vector<128xf32>
    %89 = vector.shape_cast %88 : vector<128xf32> to vector<1x128xf32>
    %c0_57 = arith.constant 0 : index
    %c0_58 = arith.constant 0 : index
    %c0_59 = arith.constant 0 : index
    %c0_60 = arith.constant 0 : index
    %90 = vector.load %arg7[%c0_57, %c0_58, %c0_59, %c0_60] : memref<1x1x2x128xf32, #tpu.memory_space<vmem>>, vector<1x1x1x128xf32>
    %91 = vector.shape_cast %90 : vector<1x1x1x128xf32> to vector<1x128xf32>
    %92 = vector.shape_cast %89 : vector<1x128xf32> to vector<1x1x1x128xf32>
    tpu.vector_store %arg7[%c0_57, %c0_58, %c0_59, %c0_60], %92 {strides = array<i32>} : memref<1x1x2x128xf32, #tpu.memory_space<vmem>>, vector<1x1x1x128xf32>,
    %93 = arith.mulf %83, %83 : vector<16x16x128xf32>
    %cst_61 = arith.constant dense<0.000000e+00> : vector<16x128xf32>
    %94 = vector.multi_reduction <add>, %93, %cst_61 [0] : vector<16x16x128xf32> to vector<16x128xf32>
    %cst_62 = arith.constant dense<0.000000e+00> : vector<128xf32>
    %95 = vector.multi_reduction <add>, %94, %cst_62 [0] : vector<16x128xf32> to vector<128xf32>
    %96 = vector.shape_cast %95 : vector<128xf32> to vector<1x128xf32>
    %c0_63 = arith.constant 0 : index
    %c0_64 = arith.constant 0 : index
    %c1_65 = arith.constant 1 : index
    %c0_66 = arith.constant 0 : index
    %97 = vector.load %arg7[%c0_63, %c0_64, %c1_65, %c0_66] : memref<1x1x2x128xf32, #tpu.memory_space<vmem>>, vector<1x1x1x128xf32>
    %98 = vector.shape_cast %97 : vector<1x1x1x128xf32> to vector<1x128xf32>
    %99 = vector.shape_cast %96 : vector<1x128xf32> to vector<1x1x1x128xf32>
    tpu.vector_store %arg7[%c0_63, %c0_64, %c1_65, %c0_66], %99 {strides = array<i32>} : memref<1x1x2x128xf32, #tpu.memory_space<vmem>>, vector<1x1x1x128xf32>,
    return
  }
  func.func @transform_0(%arg0: i32, %arg1: i32) -> (i32, i32, i32, i32) {
    %c0_i32 = arith.constant 0 : i32
    %c0_i32_0 = arith.constant 0 : i32
    %c0_i32_1 = arith.constant 0 : i32
    return %arg0, %c0_i32, %c0_i32_0, %arg1 : i32, i32, i32, i32
  }
  func.func @transform_1(%arg0: i32, %arg1: i32) -> (i32, i32) {
    %c0_i32 = arith.constant 0 : i32
    %c0_i32_0 = arith.constant 0 : i32
    return %c0_i32, %arg1 : i32, i32
  }
  func.func @transform_2(%arg0: i32, %arg1: i32) -> (i32, i32) {
    %c0_i32 = arith.constant 0 : i32
    %c0_i32_0 = arith.constant 0 : i32
    return %c0_i32, %arg1 : i32, i32
  }
  func.func @transform_3(%arg0: i32, %arg1: i32) -> (i32, i32) {
    %c0_i32 = arith.constant 0 : i32
    %c0_i32_0 = arith.constant 0 : i32
    return %c0_i32, %arg1 : i32, i32
  }
  func.func @transform_4(%arg0: i32, %arg1: i32) -> (i32, i32, i32, i32) {
    %c0_i32 = arith.constant 0 : i32
    %c0_i32_0 = arith.constant 0 : i32
    %c0_i32_1 = arith.constant 0 : i32
    return %arg0, %c0_i32, %c0_i32_0, %arg1 : i32, i32, i32, i32
  }
  func.func @transform_5(%arg0: i32, %arg1: i32) -> (i32, i32, i32, i32) {
    %c0_i32 = arith.constant 0 : i32
    %c0_i32_0 = arith.constant 0 : i32
    %c0_i32_1 = arith.constant 0 : i32
    return %arg0, %arg1, %c0_i32, %c0_i32_0 : i32, i32, i32, i32
  }
}

module attributes {stable_mosaic.version = 11 : i64} {
  func.func @_project_kernel(%arg0: i32, %arg1: memref<512x128xf32, #tpu.memory_space<vmem>>, %arg2: memref<1x128xf32, #tpu.memory_space<vmem>>, %arg3: memref<1x128xf32, #tpu.memory_space<vmem>>, %arg4: memref<128x128xf32, #tpu.memory_space<vmem>>, %arg5: memref<512x128xf32, #tpu.memory_space<vmem>>, %arg6: memref<1x2x128xf32, #tpu.memory_space<vmem>>) attributes {dimension_semantics = [#tpu.dimension_semantics<parallel>], iteration_bounds = array<i64: 1>, scalar_prefetch = 0 : i64, scratch_operands = 0 : i64, tpu.core_type = #tpu.core_type<tc>, window_params = [{transform_indices = @transform_0, window_bounds = array<i64: 512, 128>}, {pipeline_mode = #tpu.pipeline_mode<synchronous>, transform_indices = @transform_1, window_bounds = array<i64: 1, 128>}, {pipeline_mode = #tpu.pipeline_mode<synchronous>, transform_indices = @transform_2, window_bounds = array<i64: 1, 128>}, {pipeline_mode = #tpu.pipeline_mode<synchronous>, transform_indices = @transform_3, window_bounds = array<i64: 128, 128>}, {transform_indices = @transform_4, window_bounds = array<i64: 512, 128>}, {transform_indices = @transform_5, window_bounds = array<i64: 1, 2, 128>}]} {
    %c0 = arith.constant 0 : index
    %c0_0 = arith.constant 0 : index
    %0 = vector.load %arg1[%c0, %c0_0] : memref<512x128xf32, #tpu.memory_space<vmem>>, vector<512x128xf32>
    %c0_1 = arith.constant 0 : index
    %c0_2 = arith.constant 0 : index
    %1 = vector.load %arg2[%c0_1, %c0_2] : memref<1x128xf32, #tpu.memory_space<vmem>>, vector<1x128xf32>
    %2 = vector.broadcast %1 : vector<1x128xf32> to vector<512x128xf32>
    %3 = arith.mulf %0, %2 : vector<512x128xf32>
    %c0_3 = arith.constant 0 : index
    %c0_4 = arith.constant 0 : index
    %4 = vector.load %arg3[%c0_3, %c0_4] : memref<1x128xf32, #tpu.memory_space<vmem>>, vector<1x128xf32>
    %5 = vector.broadcast %4 : vector<1x128xf32> to vector<512x128xf32>
    %6 = arith.addf %3, %5 : vector<512x128xf32>
    %cst = arith.constant 0.000000e+00 : f32
    %cst_5 = arith.constant 6.000000e+00 : f32
    %7 = vector.broadcast %cst : f32 to vector<512x128xf32>
    %8 = arith.maximumf %7, %6 : vector<512x128xf32>
    %9 = vector.broadcast %cst_5 : f32 to vector<512x128xf32>
    %10 = arith.minimumf %9, %8 : vector<512x128xf32>
    %c0_6 = arith.constant 0 : index
    %c0_7 = arith.constant 0 : index
    %11 = vector.load %arg4[%c0_6, %c0_7] : memref<128x128xf32, #tpu.memory_space<vmem>>, vector<128x128xf32>
    %cst_8 = arith.constant dense<0.000000e+00> : vector<512x128xf32>
    %12 = tpu.matmul %10, %11, %cst_8 {dimension_numbers = #tpu.dot_dimension_numbers<[1], [0], [0], [1], [0, 0, 1, 1], [], []>} : vector<512x128xf32>, vector<128x128xf32>, vector<512x128xf32> -> vector<512x128xf32>
    %c0_9 = arith.constant 0 : index
    %c0_10 = arith.constant 0 : index
    %13 = vector.load %arg5[%c0_9, %c0_10] : memref<512x128xf32, #tpu.memory_space<vmem>>, vector<512x128xf32>
    tpu.vector_store %arg5[%c0_9, %c0_10], %12 {strides = array<i32>} : memref<512x128xf32, #tpu.memory_space<vmem>>, vector<512x128xf32>,
    %cst_11 = arith.constant dense<0.000000e+00> : vector<128xf32>
    %14 = vector.multi_reduction <add>, %12, %cst_11 [0] : vector<512x128xf32> to vector<128xf32>
    %15 = vector.shape_cast %14 : vector<128xf32> to vector<1x128xf32>
    %c0_12 = arith.constant 0 : index
    %c0_13 = arith.constant 0 : index
    %c0_14 = arith.constant 0 : index
    %16 = vector.load %arg6[%c0_12, %c0_13, %c0_14] : memref<1x2x128xf32, #tpu.memory_space<vmem>>, vector<1x1x128xf32>
    %17 = vector.shape_cast %16 : vector<1x1x128xf32> to vector<1x128xf32>
    %18 = vector.shape_cast %15 : vector<1x128xf32> to vector<1x1x128xf32>
    tpu.vector_store %arg6[%c0_12, %c0_13, %c0_14], %18 {strides = array<i32>} : memref<1x2x128xf32, #tpu.memory_space<vmem>>, vector<1x1x128xf32>,
    %19 = arith.mulf %12, %12 : vector<512x128xf32>
    %cst_15 = arith.constant dense<0.000000e+00> : vector<128xf32>
    %20 = vector.multi_reduction <add>, %19, %cst_15 [0] : vector<512x128xf32> to vector<128xf32>
    %21 = vector.shape_cast %20 : vector<128xf32> to vector<1x128xf32>
    %c0_16 = arith.constant 0 : index
    %c1 = arith.constant 1 : index
    %c0_17 = arith.constant 0 : index
    %22 = vector.load %arg6[%c0_16, %c1, %c0_17] : memref<1x2x128xf32, #tpu.memory_space<vmem>>, vector<1x1x128xf32>
    %23 = vector.shape_cast %22 : vector<1x1x128xf32> to vector<1x128xf32>
    %24 = vector.shape_cast %21 : vector<1x128xf32> to vector<1x1x128xf32>
    tpu.vector_store %arg6[%c0_16, %c1, %c0_17], %24 {strides = array<i32>} : memref<1x2x128xf32, #tpu.memory_space<vmem>>, vector<1x1x128xf32>,
    return
  }
  func.func @transform_0(%arg0: i32) -> (i32, i32) {
    %c0_i32 = arith.constant 0 : i32
    %c0_i32_0 = arith.constant 0 : i32
    return %arg0, %c0_i32 : i32, i32
  }
  func.func @transform_1(%arg0: i32) -> (i32, i32) {
    %c0_i32 = arith.constant 0 : i32
    %c0_i32_0 = arith.constant 0 : i32
    %c0_i32_1 = arith.constant 0 : i32
    return %c0_i32, %c0_i32_0 : i32, i32
  }
  func.func @transform_2(%arg0: i32) -> (i32, i32) {
    %c0_i32 = arith.constant 0 : i32
    %c0_i32_0 = arith.constant 0 : i32
    %c0_i32_1 = arith.constant 0 : i32
    return %c0_i32, %c0_i32_0 : i32, i32
  }
  func.func @transform_3(%arg0: i32) -> (i32, i32) {
    %c0_i32 = arith.constant 0 : i32
    %c0_i32_0 = arith.constant 0 : i32
    %c0_i32_1 = arith.constant 0 : i32
    return %c0_i32, %c0_i32_0 : i32, i32
  }
  func.func @transform_4(%arg0: i32) -> (i32, i32) {
    %c0_i32 = arith.constant 0 : i32
    %c0_i32_0 = arith.constant 0 : i32
    return %arg0, %c0_i32 : i32, i32
  }
  func.func @transform_5(%arg0: i32) -> (i32, i32, i32) {
    %c0_i32 = arith.constant 0 : i32
    %c0_i32_0 = arith.constant 0 : i32
    %c0_i32_1 = arith.constant 0 : i32
    return %arg0, %c0_i32, %c0_i32_0 : i32, i32, i32
  }
}

module attributes {stable_mosaic.version = 11 : i64} {
  func.func @_finalize_res_kernel(%arg0: i32, %arg1: memref<512x128xf32, #tpu.memory_space<vmem>>, %arg2: memref<1x128xf32, #tpu.memory_space<vmem>>, %arg3: memref<1x128xf32, #tpu.memory_space<vmem>>, %arg4: memref<512x4xf32, #tpu.memory_space<vmem>>, %arg5: memref<512x128xf32, #tpu.memory_space<vmem>>) attributes {dimension_semantics = [#tpu.dimension_semantics<parallel>], iteration_bounds = array<i64: 1>, scalar_prefetch = 0 : i64, scratch_operands = 0 : i64, tpu.core_type = #tpu.core_type<tc>, window_params = [{transform_indices = @transform_0, window_bounds = array<i64: 512, 128>}, {pipeline_mode = #tpu.pipeline_mode<synchronous>, transform_indices = @transform_1, window_bounds = array<i64: 1, 128>}, {pipeline_mode = #tpu.pipeline_mode<synchronous>, transform_indices = @transform_2, window_bounds = array<i64: 1, 128>}, {transform_indices = @transform_3, window_bounds = array<i64: 512, 4>}, {transform_indices = @transform_4, window_bounds = array<i64: 512, 128>}]} {
    %c0 = arith.constant 0 : index
    %c0_0 = arith.constant 0 : index
    %0 = vector.load %arg4[%c0, %c0_0] : memref<512x4xf32, #tpu.memory_space<vmem>>, vector<512x4xf32>
    %cst = arith.constant 0.000000e+00 : f32
    %1 = vector.broadcast %cst : f32 to vector<512x124xf32>
    %2 = tpu.concatenate %0, %1 in 1 : vector<512x4xf32>, vector<512x124xf32> -> vector<512x128xf32>
    %c0_1 = arith.constant 0 : index
    %c0_2 = arith.constant 0 : index
    %3 = vector.load %arg1[%c0_1, %c0_2] : memref<512x128xf32, #tpu.memory_space<vmem>>, vector<512x128xf32>
    %c0_3 = arith.constant 0 : index
    %c0_4 = arith.constant 0 : index
    %4 = vector.load %arg2[%c0_3, %c0_4] : memref<1x128xf32, #tpu.memory_space<vmem>>, vector<1x128xf32>
    %5 = vector.broadcast %4 : vector<1x128xf32> to vector<512x128xf32>
    %6 = arith.mulf %3, %5 : vector<512x128xf32>
    %c0_5 = arith.constant 0 : index
    %c0_6 = arith.constant 0 : index
    %7 = vector.load %arg3[%c0_5, %c0_6] : memref<1x128xf32, #tpu.memory_space<vmem>>, vector<1x128xf32>
    %8 = vector.broadcast %7 : vector<1x128xf32> to vector<512x128xf32>
    %9 = arith.addf %6, %8 : vector<512x128xf32>
    %10 = arith.addf %9, %2 : vector<512x128xf32>
    %c0_7 = arith.constant 0 : index
    %c0_8 = arith.constant 0 : index
    %11 = vector.load %arg5[%c0_7, %c0_8] : memref<512x128xf32, #tpu.memory_space<vmem>>, vector<512x128xf32>
    tpu.vector_store %arg5[%c0_7, %c0_8], %10 {strides = array<i32>} : memref<512x128xf32, #tpu.memory_space<vmem>>, vector<512x128xf32>,
    return
  }
  func.func @transform_0(%arg0: i32) -> (i32, i32) {
    %c0_i32 = arith.constant 0 : i32
    %c0_i32_0 = arith.constant 0 : i32
    return %arg0, %c0_i32 : i32, i32
  }
  func.func @transform_1(%arg0: i32) -> (i32, i32) {
    %c0_i32 = arith.constant 0 : i32
    %c0_i32_0 = arith.constant 0 : i32
    %c0_i32_1 = arith.constant 0 : i32
    return %c0_i32, %c0_i32_0 : i32, i32
  }
  func.func @transform_2(%arg0: i32) -> (i32, i32) {
    %c0_i32 = arith.constant 0 : i32
    %c0_i32_0 = arith.constant 0 : i32
    %c0_i32_1 = arith.constant 0 : i32
    return %c0_i32, %c0_i32_0 : i32, i32
  }
  func.func @transform_3(%arg0: i32) -> (i32, i32) {
    %c0_i32 = arith.constant 0 : i32
    %c0_i32_0 = arith.constant 0 : i32
    return %arg0, %c0_i32 : i32, i32
  }
  func.func @transform_4(%arg0: i32) -> (i32, i32) {
    %c0_i32 = arith.constant 0 : i32
    %c0_i32_0 = arith.constant 0 : i32
    return %arg0, %c0_i32 : i32, i32
  }
}

</mosaic_0001>

<llo_original>
// kernel: linear_bottleneck_forward.4
$region0: #{linear_bottleneck_forward.4}
  #allocation0 [shape = 'u32[]', space=smem, size = 0x4, offset = 0x4, fixed_abs, tag = 'smem constant byte address 0x4 - core index']
  #allocation1 [shape = 'u32[144,128]{1,0:T(1,128)}', space=vmem, size = 0x12000, scoped, tag = 'internal scratch']
  %s0 = inlined_call_operand.vmem [shape: f32[512,4], index: 0, kind: input, shape index: {}]
  %s1 = inlined_call_operand.vmem [shape: f32[4,128], index: 1, kind: input, shape index: {}]
  %s2 = inlined_call_operand.vmem [shape: f32[512,128], index: 2, kind: output, shape index: {0}]
  %s3 = inlined_call_operand.vmem [shape: f32[1,2,128], index: 3, kind: output, shape index: {1}]
  %4 = xla_tuple %s2, %s3
  %s5 = sld [smem:[#allocation0]]
  $region26: #{linear_bottleneck_forward.4} parent=0
    _
  %s7 = ssub.s32 1, %s5
  %s8 = scalar_select 0, %s7, %s5
  // Predicated region
  $region2: #{linear_bottleneck_forward.4} parent=0 // pred_check
    _
  $region3: #{linear_bottleneck_forward.4} parent=0 // pred_check_branch
    %10 = sbr.rel (0) target = $region5
  $region4: #{linear_bottleneck_forward.4} parent=0 // pred_region
    _
  $region5: #{linear_bottleneck_forward.4} parent=0 // pred_fallthru
    _
  // Predicated region
  $region6: #{linear_bottleneck_forward.4} parent=0 // pred_check
    _
  $region7: #{linear_bottleneck_forward.4} parent=0 // pred_check_branch
    %12 = sbr.rel (0) target = $region9
  $region8: #{linear_bottleneck_forward.4} parent=0 // pred_region
    _
  $region9: #{linear_bottleneck_forward.4} parent=0 // pred_fallthru
    _
  %v13 = vld [vmem:[%s0] sm:$0xff]
  %v14 = vld [vmem:[%s0 + $0x8] sm:$0xff]
  %v15 = vld [vmem:[%s0 + $0x10] sm:$0xff]
  %v16 = vld [vmem:[%s0 + $0x18] sm:$0xff]
  %v17 = vld [vmem:[%s0 + $0x20] sm:$0xff]
  %v18 = vld [vmem:[%s0 + $0x28] sm:$0xff]
  %v19 = vld [vmem:[%s0 + $0x30] sm:$0xff]
  %v20 = vld [vmem:[%s0 + $0x38] sm:$0xff]
  %v21 = vld [vmem:[%s0 + $0x40] sm:$0xff]
  %v22 = vld [vmem:[%s0 + $0x48] sm:$0xff]
  %v23 = vld [vmem:[%s0 + $0x50] sm:$0xff]
  %v24 = vld [vmem:[%s0 + $0x58] sm:$0xff]
  %v25 = vld [vmem:[%s0 + $0x60] sm:$0xff]
  %v26 = vld [vmem:[%s0 + $0x68] sm:$0xff]
  %v27 = vld [vmem:[%s0 + $0x70] sm:$0xff]
  %v28 = vld [vmem:[%s0 + $0x78] sm:$0xff]
  %v29 = vld [vmem:[%s0 + $0x80] sm:$0xff]
  %v30 = vld [vmem:[%s0 + $0x88] sm:$0xff]
  %v31 = vld [vmem:[%s0 + $0x90] sm:$0xff]
  %v32 = vld [vmem:[%s0 + $0x98] sm:$0xff]
  %v33 = vld [vmem:[%s0 + $0xa0] sm:$0xff]
  %v34 = vld [vmem:[%s0 + $0xa8] sm:$0xff]
  %v35 = vld [vmem:[%s0 + $0xb0] sm:$0xff]
  %v36 = vld [vmem:[%s0 + $0xb8] sm:$0xff]
  %v37 = vld [vmem:[%s0 + $0xc0] sm:$0xff]
  %v38 = vld [vmem:[%s0 + $0xc8] sm:$0xff]
  %v39 = vld [vmem:[%s0 + $0xd0] sm:$0xff]
  %v40 = vld [vmem:[%s0 + $0xd8] sm:$0xff]
  %v41 = vld [vmem:[%s0 + $0xe0] sm:$0xff]
  %v42 = vld [vmem:[%s0 + $0xe8] sm:$0xff]
  %v43 = vld [vmem:[%s0 + $0xf0] sm:$0xff]
  %v44 = vld [vmem:[%s0 + $0xf8] sm:$0xff]
  %v45 = vld [vmem:[%s0 + $0x100] sm:$0xff]
  %v46 = vld [vmem:[%s0 + $0x108] sm:$0xff]
  %v47 = vld [vmem:[%s0 + $0x110] sm:$0xff]
  %v48 = vld [vmem:[%s0 + $0x118] sm:$0xff]
  %v49 = vld [vmem:[%s0 + $0x120] sm:$0xff]
  %v50 = vld [vmem:[%s0 + $0x128] sm:$0xff]
  %v51 = vld [vmem:[%s0 + $0x130] sm:$0xff]
  %v52 = vld [vmem:[%s0 + $0x138] sm:$0xff]
  %v53 = vld [vmem:[%s0 + $0x140] sm:$0xff]
  %v54 = vld [vmem:[%s0 + $0x148] sm:$0xff]
  %v55 = vld [vmem:[%s0 + $0x150] sm:$0xff]
  %v56 = vld [vmem:[%s0 + $0x158] sm:$0xff]
  %v57 = vld [vmem:[%s0 + $0x160] sm:$0xff]
  %v58 = vld [vmem:[%s0 + $0x168] sm:$0xff]
  %v59 = vld [vmem:[%s0 + $0x170] sm:$0xff]
  %v60 = vld [vmem:[%s0 + $0x178] sm:$0xff]
  %v61 = vld [vmem:[%s0 + $0x180] sm:$0xff]
  %v62 = vld [vmem:[%s0 + $0x188] sm:$0xff]
  %v63 = vld [vmem:[%s0 + $0x190] sm:$0xff]
  %v64 = vld [vmem:[%s0 + $0x198] sm:$0xff]
  %v65 = vld [vmem:[%s0 + $0x1a0] sm:$0xff]
  %v66 = vld [vmem:[%s0 + $0x1a8] sm:$0xff]
  %v67 = vld [vmem:[%s0 + $0x1b0] sm:$0xff]
  %v68 = vld [vmem:[%s0 + $0x1b8] sm:$0xff]
  %v69 = vld [vmem:[%s0 + $0x1c0] sm:$0xff]
  %v70 = vld [vmem:[%s0 + $0x1c8] sm:$0xff]
  %v71 = vld [vmem:[%s0 + $0x1d0] sm:$0xff]
  %v72 = vld [vmem:[%s0 + $0x1d8] sm:$0xff]
  %v73 = vld [vmem:[%s0 + $0x1e0] sm:$0xff]
  %v74 = vld [vmem:[%s0 + $0x1e8] sm:$0xff]
  %v75 = vld [vmem:[%s0 + $0x1f0] sm:$0xff]
  %v76 = vld [vmem:[%s0 + $0x1f8] sm:$0xff]
  %v77 = vld [vmem:[%s1] sm:$0xf]
  %vm78 = vcmask 31744
  %v80 = vsel %vm78, %v13, 0
  %v83 = vsel %vm78, %v14, 0
  %v86 = vsel %vm78, %v15, 0
  %v89 = vsel %vm78, %v16, 0
  %v92 = vsel %vm78, %v17, 0
  %v95 = vsel %vm78, %v18, 0
  %v98 = vsel %vm78, %v19, 0
  %v101 = vsel %vm78, %v20, 0
  %v104 = vsel %vm78, %v21, 0
  %v107 = vsel %vm78, %v22, 0
  %v110 = vsel %vm78, %v23, 0
  %v113 = vsel %vm78, %v24, 0
  %v116 = vsel %vm78, %v25, 0
  %v119 = vsel %vm78, %v26, 0
  %v122 = vsel %vm78, %v27, 0
  %v125 = vsel %vm78, %v28, 0
  %v128 = vsel %vm78, %v29, 0
  %v131 = vsel %vm78, %v30, 0
  %v134 = vsel %vm78, %v31, 0
  %v137 = vsel %vm78, %v32, 0
  %v140 = vsel %vm78, %v33, 0
  %v143 = vsel %vm78, %v34, 0
  %v146 = vsel %vm78, %v35, 0
  %v149 = vsel %vm78, %v36, 0
  %v152 = vsel %vm78, %v37, 0
  %v155 = vsel %vm78, %v38, 0
  %v158 = vsel %vm78, %v39, 0
  %v161 = vsel %vm78, %v40, 0
  %v164 = vsel %vm78, %v41, 0
  %v167 = vsel %vm78, %v42, 0
  %v170 = vsel %vm78, %v43, 0
  %v173 = vsel %vm78, %v44, 0
  %v176 = vsel %vm78, %v45, 0
  %v179 = vsel %vm78, %v46, 0
  %v182 = vsel %vm78, %v47, 0
  %v185 = vsel %vm78, %v48, 0
  %v188 = vsel %vm78, %v49, 0
  %v191 = vsel %vm78, %v50, 0
  %v194 = vsel %vm78, %v51, 0
  %v197 = vsel %vm78, %v52, 0
  %v200 = vsel %vm78, %v53, 0
  %v203 = vsel %vm78, %v54, 0
  %v206 = vsel %vm78, %v55, 0
  %v209 = vsel %vm78, %v56, 0
  %v212 = vsel %vm78, %v57, 0
  %v215 = vsel %vm78, %v58, 0
  %v218 = vsel %vm78, %v59, 0
  %v221 = vsel %vm78, %v60, 0
  %v224 = vsel %vm78, %v61, 0
  %v227 = vsel %vm78, %v62, 0
  %v230 = vsel %vm78, %v63, 0
  %v233 = vsel %vm78, %v64, 0
  %v236 = vsel %vm78, %v65, 0
  %v239 = vsel %vm78, %v66, 0
  %v242 = vsel %vm78, %v67, 0
  %v245 = vsel %vm78, %v68, 0
  %v248 = vsel %vm78, %v69, 0
  %v251 = vsel %vm78, %v70, 0
  %v254 = vsel %vm78, %v71, 0
  %v257 = vsel %vm78, %v72, 0
  %v260 = vsel %vm78, %v73, 0
  %v263 = vsel %vm78, %v74, 0
  %v266 = vsel %vm78, %v75, 0
  %v269 = vsel %vm78, %v76, 0
  %vm271 = vcmask 1043456
  %v273 = vsel %vm271, %v77, 0
  %275 = vmatprep.subr.mxu0 0.0
  %276 = vmatpush1.msra.mxu0 %v273
  %277 = vmatprep.subr.mxu0 0.0
  %278 = vmatpush1.msra.mxu0 0.0
  %279 = vmatprep.subr.mxu0 0.0
  %280 = vmatpush1.msra.mxu0 0.0
  %281 = vmatprep.subr.mxu0 0.0
  %282 = vmatpush1.msra.mxu0 0.0
  %283 = vmatprep.subr.mxu0 0.0
  %284 = vmatpush1.msra.mxu0 0.0
  %285 = vmatprep.subr.mxu0 0.0
  %286 = vmatpush1.msra.mxu0 0.0
  %287 = vmatprep.subr.mxu0 0.0
  %288 = vmatpush1.msra.mxu0 0.0
  %289 = vmatprep.subr.mxu0 0.0
  %290 = vmatpush1.msra.mxu0 0.0
  %291 = vmatprep.subr.mxu0 0.0
  %292 = vmatpush1.msra.mxu0 0.0
  %293 = vmatprep.subr.mxu0 0.0
  %294 = vmatpush1.msra.mxu0 0.0
  %295 = vmatprep.subr.mxu0 0.0
  %296 = vmatpush1.msra.mxu0 0.0
  %297 = vmatprep.subr.mxu0 0.0
  %298 = vmatpush1.msra.mxu0 0.0
  %299 = vmatprep.subr.mxu0 0.0
  %300 = vmatpush1.msra.mxu0 0.0
  %301 = vmatprep.subr.mxu0 0.0
  %302 = vmatpush1.msra.mxu0 0.0
  %303 = vmatprep.subr.mxu0 0.0
  %304 = vmatpush1.msra.mxu0 0.0
  %305 = vmatprep.subr.mxu0 0.0
  %306 = vmatpush1.msra.mxu0 0.0
  %307 = vmatprep.subr.mxu0 0.0
  %308 = vmatpush1.msra.mxu0 0.0
  %309 = vmatprep.subr.mxu0 0.0
  %310 = vmatpush1.msra.mxu0 0.0
  %311 = vmatprep.subr.mxu0 0.0
  %312 = vmatpush1.msra.mxu0 0.0
  %313 = vmatprep.subr.mxu0 0.0
  %314 = vmatpush1.msra.mxu0 0.0
  %315 = vmatprep.subr.mxu0 0.0
  %316 = vmatpush1.msra.mxu0 0.0
  %317 = vmatprep.subr.mxu0 0.0
  %318 = vmatpush1.msra.mxu0 0.0
  %319 = vmatprep.subr.mxu0 0.0
  %320 = vmatpush1.msra.mxu0 0.0
  %321 = vmatprep.subr.mxu0 0.0
  %322 = vmatpush1.msra.mxu0 0.0
  %323 = vmatprep.subr.mxu0 0.0
  %324 = vmatpush1.msra.mxu0 0.0
  %325 = vmatprep.subr.mxu0 0.0
  %326 = vmatpush1.msra.mxu0 0.0
  %327 = vmatprep.subr.mxu0 0.0
  %328 = vmatpush1.msra.mxu0 0.0
  %329 = vmatprep.subr.mxu0 0.0
  %330 = vmatpush1.msra.mxu0 0.0
  %331 = vmatprep.subr.mxu0 0.0
  %332 = vmatpush1.msra.mxu0 0.0
  %333 = vmatprep.subr.mxu0 0.0
  %334 = vmatpush1.msra.mxu0 0.0
  %335 = vmatprep.subr.mxu0 0.0
  %336 = vmatpush1.msra.mxu0 0.0
  %337 = vmatprep.subr.mxu0 0.0
  %338 = vmatpush1.msra.mxu0 0.0
  %339 = vmatprep.mubr.f32.mxu0 0.0
  %340 = vmatmul.mubr.f32.gmra.mrb[0].mxu0 %v80
  %v341 = vpop.f32.mrb[0].mxu0
  %v342 = vadd.f32 0.0, %v341
  %v343 = vpop.f32.mrb[0].mxu0
  %344 = vmatprep.mubr.f32.mxu0 0.0
  %345 = vmatmul.mubr.f32.gmra.mrb[0].mxu0 %v83
  %v346 = vpop.f32.mrb[0].mxu0
  %v347 = vadd.f32 0.0, %v346
  %v348 = vpop.f32.mrb[0].mxu0
  %349 = vmatprep.mubr.f32.mxu0 0.0
  %350 = vmatmul.mubr.f32.gmra.mrb[0].mxu0 %v86
  %v351 = vpop.f32.mrb[0].mxu0
  %v352 = vadd.f32 0.0, %v351
  %v353 = vpop.f32.mrb[0].mxu0
  %354 = vmatprep.mubr.f32.mxu0 0.0
  %355 = vmatmul.mubr.f32.gmra.mrb[0].mxu0 %v89
  %v356 = vpop.f32.mrb[0].mxu0
  %v357 = vadd.f32 0.0, %v356
  %v358 = vpop.f32.mrb[0].mxu0
  %359 = vmatprep.mubr.f32.mxu0 0.0
  %360 = vmatmul.mubr.f32.gmra.mrb[0].mxu0 %v92
  %v361 = vpop.f32.mrb[0].mxu0
  %v362 = vadd.f32 0.0, %v361
  %v363 = vpop.f32.mrb[0].mxu0
  %364 = vmatprep.mubr.f32.mxu0 0.0
  %365 = vmatmul.mubr.f32.gmra.mrb[0].mxu0 %v95
  %v366 = vpop.f32.mrb[0].mxu0
  %v367 = vadd.f32 0.0, %v366
  %v368 = vpop.f32.mrb[0].mxu0
  %369 = vmatprep.mubr.f32.mxu0 0.0
  %370 = vmatmul.mubr.f32.gmra.mrb[0].mxu0 %v98
  %v371 = vpop.f32.mrb[0].mxu0
  %v372 = vadd.f32 0.0, %v371
  %v373 = vpop.f32.mrb[0].mxu0
  %374 = vmatprep.mubr.f32.mxu0 0.0
  %375 = vmatmul.mubr.f32.gmra.mrb[0].mxu0 %v101
  %v376 = vpop.f32.mrb[0].mxu0
  %v377 = vadd.f32 0.0, %v376
  %v378 = vpop.f32.mrb[0].mxu0
  %379 = vmatprep.mubr.f32.mxu0 0.0
  %380 = vmatmul.mubr.f32.gmra.mrb[0].mxu0 %v104
  %v381 = vpop.f32.mrb[0].mxu0
  %v382 = vadd.f32 0.0, %v381
  %v383 = vpop.f32.mrb[0].mxu0
  %384 = vmatprep.mubr.f32.mxu0 0.0
  %385 = vmatmul.mubr.f32.gmra.mrb[0].mxu0 %v107
  %v386 = vpop.f32.mrb[0].mxu0
  %v387 = vadd.f32 0.0, %v386
  %v388 = vpop.f32.mrb[0].mxu0
  %389 = vmatprep.mubr.f32.mxu0 0.0
  %390 = vmatmul.mubr.f32.gmra.mrb[0].mxu0 %v110
  %v391 = vpop.f32.mrb[0].mxu0
  %v392 = vadd.f32 0.0, %v391
  %v393 = vpop.f32.mrb[0].mxu0
  %394 = vmatprep.mubr.f32.mxu0 0.0
  %395 = vmatmul.mubr.f32.gmra.mrb[0].mxu0 %v113
  %v396 = vpop.f32.mrb[0].mxu0
  %v397 = vadd.f32 0.0, %v396
  %v398 = vpop.f32.mrb[0].mxu0
  %399 = vmatprep.mubr.f32.mxu0 0.0
  %400 = vmatmul.mubr.f32.gmra.mrb[0].mxu0 %v116
  %v401 = vpop.f32.mrb[0].mxu0
  %v402 = vadd.f32 0.0, %v401
  %v403 = vpop.f32.mrb[0].mxu0
  %404 = vmatprep.mubr.f32.mxu0 0.0
  %405 = vmatmul.mubr.f32.gmra.mrb[0].mxu0 %v119
  %v406 = vpop.f32.mrb[0].mxu0
  %v407 = vadd.f32 0.0, %v406
  %v408 = vpop.f32.mrb[0].mxu0
  %409 = vmatprep.mubr.f32.mxu0 0.0
  %410 = vmatmul.mubr.f32.gmra.mrb[0].mxu0 %v122
  %v411 = vpop.f32.mrb[0].mxu0
  %v412 = vadd.f32 0.0, %v411
  %v413 = vpop.f32.mrb[0].mxu0
  %414 = vmatprep.mubr.f32.mxu0 0.0
  %415 = vmatmul.mubr.f32.gmra.mrb[0].mxu0 %v125
  %v416 = vpop.f32.mrb[0].mxu0
  %v417 = vadd.f32 0.0, %v416
  %v418 = vpop.f32.mrb[0].mxu0
  %419 = vmatprep.mubr.f32.mxu0 0.0
  %420 = vmatmul.mubr.f32.gmra.mrb[0].mxu0 %v128
  %v421 = vpop.f32.mrb[0].mxu0
  %v422 = vadd.f32 0.0, %v421
  %v423 = vpop.f32.mrb[0].mxu0
  %424 = vmatprep.mubr.f32.mxu0 0.0
  %425 = vmatmul.mubr.f32.gmra.mrb[0].mxu0 %v131
  %v426 = vpop.f32.mrb[0].mxu0
  %v427 = vadd.f32 0.0, %v426
  %v428 = vpop.f32.mrb[0].mxu0
  %429 = vmatprep.mubr.f32.mxu0 0.0
  %430 = vmatmul.mubr.f32.gmra.mrb[0].mxu0 %v134
  %v431 = vpop.f32.mrb[0].mxu0
  %v432 = vadd.f32 0.0, %v431
  %v433 = vpop.f32.mrb[0].mxu0
  %434 = vmatprep.mubr.f32.mxu0 0.0
  %435 = vmatmul.mubr.f32.gmra.mrb[0].mxu0 %v137
  %v436 = vpop.f32.mrb[0].mxu0
  %v437 = vadd.f32 0.0, %v436
  %v438 = vpop.f32.mrb[0].mxu0
  %439 = vmatprep.mubr.f32.mxu0 0.0
  %440 = vmatmul.mubr.f32.gmra.mrb[0].mxu0 %v140
  %v441 = vpop.f32.mrb[0].mxu0
  %v442 = vadd.f32 0.0, %v441
  %v443 = vpop.f32.mrb[0].mxu0
  %444 = vmatprep.mubr.f32.mxu0 0.0
  %445 = vmatmul.mubr.f32.gmra.mrb[0].mxu0 %v143
  %v446 = vpop.f32.mrb[0].mxu0
  %v447 = vadd.f32 0.0, %v446
  %v448 = vpop.f32.mrb[0].mxu0
  %449 = vmatprep.mubr.f32.mxu0 0.0
  %450 = vmatmul.mubr.f32.gmra.mrb[0].mxu0 %v146
  %v451 = vpop.f32.mrb[0].mxu0
  %v452 = vadd.f32 0.0, %v451
  %v453 = vpop.f32.mrb[0].mxu0
  %454 = vmatprep.mubr.f32.mxu0 0.0
  %455 = vmatmul.mubr.f32.gmra.mrb[0].mxu0 %v149
  %v456 = vpop.f32.mrb[0].mxu0
  %v457 = vadd.f32 0.0, %v456
  %v458 = vpop.f32.mrb[0].mxu0
  %459 = vmatprep.mubr.f32.mxu0 0.0
  %460 = vmatmul.mubr.f32.gmra.mrb[0].mxu0 %v152
  %v461 = vpop.f32.mrb[0].mxu0
  %v462 = vadd.f32 0.0, %v461
  %v463 = vpop.f32.mrb[0].mxu0
  %464 = vmatprep.mubr.f32.mxu0 0.0
  %465 = vmatmul.mubr.f32.gmra.mrb[0].mxu0 %v155
  %v466 = vpop.f32.mrb[0].mxu0
  %v467 = vadd.f32 0.0, %v466
  %v468 = vpop.f32.mrb[0].mxu0
  %469 = vmatprep.mubr.f32.mxu0 0.0
  %470 = vmatmul.mubr.f32.gmra.mrb[0].mxu0 %v158
  %v471 = vpop.f32.mrb[0].mxu0
  %v472 = vadd.f32 0.0, %v471
  %v473 = vpop.f32.mrb[0].mxu0
  %474 = vmatprep.mubr.f32.mxu0 0.0
  %475 = vmatmul.mubr.f32.gmra.mrb[0].mxu0 %v161
  %v476 = vpop.f32.mrb[0].mxu0
  %v477 = vadd.f32 0.0, %v476
  %v478 = vpop.f32.mrb[0].mxu0
  %479 = vmatprep.mubr.f32.mxu0 0.0
  %480 = vmatmul.mubr.f32.gmra.mrb[0].mxu0 %v164
  %v481 = vpop.f32.mrb[0].mxu0
  %v482 = vadd.f32 0.0, %v481
  %v483 = vpop.f32.mrb[0].mxu0
  %484 = vmatprep.mubr.f32.mxu0 0.0
  %485 = vmatmul.mubr.f32.gmra.mrb[0].mxu0 %v167
  %v486 = vpop.f32.mrb[0].mxu0
  %v487 = vadd.f32 0.0, %v486
  %v488 = vpop.f32.mrb[0].mxu0
  %489 = vmatprep.mubr.f32.mxu0 0.0
  %490 = vmatmul.mubr.f32.gmra.mrb[0].mxu0 %v170
  %v491 = vpop.f32.mrb[0].mxu0
  %v492 = vadd.f32 0.0, %v491
  %v493 = vpop.f32.mrb[0].mxu0
  %494 = vmatprep.mubr.f32.mxu0 0.0
  %495 = vmatmul.mubr.f32.gmra.mrb[0].mxu0 %v173
  %v496 = vpop.f32.mrb[0].mxu0
  %v497 = vadd.f32 0.0, %v496
  %v498 = vpop.f32.mrb[0].mxu0
  %499 = vmatprep.mubr.f32.mxu0 0.0
  %500 = vmatmul.mubr.f32.gmra.mrb[0].mxu0 %v176
  %v501 = vpop.f32.mrb[0].mxu0
  %v502 = vadd.f32 0.0, %v501
  %v503 = vpop.f32.mrb[0].mxu0
  %504 = vmatprep.mubr.f32.mxu0 0.0
  %505 = vmatmul.mubr.f32.gmra.mrb[0].mxu0 %v179
  %v506 = vpop.f32.mrb[0].mxu0
  %v507 = vadd.f32 0.0, %v506
  %v508 = vpop.f32.mrb[0].mxu0
  %509 = vmatprep.mubr.f32.mxu0 0.0
  %510 = vmatmul.mubr.f32.gmra.mrb[0].mxu0 %v182
  %v511 = vpop.f32.mrb[0].mxu0
  %v512 = vadd.f32 0.0, %v511
  %v513 = vpop.f32.mrb[0].mxu0
  %514 = vmatprep.mubr.f32.mxu0 0.0
  %515 = vmatmul.mubr.f32.gmra.mrb[0].mxu0 %v185
  %v516 = vpop.f32.mrb[0].mxu0
  %v517 = vadd.f32 0.0, %v516
  %v518 = vpop.f32.mrb[0].mxu0
  %519 = vmatprep.mubr.f32.mxu0 0.0
  %520 = vmatmul.mubr.f32.gmra.mrb[0].mxu0 %v188
  %v521 = vpop.f32.mrb[0].mxu0
  %v522 = vadd.f32 0.0, %v521
  %v523 = vpop.f32.mrb[0].mxu0
  %524 = vmatprep.mubr.f32.mxu0 0.0
  %525 = vmatmul.mubr.f32.gmra.mrb[0].mxu0 %v191
  %v526 = vpop.f32.mrb[0].mxu0
  %v527 = vadd.f32 0.0, %v526
  %v528 = vpop.f32.mrb[0].mxu0
  %529 = vmatprep.mubr.f32.mxu0 0.0
  %530 = vmatmul.mubr.f32.gmra.mrb[0].mxu0 %v194
  %v531 = vpop.f32.mrb[0].mxu0
  %v532 = vadd.f32 0.0, %v531
  %v533 = vpop.f32.mrb[0].mxu0
  %534 = vmatprep.mubr.f32.mxu0 0.0
  %535 = vmatmul.mubr.f32.gmra.mrb[0].mxu0 %v197
  %v536 = vpop.f32.mrb[0].mxu0
  %v537 = vadd.f32 0.0, %v536
  %v538 = vpop.f32.mrb[0].mxu0
  %539 = vmatprep.mubr.f32.mxu0 0.0
  %540 = vmatmul.mubr.f32.gmra.mrb[0].mxu0 %v200
  %v541 = vpop.f32.mrb[0].mxu0
  %v542 = vadd.f32 0.0, %v541
  %v543 = vpop.f32.mrb[0].mxu0
  %544 = vmatprep.mubr.f32.mxu0 0.0
  %545 = vmatmul.mubr.f32.gmra.mrb[0].mxu0 %v203
  %v546 = vpop.f32.mrb[0].mxu0
  %v547 = vadd.f32 0.0, %v546
  %v548 = vpop.f32.mrb[0].mxu0
  %549 = vmatprep.mubr.f32.mxu0 0.0
  %550 = vmatmul.mubr.f32.gmra.mrb[0].mxu0 %v206
  %v551 = vpop.f32.mrb[0].mxu0
  %v552 = vadd.f32 0.0, %v551
  %v553 = vpop.f32.mrb[0].mxu0
  %554 = vmatprep.mubr.f32.mxu0 0.0
  %555 = vmatmul.mubr.f32.gmra.mrb[0].mxu0 %v209
  %v556 = vpop.f32.mrb[0].mxu0
  %v557 = vadd.f32 0.0, %v556
  %v558 = vpop.f32.mrb[0].mxu0
  %559 = vmatprep.mubr.f32.mxu0 0.0
  %560 = vmatmul.mubr.f32.gmra.mrb[0].mxu0 %v212
  %v561 = vpop.f32.mrb[0].mxu0
  %v562 = vadd.f32 0.0, %v561
  %v563 = vpop.f32.mrb[0].mxu0
  %564 = vmatprep.mubr.f32.mxu0 0.0
  %565 = vmatmul.mubr.f32.gmra.mrb[0].mxu0 %v215
  %v566 = vpop.f32.mrb[0].mxu0
  %v567 = vadd.f32 0.0, %v566
  %v568 = vpop.f32.mrb[0].mxu0
  %569 = vmatprep.mubr.f32.mxu0 0.0
  %570 = vmatmul.mubr.f32.gmra.mrb[0].mxu0 %v218
  %v571 = vpop.f32.mrb[0].mxu0
  %v572 = vadd.f32 0.0, %v571
  %v573 = vpop.f32.mrb[0].mxu0
  %574 = vmatprep.mubr.f32.mxu0 0.0
  %575 = vmatmul.mubr.f32.gmra.mrb[0].mxu0 %v221
  %v576 = vpop.f32.mrb[0].mxu0
  %v577 = vadd.f32 0.0, %v576
  %v578 = vpop.f32.mrb[0].mxu0
  %579 = vmatprep.mubr.f32.mxu0 0.0
  %580 = vmatmul.mubr.f32.gmra.mrb[0].mxu0 %v224
  %v581 = vpop.f32.mrb[0].mxu0
  %v582 = vadd.f32 0.0, %v581
  %v583 = vpop.f32.mrb[0].mxu0
  %584 = vmatprep.mubr.f32.mxu0 0.0
  %585 = vmatmul.mubr.f32.gmra.mrb[0].mxu0 %v227
  %v586 = vpop.f32.mrb[0].mxu0
  %v587 = vadd.f32 0.0, %v586
  %v588 = vpop.f32.mrb[0].mxu0
  %589 = vmatprep.mubr.f32.mxu0 0.0
  %590 = vmatmul.mubr.f32.gmra.mrb[0].mxu0 %v230
  %v591 = vpop.f32.mrb[0].mxu0
  %v592 = vadd.f32 0.0, %v591
  %v593 = vpop.f32.mrb[0].mxu0
  %594 = vmatprep.mubr.f32.mxu0 0.0
  %595 = vmatmul.mubr.f32.gmra.mrb[0].mxu0 %v233
  %v596 = vpop.f32.mrb[0].mxu0
  %v597 = vadd.f32 0.0, %v596
  %v598 = vpop.f32.mrb[0].mxu0
  %599 = vmatprep.mubr.f32.mxu0 0.0
  %600 = vmatmul.mubr.f32.gmra.mrb[0].mxu0 %v236
  %v601 = vpop.f32.mrb[0].mxu0
  %v602 = vadd.f32 0.0, %v601
  %v603 = vpop.f32.mrb[0].mxu0
  %604 = vmatprep.mubr.f32.mxu0 0.0
  %605 = vmatmul.mubr.f32.gmra.mrb[0].mxu0 %v239
  %v606 = vpop.f32.mrb[0].mxu0
  %v607 = vadd.f32 0.0, %v606
  %v608 = vpop.f32.mrb[0].mxu0
  %609 = vmatprep.mubr.f32.mxu0 0.0
  %610 = vmatmul.mubr.f32.gmra.mrb[0].mxu0 %v242
  %v611 = vpop.f32.mrb[0].mxu0
  %v612 = vadd.f32 0.0, %v611
  %v613 = vpop.f32.mrb[0].mxu0
  %614 = vmatprep.mubr.f32.mxu0 0.0
  %615 = vmatmul.mubr.f32.gmra.mrb[0].mxu0 %v245
  %v616 = vpop.f32.mrb[0].mxu0
  %v617 = vadd.f32 0.0, %v616
  %v618 = vpop.f32.mrb[0].mxu0
  %619 = vmatprep.mubr.f32.mxu0 0.0
  %620 = vmatmul.mubr.f32.gmra.mrb[0].mxu0 %v248
  %v621 = vpop.f32.mrb[0].mxu0
  %v622 = vadd.f32 0.0, %v621
  %v623 = vpop.f32.mrb[0].mxu0
  %624 = vmatprep.mubr.f32.mxu0 0.0
  %625 = vmatmul.mubr.f32.gmra.mrb[0].mxu0 %v251
  %v626 = vpop.f32.mrb[0].mxu0
  %v627 = vadd.f32 0.0, %v626
  %v628 = vpop.f32.mrb[0].mxu0
  %629 = vmatprep.mubr.f32.mxu0 0.0
  %630 = vmatmul.mubr.f32.gmra.mrb[0].mxu0 %v254
  %v631 = vpop.f32.mrb[0].mxu0
  %v632 = vadd.f32 0.0, %v631
  %v633 = vpop.f32.mrb[0].mxu0
  %634 = vmatprep.mubr.f32.mxu0 0.0
  %635 = vmatmul.mubr.f32.gmra.mrb[0].mxu0 %v257
  %v636 = vpop.f32.mrb[0].mxu0
  %v637 = vadd.f32 0.0, %v636
  %v638 = vpop.f32.mrb[0].mxu0
  %639 = vmatprep.mubr.f32.mxu0 0.0
  %640 = vmatmul.mubr.f32.gmra.mrb[0].mxu0 %v260
  %v641 = vpop.f32.mrb[0].mxu0
  %v642 = vadd.f32 0.0, %v641
  %v643 = vpop.f32.mrb[0].mxu0
  %644 = vmatprep.mubr.f32.mxu0 0.0
  %645 = vmatmul.mubr.f32.gmra.mrb[0].mxu0 %v263
  %v646 = vpop.f32.mrb[0].mxu0
  %v647 = vadd.f32 0.0, %v646
  %v648 = vpop.f32.mrb[0].mxu0
  %649 = vmatprep.mubr.f32.mxu0 0.0
  %650 = vmatmul.mubr.f32.gmra.mrb[0].mxu0 %v266
  %v651 = vpop.f32.mrb[0].mxu0
  %v652 = vadd.f32 0.0, %v651
  %v653 = vpop.f32.mrb[0].mxu0
  %654 = vmatprep.mubr.f32.mxu0 0.0
  %655 = vmatmul.mubr.f32.gmra.mrb[0].mxu0 %v269
  %v656 = vpop.f32.mrb[0].mxu0
  %v657 = vadd.f32 0.0, %v656
  %v658 = vpop.f32.mrb[0].mxu0
  %659 = vdwg.mxu0
  %660 = vst [vmem:[%s2] sm:$0xff] %v342
  %661 = vst [vmem:[%s2 + $0x8] sm:$0xff] %v347
  %662 = vst [vmem:[%s2 + $0x10] sm:$0xff] %v352
  %663 = vst [vmem:[%s2 + $0x18] sm:$0xff] %v357
  %664 = vst [vmem:[%s2 + $0x20] sm:$0xff] %v362
  %665 = vst [vmem:[%s2 + $0x28] sm:$0xff] %v367
  %666 = vst [vmem:[%s2 + $0x30] sm:$0xff] %v372
  %667 = vst [vmem:[%s2 + $0x38] sm:$0xff] %v377
  %668 = vst [vmem:[%s2 + $0x40] sm:$0xff] %v382
  %669 = vst [vmem:[%s2 + $0x48] sm:$0xff] %v387
  %670 = vst [vmem:[%s2 + $0x50] sm:$0xff] %v392
  %671 = vst [vmem:[%s2 + $0x58] sm:$0xff] %v397
  %672 = vst [vmem:[%s2 + $0x60] sm:$0xff] %v402
  %673 = vst [vmem:[%s2 + $0x68] sm:$0xff] %v407
  %674 = vst [vmem:[%s2 + $0x70] sm:$0xff] %v412
  %675 = vst [vmem:[%s2 + $0x78] sm:$0xff] %v417
  %676 = vst [vmem:[%s2 + $0x80] sm:$0xff] %v422
  %677 = vst [vmem:[%s2 + $0x88] sm:$0xff] %v427
  %678 = vst [vmem:[%s2 + $0x90] sm:$0xff] %v432
  %679 = vst [vmem:[%s2 + $0x98] sm:$0xff] %v437
  %680 = vst [vmem:[%s2 + $0xa0] sm:$0xff] %v442
  %681 = vst [vmem:[%s2 + $0xa8] sm:$0xff] %v447
  %682 = vst [vmem:[%s2 + $0xb0] sm:$0xff] %v452
  %683 = vst [vmem:[%s2 + $0xb8] sm:$0xff] %v457
  %684 = vst [vmem:[%s2 + $0xc0] sm:$0xff] %v462
  %685 = vst [vmem:[%s2 + $0xc8] sm:$0xff] %v467
  %686 = vst [vmem:[%s2 + $0xd0] sm:$0xff] %v472
  %687 = vst [vmem:[%s2 + $0xd8] sm:$0xff] %v477
  %688 = vst [vmem:[%s2 + $0xe0] sm:$0xff] %v482
  %689 = vst [vmem:[%s2 + $0xe8] sm:$0xff] %v487
  %690 = vst [vmem:[%s2 + $0xf0] sm:$0xff] %v492
  %691 = vst [vmem:[%s2 + $0xf8] sm:$0xff] %v497
  %692 = vst [vmem:[%s2 + $0x100] sm:$0xff] %v502
  %693 = vst [vmem:[%s2 + $0x108] sm:$0xff] %v507
  %694 = vst [vmem:[%s2 + $0x110] sm:$0xff] %v512
  %695 = vst [vmem:[%s2 + $0x118] sm:$0xff] %v517
  %696 = vst [vmem:[%s2 + $0x120] sm:$0xff] %v522
  %697 = vst [vmem:[%s2 + $0x128] sm:$0xff] %v527
  %698 = vst [vmem:[%s2 + $0x130] sm:$0xff] %v532
  %699 = vst [vmem:[%s2 + $0x138] sm:$0xff] %v537
  %700 = vst [vmem:[%s2 + $0x140] sm:$0xff] %v542
  %701 = vst [vmem:[%s2 + $0x148] sm:$0xff] %v547
  %702 = vst [vmem:[%s2 + $0x150] sm:$0xff] %v552
  %703 = vst [vmem:[%s2 + $0x158] sm:$0xff] %v557
  %704 = vst [vmem:[%s2 + $0x160] sm:$0xff] %v562
  %705 = vst [vmem:[%s2 + $0x168] sm:$0xff] %v567
  %706 = vst [vmem:[%s2 + $0x170] sm:$0xff] %v572
  %707 = vst [vmem:[%s2 + $0x178] sm:$0xff] %v577
  %708 = vst [vmem:[%s2 + $0x180] sm:$0xff] %v582
  %709 = vst [vmem:[%s2 + $0x188] sm:$0xff] %v587
  %710 = vst [vmem:[%s2 + $0x190] sm:$0xff] %v592
  %711 = vst [vmem:[%s2 + $0x198] sm:$0xff] %v597
  %712 = vst [vmem:[%s2 + $0x1a0] sm:$0xff] %v602
  %713 = vst [vmem:[%s2 + $0x1a8] sm:$0xff] %v607
  %714 = vst [vmem:[%s2 + $0x1b0] sm:$0xff] %v612
  %715 = vst [vmem:[%s2 + $0x1b8] sm:$0xff] %v617
  %716 = vst [vmem:[%s2 + $0x1c0] sm:$0xff] %v622
  %717 = vst [vmem:[%s2 + $0x1c8] sm:$0xff] %v627
  %718 = vst [vmem:[%s2 + $0x1d0] sm:$0xff] %v632
  %719 = vst [vmem:[%s2 + $0x1d8] sm:$0xff] %v637
  %720 = vst [vmem:[%s2 + $0x1e0] sm:$0xff] %v642
  %721 = vst [vmem:[%s2 + $0x1e8] sm:$0xff] %v647
  %722 = vst [vmem:[%s2 + $0x1f0] sm:$0xff] %v652
  %723 = vst [vmem:[%s2 + $0x1f8] sm:$0xff] %v657
  %v724 = vadd.f32 %v342, %v347
  %v725 = vadd.f32 %v724, %v352
  %v726 = vadd.f32 %v725, %v357
  %v727 = vadd.f32 %v726, %v362
  %v728 = vadd.f32 %v727, %v367
  %v729 = vadd.f32 %v728, %v372
  %v730 = vadd.f32 %v729, %v377
  %v731 = vadd.f32 %v730, %v382
  %v732 = vadd.f32 %v731, %v387
  %v733 = vadd.f32 %v732, %v392
  %v734 = vadd.f32 %v733, %v397
  %v735 = vadd.f32 %v734, %v402
  %v736 = vadd.f32 %v735, %v407
  %v737 = vadd.f32 %v736, %v412
  %v738 = vadd.f32 %v737, %v417
  %v739 = vadd.f32 %v738, %v422
  %v740 = vadd.f32 %v739, %v427
  %v741 = vadd.f32 %v740, %v432
  %v742 = vadd.f32 %v741, %v437
  %v743 = vadd.f32 %v742, %v442
  %v744 = vadd.f32 %v743, %v447
  %v745 = vadd.f32 %v744, %v452
  %v746 = vadd.f32 %v745, %v457
  %v747 = vadd.f32 %v746, %v462
  %v748 = vadd.f32 %v747, %v467
  %v749 = vadd.f32 %v748, %v472
  %v750 = vadd.f32 %v749, %v477
  %v751 = vadd.f32 %v750, %v482
  %v752 = vadd.f32 %v751, %v487
  %v753 = vadd.f32 %v752, %v492
  %v754 = vadd.f32 %v753, %v497
  %v755 = vadd.f32 %v754, %v502
  %v756 = vadd.f32 %v755, %v507
  %v757 = vadd.f32 %v756, %v512
  %v758 = vadd.f32 %v757, %v517
  %v759 = vadd.f32 %v758, %v522
  %v760 = vadd.f32 %v759, %v527
  %v761 = vadd.f32 %v760, %v532
  %v762 = vadd.f32 %v761, %v537
  %v763 = vadd.f32 %v762, %v542
  %v764 = vadd.f32 %v763, %v547
  %v765 = vadd.f32 %v764, %v552
  %v766 = vadd.f32 %v765, %v557
  %v767 = vadd.f32 %v766, %v562
  %v768 = vadd.f32 %v767, %v567
  %v769 = vadd.f32 %v768, %v572
  %v770 = vadd.f32 %v769, %v577
  %v771 = vadd.f32 %v770, %v582
  %v772 = vadd.f32 %v771, %v587
  %v773 = vadd.f32 %v772, %v592
  %v774 = vadd.f32 %v773, %v597
  %v775 = vadd.f32 %v774, %v602
  %v776 = vadd.f32 %v775, %v607
  %v777 = vadd.f32 %v776, %v612
  %v778 = vadd.f32 %v777, %v617
  %v779 = vadd.f32 %v778, %v622
  %v780 = vadd.f32 %v779, %v627
  %v781 = vadd.f32 %v780, %v632
  %v782 = vadd.f32 %v781, %v637
  %v783 = vadd.f32 %v782, %v642
  %v784 = vadd.f32 %v783, %v647
  %v785 = vadd.f32 %v784, %v652
  %v786 = vadd.f32 %v785, %v657
  %v787 = vrot.slane %v786, 4
  %v788 = vadd.f32 %v786, %v787
  %v789 = vrot.slane %v788, 2
  %v790 = vadd.f32 %v788, %v789
  %v791 = vrot.slane %v790, 1
  %v792 = vadd.f32 %v790, %v791
  %793 = vst [vmem:[%s3] sm:$0x1] %v792
  %v794 = vmul.f32 %v342, %v342
  %v795 = vmul.f32 %v347, %v347
  %v796 = vmul.f32 %v352, %v352
  %v797 = vmul.f32 %v357, %v357
  %v798 = vmul.f32 %v362, %v362
  %v799 = vmul.f32 %v367, %v367
  %v800 = vmul.f32 %v372, %v372
  %v801 = vmul.f32 %v377, %v377
  %v802 = vmul.f32 %v382, %v382
  %v803 = vmul.f32 %v387, %v387
  %v804 = vmul.f32 %v392, %v392
  %v805 = vmul.f32 %v397, %v397
  %v806 = vmul.f32 %v402, %v402
  %v807 = vmul.f32 %v407, %v407
  %v808 = vmul.f32 %v412, %v412
  %v809 = vmul.f32 %v417, %v417
  %v810 = vmul.f32 %v422, %v422
  %v811 = vmul.f32 %v427, %v427
  %v812 = vmul.f32 %v432, %v432
  %v813 = vmul.f32 %v437, %v437
  %v814 = vmul.f32 %v442, %v442
  %v815 = vmul.f32 %v447, %v447
  %v816 = vmul.f32 %v452, %v452
  %v817 = vmul.f32 %v457, %v457
  %v818 = vmul.f32 %v462, %v462
  %v819 = vmul.f32 %v467, %v467
  %v820 = vmul.f32 %v472, %v472
  %v821 = vmul.f32 %v477, %v477
  %v822 = vmul.f32 %v482, %v482
  %v823 = vmul.f32 %v487, %v487
  %v824 = vmul.f32 %v492, %v492
  %v825 = vmul.f32 %v497, %v497
  %v826 = vmul.f32 %v502, %v502
  %v827 = vmul.f32 %v507, %v507
  %v828 = vmul.f32 %v512, %v512
  %v829 = vmul.f32 %v517, %v517
  %v830 = vmul.f32 %v522, %v522
  %v831 = vmul.f32 %v527, %v527
  %v832 = vmul.f32 %v532, %v532
  %v833 = vmul.f32 %v537, %v537
  %v834 = vmul.f32 %v542, %v542
  %v835 = vmul.f32 %v547, %v547
  %v836 = vmul.f32 %v552, %v552
  %v837 = vmul.f32 %v557, %v557
  %v838 = vmul.f32 %v562, %v562
  %v839 = vmul.f32 %v567, %v567
  %v840 = vmul.f32 %v572, %v572
  %v841 = vmul.f32 %v577, %v577
  %v842 = vmul.f32 %v582, %v582
  %v843 = vmul.f32 %v587, %v587
  %v844 = vmul.f32 %v592, %v592
  %v845 = vmul.f32 %v597, %v597
  %v846 = vmul.f32 %v602, %v602
  %v847 = vmul.f32 %v607, %v607
  %v848 = vmul.f32 %v612, %v612
  %v849 = vmul.f32 %v617, %v617
  %v850 = vmul.f32 %v622, %v622
  %v851 = vmul.f32 %v627, %v627
  %v852 = vmul.f32 %v632, %v632
  %v853 = vmul.f32 %v637, %v637
  %v854 = vmul.f32 %v642, %v642
  %v855 = vmul.f32 %v647, %v647
  %v856 = vmul.f32 %v652, %v652
  %v857 = vmul.f32 %v657, %v657
  %v858 = vadd.f32 %v794, %v795
  %v859 = vadd.f32 %v858, %v796
  %v860 = vadd.f32 %v859, %v797
  %v861 = vadd.f32 %v860, %v798
  %v862 = vadd.f32 %v861, %v799
  %v863 = vadd.f32 %v862, %v800
  %v864 = vadd.f32 %v863, %v801
  %v865 = vadd.f32 %v864, %v802
  %v866 = vadd.f32 %v865, %v803
  %v867 = vadd.f32 %v866, %v804
  %v868 = vadd.f32 %v867, %v805
  %v869 = vadd.f32 %v868, %v806
  %v870 = vadd.f32 %v869, %v807
  %v871 = vadd.f32 %v870, %v808
  %v872 = vadd.f32 %v871, %v809
  %v873 = vadd.f32 %v872, %v810
  %v874 = vadd.f32 %v873, %v811
  %v875 = vadd.f32 %v874, %v812
  %v876 = vadd.f32 %v875, %v813
  %v877 = vadd.f32 %v876, %v814
  %v878 = vadd.f32 %v877, %v815
  %v879 = vadd.f32 %v878, %v816
  %v880 = vadd.f32 %v879, %v817
  %v881 = vadd.f32 %v880, %v818
  %v882 = vadd.f32 %v881, %v819
  %v883 = vadd.f32 %v882, %v820
  %v884 = vadd.f32 %v883, %v821
  %v885 = vadd.f32 %v884, %v822
  %v886 = vadd.f32 %v885, %v823
  %v887 = vadd.f32 %v886, %v824
  %v888 = vadd.f32 %v887, %v825
  %v889 = vadd.f32 %v888, %v826
  %v890 = vadd.f32 %v889, %v827
  %v891 = vadd.f32 %v890, %v828
  %v892 = vadd.f32 %v891, %v829
  %v893 = vadd.f32 %v892, %v830
  %v894 = vadd.f32 %v893, %v831
  %v895 = vadd.f32 %v894, %v832
  %v896 = vadd.f32 %v895, %v833
  %v897 = vadd.f32 %v896, %v834
  %v898 = vadd.f32 %v897, %v835
  %v899 = vadd.f32 %v898, %v836
  %v900 = vadd.f32 %v899, %v837
  %v901 = vadd.f32 %v900, %v838
  %v902 = vadd.f32 %v901, %v839
  %v903 = vadd.f32 %v902, %v840
  %v904 = vadd.f32 %v903, %v841
  %v905 = vadd.f32 %v904, %v842
  %v906 = vadd.f32 %v905, %v843
  %v907 = vadd.f32 %v906, %v844
  %v908 = vadd.f32 %v907, %v845
  %v909 = vadd.f32 %v908, %v846
  %v910 = vadd.f32 %v909, %v847
  %v911 = vadd.f32 %v910, %v848
  %v912 = vadd.f32 %v911, %v849
  %v913 = vadd.f32 %v912, %v850
  %v914 = vadd.f32 %v913, %v851
  %v915 = vadd.f32 %v914, %v852
  %v916 = vadd.f32 %v915, %v853
  %v917 = vadd.f32 %v916, %v854
  %v918 = vadd.f32 %v917, %v855
  %v919 = vadd.f32 %v918, %v856
  %v920 = vadd.f32 %v919, %v857
  %v921 = vrot.slane %v920, 4
  %v922 = vadd.f32 %v920, %v921
  %v923 = vrot.slane %v922, 2
  %v924 = vadd.f32 %v922, %v923
  %v925 = vrot.slane %v924, 1
  %v926 = vadd.f32 %v924, %v925
  %927 = vst [vmem:[%s3 + $0x1] sm:$0x1] %v926
  // Predicated region
  $region10: #{linear_bottleneck_forward.4} parent=0 // pred_check
    _
  $region11: #{linear_bottleneck_forward.4} parent=0 // pred_check_branch
    %929 = sbr.rel (0) target = $region13
  $region12: #{linear_bottleneck_forward.4} parent=0 // pred_region
    _
  $region13: #{linear_bottleneck_forward.4} parent=0 // pred_fallthru
    _
  // Predicated region
  $region14: #{linear_bottleneck_forward.4} parent=0 // pred_check
    _
  $region15: #{linear_bottleneck_forward.4} parent=0 // pred_check_branch
    %931 = sbr.rel (0) target = $region17
  $region16: #{linear_bottleneck_forward.4} parent=0 // pred_region
    _
  $region17: #{linear_bottleneck_forward.4} parent=0 // pred_fallthru
    _
  // Predicated region
  $region18: #{linear_bottleneck_forward.4} parent=0 // pred_check
    _
  $region19: #{linear_bottleneck_forward.4} parent=0 // pred_check_branch
    %933 = sbr.rel (0) target = $region21
  $region20: #{linear_bottleneck_forward.4} parent=0 // pred_region
    _
  $region21: #{linear_bottleneck_forward.4} parent=0 // pred_fallthru
    _
  // Predicated region
  $region22: #{linear_bottleneck_forward.4} parent=0 // pred_check
    _
  $region23: #{linear_bottleneck_forward.4} parent=0 // pred_check_branch
    %935 = sbr.rel (0) target = $region25
  $region24: #{linear_bottleneck_forward.4} parent=0 // pred_region
    _
  $region25: #{linear_bottleneck_forward.4} parent=0 // pred_fallthru
    _

// kernel: linear_bottleneck_forward.7
$region0: #{linear_bottleneck_forward.7}
  #allocation0 [shape = 'u32[]', space=smem, size = 0x4, offset = 0x4, fixed_abs, tag = 'smem constant byte address 0x4 - core index']
  #allocation1 [shape = 'u32[144,128]{1,0:T(1,128)}', space=vmem, size = 0x12000, scoped, tag = 'internal scratch']
  %s0 = inlined_call_operand.vmem [shape: f32[512,128], index: 0, kind: input, shape index: {}]
  %s1 = inlined_call_operand.vmem [shape: f32[1,128], index: 1, kind: input, shape index: {}]
  %s2 = inlined_call_operand.vmem [shape: f32[1,128], index: 2, kind: input, shape index: {}]
  %s3 = inlined_call_operand.vmem [shape: f32[512,4], index: 3, kind: input, shape index: {}]
  %s4 = inlined_call_operand.vmem [shape: f32[512,128], index: 4, kind: output, shape index: {}]
  %s5 = sld [smem:[#allocation0]]
  $region26: #{linear_bottleneck_forward.7} parent=0
    _
  %s7 = ssub.s32 1, %s5
  %s8 = scalar_select 0, %s7, %s5
  // Predicated region
  $region2: #{linear_bottleneck_forward.7} parent=0 // pred_check
    _
  $region3: #{linear_bottleneck_forward.7} parent=0 // pred_check_branch
    %10 = sbr.rel (0) target = $region5
  $region4: #{linear_bottleneck_forward.7} parent=0 // pred_region
    _
  $region5: #{linear_bottleneck_forward.7} parent=0 // pred_fallthru
    _
  // Predicated region
  $region6: #{linear_bottleneck_forward.7} parent=0 // pred_check
    _
  $region7: #{linear_bottleneck_forward.7} parent=0 // pred_check_branch
    %12 = sbr.rel (0) target = $region9
  $region8: #{linear_bottleneck_forward.7} parent=0 // pred_region
    _
  $region9: #{linear_bottleneck_forward.7} parent=0 // pred_fallthru
    _
  // Predicated region
  $region10: #{linear_bottleneck_forward.7} parent=0 // pred_check
    _
  $region11: #{linear_bottleneck_forward.7} parent=0 // pred_check_branch
    %14 = sbr.rel (0) target = $region13
  $region12: #{linear_bottleneck_forward.7} parent=0 // pred_region
    _
  $region13: #{linear_bottleneck_forward.7} parent=0 // pred_fallthru
    _
  // Predicated region
  $region14: #{linear_bottleneck_forward.7} parent=0 // pred_check
    _
  $region15: #{linear_bottleneck_forward.7} parent=0 // pred_check_branch
    %16 = sbr.rel (0) target = $region17
  $region16: #{linear_bottleneck_forward.7} parent=0 // pred_region
    _
  $region17: #{linear_bottleneck_forward.7} parent=0 // pred_fallthru
    _
  %v17 = vld [vmem:[%s3] sm:$0xff]
  %v18 = vld [vmem:[%s3 + $0x8] sm:$0xff]
  %v19 = vld [vmem:[%s3 + $0x10] sm:$0xff]
  %v20 = vld [vmem:[%s3 + $0x18] sm:$0xff]
  %v21 = vld [vmem:[%s3 + $0x20] sm:$0xff]
  %v22 = vld [vmem:[%s3 + $0x28] sm:$0xff]
  %v23 = vld [vmem:[%s3 + $0x30] sm:$0xff]
  %v24 = vld [vmem:[%s3 + $0x38] sm:$0xff]
  %v25 = vld [vmem:[%s3 + $0x40] sm:$0xff]
  %v26 = vld [vmem:[%s3 + $0x48] sm:$0xff]
  %v27 = vld [vmem:[%s3 + $0x50] sm:$0xff]
  %v28 = vld [vmem:[%s3 + $0x58] sm:$0xff]
  %v29 = vld [vmem:[%s3 + $0x60] sm:$0xff]
  %v30 = vld [vmem:[%s3 + $0x68] sm:$0xff]
  %v31 = vld [vmem:[%s3 + $0x70] sm:$0xff]
  %v32 = vld [vmem:[%s3 + $0x78] sm:$0xff]
  %v33 = vld [vmem:[%s3 + $0x80] sm:$0xff]
  %v34 = vld [vmem:[%s3 + $0x88] sm:$0xff]
  %v35 = vld [vmem:[%s3 + $0x90] sm:$0xff]
  %v36 = vld [vmem:[%s3 + $0x98] sm:$0xff]
  %v37 = vld [vmem:[%s3 + $0xa0] sm:$0xff]
  %v38 = vld [vmem:[%s3 + $0xa8] sm:$0xff]
  %v39 = vld [vmem:[%s3 + $0xb0] sm:$0xff]
  %v40 = vld [vmem:[%s3 + $0xb8] sm:$0xff]
  %v41 = vld [vmem:[%s3 + $0xc0] sm:$0xff]
  %v42 = vld [vmem:[%s3 + $0xc8] sm:$0xff]
  %v43 = vld [vmem:[%s3 + $0xd0] sm:$0xff]
  %v44 = vld [vmem:[%s3 + $0xd8] sm:$0xff]
  %v45 = vld [vmem:[%s3 + $0xe0] sm:$0xff]
  %v46 = vld [vmem:[%s3 + $0xe8] sm:$0xff]
  %v47 = vld [vmem:[%s3 + $0xf0] sm:$0xff]
  %v48 = vld [vmem:[%s3 + $0xf8] sm:$0xff]
  %v49 = vld [vmem:[%s3 + $0x100] sm:$0xff]
  %v50 = vld [vmem:[%s3 + $0x108] sm:$0xff]
  %v51 = vld [vmem:[%s3 + $0x110] sm:$0xff]
  %v52 = vld [vmem:[%s3 + $0x118] sm:$0xff]
  %v53 = vld [vmem:[%s3 + $0x120] sm:$0xff]
  %v54 = vld [vmem:[%s3 + $0x128] sm:$0xff]
  %v55 = vld [vmem:[%s3 + $0x130] sm:$0xff]
  %v56 = vld [vmem:[%s3 + $0x138] sm:$0xff]
  %v57 = vld [vmem:[%s3 + $0x140] sm:$0xff]
  %v58 = vld [vmem:[%s3 + $0x148] sm:$0xff]
  %v59 = vld [vmem:[%s3 + $0x150] sm:$0xff]
  %v60 = vld [vmem:[%s3 + $0x158] sm:$0xff]
  %v61 = vld [vmem:[%s3 + $0x160] sm:$0xff]
  %v62 = vld [vmem:[%s3 + $0x168] sm:$0xff]
  %v63 = vld [vmem:[%s3 + $0x170] sm:$0xff]
  %v64 = vld [vmem:[%s3 + $0x178] sm:$0xff]
  %v65 = vld [vmem:[%s3 + $0x180] sm:$0xff]
  %v66 = vld [vmem:[%s3 + $0x188] sm:$0xff]
  %v67 = vld [vmem:[%s3 + $0x190] sm:$0xff]
  %v68 = vld [vmem:[%s3 + $0x198] sm:$0xff]
  %v69 = vld [vmem:[%s3 + $0x1a0] sm:$0xff]
  %v70 = vld [vmem:[%s3 + $0x1a8] sm:$0xff]
  %v71 = vld [vmem:[%s3 + $0x1b0] sm:$0xff]
  %v72 = vld [vmem:[%s3 + $0x1b8] sm:$0xff]
  %v73 = vld [vmem:[%s3 + $0x1c0] sm:$0xff]
  %v74 = vld [vmem:[%s3 + $0x1c8] sm:$0xff]
  %v75 = vld [vmem:[%s3 + $0x1d0] sm:$0xff]
  %v76 = vld [vmem:[%s3 + $0x1d8] sm:$0xff]
  %v77 = vld [vmem:[%s3 + $0x1e0] sm:$0xff]
  %v78 = vld [vmem:[%s3 + $0x1e8] sm:$0xff]
  %v79 = vld [vmem:[%s3 + $0x1f0] sm:$0xff]
  %v80 = vld [vmem:[%s3 + $0x1f8] sm:$0xff]
  %vm81 = vcmask 31744
  %v82 = vsel %vm81, %v17, 0.0
  %v83 = vsel %vm81, %v18, 0.0
  %v84 = vsel %vm81, %v19, 0.0
  %v85 = vsel %vm81, %v20, 0.0
  %v86 = vsel %vm81, %v21, 0.0
  %v87 = vsel %vm81, %v22, 0.0
  %v88 = vsel %vm81, %v23, 0.0
  %v89 = vsel %vm81, %v24, 0.0
  %v90 = vsel %vm81, %v25, 0.0
  %v91 = vsel %vm81, %v26, 0.0
  %v92 = vsel %vm81, %v27, 0.0
  %v93 = vsel %vm81, %v28, 0.0
  %v94 = vsel %vm81, %v29, 0.0
  %v95 = vsel %vm81, %v30, 0.0
  %v96 = vsel %vm81, %v31, 0.0
  %v97 = vsel %vm81, %v32, 0.0
  %v98 = vsel %vm81, %v33, 0.0
  %v99 = vsel %vm81, %v34, 0.0
  %v100 = vsel %vm81, %v35, 0.0
  %v101 = vsel %vm81, %v36, 0.0
  %v102 = vsel %vm81, %v37, 0.0
  %v103 = vsel %vm81, %v38, 0.0
  %v104 = vsel %vm81, %v39, 0.0
  %v105 = vsel %vm81, %v40, 0.0
  %v106 = vsel %vm81, %v41, 0.0
  %v107 = vsel %vm81, %v42, 0.0
  %v108 = vsel %vm81, %v43, 0.0
  %v109 = vsel %vm81, %v44, 0.0
  %v110 = vsel %vm81, %v45, 0.0
  %v111 = vsel %vm81, %v46, 0.0
  %v112 = vsel %vm81, %v47, 0.0
  %v113 = vsel %vm81, %v48, 0.0
  %v114 = vsel %vm81, %v49, 0.0
  %v115 = vsel %vm81, %v50, 0.0
  %v116 = vsel %vm81, %v51, 0.0
  %v117 = vsel %vm81, %v52, 0.0
  %v118 = vsel %vm81, %v53, 0.0
  %v119 = vsel %vm81, %v54, 0.0
  %v120 = vsel %vm81, %v55, 0.0
  %v121 = vsel %vm81, %v56, 0.0
  %v122 = vsel %vm81, %v57, 0.0
  %v123 = vsel %vm81, %v58, 0.0
  %v124 = vsel %vm81, %v59, 0.0
  %v125 = vsel %vm81, %v60, 0.0
  %v126 = vsel %vm81, %v61, 0.0
  %v127 = vsel %vm81, %v62, 0.0
  %v128 = vsel %vm81, %v63, 0.0
  %v129 = vsel %vm81, %v64, 0.0
  %v130 = vsel %vm81, %v65, 0.0
  %v131 = vsel %vm81, %v66, 0.0
  %v132 = vsel %vm81, %v67, 0.0
  %v133 = vsel %vm81, %v68, 0.0
  %v134 = vsel %vm81, %v69, 0.0
  %v135 = vsel %vm81, %v70, 0.0
  %v136 = vsel %vm81, %v71, 0.0
  %v137 = vsel %vm81, %v72, 0.0
  %v138 = vsel %vm81, %v73, 0.0
  %v139 = vsel %vm81, %v74, 0.0
  %v140 = vsel %vm81, %v75, 0.0
  %v141 = vsel %vm81, %v76, 0.0
  %v142 = vsel %vm81, %v77, 0.0
  %v143 = vsel %vm81, %v78, 0.0
  %v144 = vsel %vm81, %v79, 0.0
  %v145 = vsel %vm81, %v80, 0.0
  %v146 = vld [vmem:[%s0] sm:$0xff]
  %v147 = vld [vmem:[%s0 + $0x8] sm:$0xff]
  %v148 = vld [vmem:[%s0 + $0x10] sm:$0xff]
  %v149 = vld [vmem:[%s0 + $0x18] sm:$0xff]
  %v150 = vld [vmem:[%s0 + $0x20] sm:$0xff]
  %v151 = vld [vmem:[%s0 + $0x28] sm:$0xff]
  %v152 = vld [vmem:[%s0 + $0x30] sm:$0xff]
  %v153 = vld [vmem:[%s0 + $0x38] sm:$0xff]
  %v154 = vld [vmem:[%s0 + $0x40] sm:$0xff]
  %v155 = vld [vmem:[%s0 + $0x48] sm:$0xff]
  %v156 = vld [vmem:[%s0 + $0x50] sm:$0xff]
  %v157 = vld [vmem:[%s0 + $0x58] sm:$0xff]
  %v158 = vld [vmem:[%s0 + $0x60] sm:$0xff]
  %v159 = vld [vmem:[%s0 + $0x68] sm:$0xff]
  %v160 = vld [vmem:[%s0 + $0x70] sm:$0xff]
  %v161 = vld [vmem:[%s0 + $0x78] sm:$0xff]
  %v162 = vld [vmem:[%s0 + $0x80] sm:$0xff]
  %v163 = vld [vmem:[%s0 + $0x88] sm:$0xff]
  %v164 = vld [vmem:[%s0 + $0x90] sm:$0xff]
  %v165 = vld [vmem:[%s0 + $0x98] sm:$0xff]
  %v166 = vld [vmem:[%s0 + $0xa0] sm:$0xff]
  %v167 = vld [vmem:[%s0 + $0xa8] sm:$0xff]
  %v168 = vld [vmem:[%s0 + $0xb0] sm:$0xff]
  %v169 = vld [vmem:[%s0 + $0xb8] sm:$0xff]
  %v170 = vld [vmem:[%s0 + $0xc0] sm:$0xff]
  %v171 = vld [vmem:[%s0 + $0xc8] sm:$0xff]
  %v172 = vld [vmem:[%s0 + $0xd0] sm:$0xff]
  %v173 = vld [vmem:[%s0 + $0xd8] sm:$0xff]
  %v174 = vld [vmem:[%s0 + $0xe0] sm:$0xff]
  %v175 = vld [vmem:[%s0 + $0xe8] sm:$0xff]
  %v176 = vld [vmem:[%s0 + $0xf0] sm:$0xff]
  %v177 = vld [vmem:[%s0 + $0xf8] sm:$0xff]
  %v178 = vld [vmem:[%s0 + $0x100] sm:$0xff]
  %v179 = vld [vmem:[%s0 + $0x108] sm:$0xff]
  %v180 = vld [vmem:[%s0 + $0x110] sm:$0xff]
  %v181 = vld [vmem:[%s0 + $0x118] sm:$0xff]
  %v182 = vld [vmem:[%s0 + $0x120] sm:$0xff]
  %v183 = vld [vmem:[%s0 + $0x128] sm:$0xff]
  %v184 = vld [vmem:[%s0 + $0x130] sm:$0xff]
  %v185 = vld [vmem:[%s0 + $0x138] sm:$0xff]
  %v186 = vld [vmem:[%s0 + $0x140] sm:$0xff]
  %v187 = vld [vmem:[%s0 + $0x148] sm:$0xff]
  %v188 = vld [vmem:[%s0 + $0x150] sm:$0xff]
  %v189 = vld [vmem:[%s0 + $0x158] sm:$0xff]
  %v190 = vld [vmem:[%s0 + $0x160] sm:$0xff]
  %v191 = vld [vmem:[%s0 + $0x168] sm:$0xff]
  %v192 = vld [vmem:[%s0 + $0x170] sm:$0xff]
  %v193 = vld [vmem:[%s0 + $0x178] sm:$0xff]
  %v194 = vld [vmem:[%s0 + $0x180] sm:$0xff]
  %v195 = vld [vmem:[%s0 + $0x188] sm:$0xff]
  %v196 = vld [vmem:[%s0 + $0x190] sm:$0xff]
  %v197 = vld [vmem:[%s0 + $0x198] sm:$0xff]
  %v198 = vld [vmem:[%s0 + $0x1a0] sm:$0xff]
  %v199 = vld [vmem:[%s0 + $0x1a8] sm:$0xff]
  %v200 = vld [vmem:[%s0 + $0x1b0] sm:$0xff]
  %v201 = vld [vmem:[%s0 + $0x1b8] sm:$0xff]
  %v202 = vld [vmem:[%s0 + $0x1c0] sm:$0xff]
  %v203 = vld [vmem:[%s0 + $0x1c8] sm:$0xff]
  %v204 = vld [vmem:[%s0 + $0x1d0] sm:$0xff]
  %v205 = vld [vmem:[%s0 + $0x1d8] sm:$0xff]
  %v206 = vld [vmem:[%s0 + $0x1e0] sm:$0xff]
  %v207 = vld [vmem:[%s0 + $0x1e8] sm:$0xff]
  %v208 = vld [vmem:[%s0 + $0x1f0] sm:$0xff]
  %v209 = vld [vmem:[%s0 + $0x1f8] sm:$0xff]
  %v210 = vld [vmem:[%s1] sm:$0x1]
  %v212 = vlaneseq
  %v213 = vshrl.u32 %v212, 7
  %v214 = vsub.s32 0, %v213
  %v215 = vrot.slane %v210, %v214
  %v217 = vmul.f32 %v146, %v215
  %v218 = vmul.f32 %v147, %v215
  %v219 = vmul.f32 %v148, %v215
  %v220 = vmul.f32 %v149, %v215
  %v221 = vmul.f32 %v150, %v215
  %v222 = vmul.f32 %v151, %v215
  %v223 = vmul.f32 %v152, %v215
  %v224 = vmul.f32 %v153, %v215
  %v225 = vmul.f32 %v154, %v215
  %v226 = vmul.f32 %v155, %v215
  %v227 = vmul.f32 %v156, %v215
  %v228 = vmul.f32 %v157, %v215
  %v229 = vmul.f32 %v158, %v215
  %v230 = vmul.f32 %v159, %v215
  %v231 = vmul.f32 %v160, %v215
  %v232 = vmul.f32 %v161, %v215
  %v233 = vmul.f32 %v162, %v215
  %v234 = vmul.f32 %v163, %v215
  %v235 = vmul.f32 %v164, %v215
  %v236 = vmul.f32 %v165, %v215
  %v237 = vmul.f32 %v166, %v215
  %v238 = vmul.f32 %v167, %v215
  %v239 = vmul.f32 %v168, %v215
  %v240 = vmul.f32 %v169, %v215
  %v241 = vmul.f32 %v170, %v215
  %v242 = vmul.f32 %v171, %v215
  %v243 = vmul.f32 %v172, %v215
  %v244 = vmul.f32 %v173, %v215
  %v245 = vmul.f32 %v174, %v215
  %v246 = vmul.f32 %v175, %v215
  %v247 = vmul.f32 %v176, %v215
  %v248 = vmul.f32 %v177, %v215
  %v249 = vmul.f32 %v178, %v215
  %v250 = vmul.f32 %v179, %v215
  %v251 = vmul.f32 %v180, %v215
  %v252 = vmul.f32 %v181, %v215
  %v253 = vmul.f32 %v182, %v215
  %v254 = vmul.f32 %v183, %v215
  %v255 = vmul.f32 %v184, %v215
  %v256 = vmul.f32 %v185, %v215
  %v257 = vmul.f32 %v186, %v215
  %v258 = vmul.f32 %v187, %v215
  %v259 = vmul.f32 %v188, %v215
  %v260 = vmul.f32 %v189, %v215
  %v261 = vmul.f32 %v190, %v215
  %v262 = vmul.f32 %v191, %v215
  %v263 = vmul.f32 %v192, %v215
  %v264 = vmul.f32 %v193, %v215
  %v265 = vmul.f32 %v194, %v215
  %v266 = vmul.f32 %v195, %v215
  %v267 = vmul.f32 %v196, %v215
  %v268 = vmul.f32 %v197, %v215
  %v269 = vmul.f32 %v198, %v215
  %v270 = vmul.f32 %v199, %v215
  %v271 = vmul.f32 %v200, %v215
  %v272 = vmul.f32 %v201, %v215
  %v273 = vmul.f32 %v202, %v215
  %v274 = vmul.f32 %v203, %v215
  %v275 = vmul.f32 %v204, %v215
  %v276 = vmul.f32 %v205, %v215
  %v277 = vmul.f32 %v206, %v215
  %v278 = vmul.f32 %v207, %v215
  %v279 = vmul.f32 %v208, %v215
  %v280 = vmul.f32 %v209, %v215
  %v281 = vld [vmem:[%s2] sm:$0x1]
  %v283 = vlaneseq
  %v284 = vshrl.u32 %v283, 7
  %v285 = vsub.s32 0, %v284
  %v286 = vrot.slane %v281, %v285
  %v288 = vadd.f32 %v217, %v286
  %v289 = vadd.f32 %v218, %v286
  %v290 = vadd.f32 %v219, %v286
  %v291 = vadd.f32 %v220, %v286
  %v292 = vadd.f32 %v221, %v286
  %v293 = vadd.f32 %v222, %v286
  %v294 = vadd.f32 %v223, %v286
  %v295 = vadd.f32 %v224, %v286
  %v296 = vadd.f32 %v225, %v286
  %v297 = vadd.f32 %v226, %v286
  %v298 = vadd.f32 %v227, %v286
  %v299 = vadd.f32 %v228, %v286
  %v300 = vadd.f32 %v229, %v286
  %v301 = vadd.f32 %v230, %v286
  %v302 = vadd.f32 %v231, %v286
  %v303 = vadd.f32 %v232, %v286
  %v304 = vadd.f32 %v233, %v286
  %v305 = vadd.f32 %v234, %v286
  %v306 = vadd.f32 %v235, %v286
  %v307 = vadd.f32 %v236, %v286
  %v308 = vadd.f32 %v237, %v286
  %v309 = vadd.f32 %v238, %v286
  %v310 = vadd.f32 %v239, %v286
  %v311 = vadd.f32 %v240, %v286
  %v312 = vadd.f32 %v241, %v286
  %v313 = vadd.f32 %v242, %v286
  %v314 = vadd.f32 %v243, %v286
  %v315 = vadd.f32 %v244, %v286
  %v316 = vadd.f32 %v245, %v286
  %v317 = vadd.f32 %v246, %v286
  %v318 = vadd.f32 %v247, %v286
  %v319 = vadd.f32 %v248, %v286
  %v320 = vadd.f32 %v249, %v286
  %v321 = vadd.f32 %v250, %v286
  %v322 = vadd.f32 %v251, %v286
  %v323 = vadd.f32 %v252, %v286
  %v324 = vadd.f32 %v253, %v286
  %v325 = vadd.f32 %v254, %v286
  %v326 = vadd.f32 %v255, %v286
  %v327 = vadd.f32 %v256, %v286
  %v328 = vadd.f32 %v257, %v286
  %v329 = vadd.f32 %v258, %v286
  %v330 = vadd.f32 %v259, %v286
  %v331 = vadd.f32 %v260, %v286
  %v332 = vadd.f32 %v261, %v286
  %v333 = vadd.f32 %v262, %v286
  %v334 = vadd.f32 %v263, %v286
  %v335 = vadd.f32 %v264, %v286
  %v336 = vadd.f32 %v265, %v286
  %v337 = vadd.f32 %v266, %v286
  %v338 = vadd.f32 %v267, %v286
  %v339 = vadd.f32 %v268, %v286
  %v340 = vadd.f32 %v269, %v286
  %v341 = vadd.f32 %v270, %v286
  %v342 = vadd.f32 %v271, %v286
  %v343 = vadd.f32 %v272, %v286
  %v344 = vadd.f32 %v273, %v286
  %v345 = vadd.f32 %v274, %v286
  %v346 = vadd.f32 %v275, %v286
  %v347 = vadd.f32 %v276, %v286
  %v348 = vadd.f32 %v277, %v286
  %v349 = vadd.f32 %v278, %v286
  %v350 = vadd.f32 %v279, %v286
  %v351 = vadd.f32 %v280, %v286
  %v352 = vadd.f32 %v288, %v82
  %v353 = vadd.f32 %v289, %v83
  %v354 = vadd.f32 %v290, %v84
  %v355 = vadd.f32 %v291, %v85
  %v356 = vadd.f32 %v292, %v86
  %v357 = vadd.f32 %v293, %v87
  %v358 = vadd.f32 %v294, %v88
  %v359 = vadd.f32 %v295, %v89
  %v360 = vadd.f32 %v296, %v90
  %v361 = vadd.f32 %v297, %v91
  %v362 = vadd.f32 %v298, %v92
  %v363 = vadd.f32 %v299, %v93
  %v364 = vadd.f32 %v300, %v94
  %v365 = vadd.f32 %v301, %v95
  %v366 = vadd.f32 %v302, %v96
  %v367 = vadd.f32 %v303, %v97
  %v368 = vadd.f32 %v304, %v98
  %v369 = vadd.f32 %v305, %v99
  %v370 = vadd.f32 %v306, %v100
  %v371 = vadd.f32 %v307, %v101
  %v372 = vadd.f32 %v308, %v102
  %v373 = vadd.f32 %v309, %v103
  %v374 = vadd.f32 %v310, %v104
  %v375 = vadd.f32 %v311, %v105
  %v376 = vadd.f32 %v312, %v106
  %v377 = vadd.f32 %v313, %v107
  %v378 = vadd.f32 %v314, %v108
  %v379 = vadd.f32 %v315, %v109
  %v380 = vadd.f32 %v316, %v110
  %v381 = vadd.f32 %v317, %v111
  %v382 = vadd.f32 %v318, %v112
  %v383 = vadd.f32 %v319, %v113
  %v384 = vadd.f32 %v320, %v114
  %v385 = vadd.f32 %v321, %v115
  %v386 = vadd.f32 %v322, %v116
  %v387 = vadd.f32 %v323, %v117
  %v388 = vadd.f32 %v324, %v118
  %v389 = vadd.f32 %v325, %v119
  %v390 = vadd.f32 %v326, %v120
  %v391 = vadd.f32 %v327, %v121
  %v392 = vadd.f32 %v328, %v122
  %v393 = vadd.f32 %v329, %v123
  %v394 = vadd.f32 %v330, %v124
  %v395 = vadd.f32 %v331, %v125
  %v396 = vadd.f32 %v332, %v126
  %v397 = vadd.f32 %v333, %v127
  %v398 = vadd.f32 %v334, %v128
  %v399 = vadd.f32 %v335, %v129
  %v400 = vadd.f32 %v336, %v130
  %v401 = vadd.f32 %v337, %v131
  %v402 = vadd.f32 %v338, %v132
  %v403 = vadd.f32 %v339, %v133
  %v404 = vadd.f32 %v340, %v134
  %v405 = vadd.f32 %v341, %v135
  %v406 = vadd.f32 %v342, %v136
  %v407 = vadd.f32 %v343, %v137
  %v408 = vadd.f32 %v344, %v138
  %v409 = vadd.f32 %v345, %v139
  %v410 = vadd.f32 %v346, %v140
  %v411 = vadd.f32 %v347, %v141
  %v412 = vadd.f32 %v348, %v142
  %v413 = vadd.f32 %v349, %v143
  %v414 = vadd.f32 %v350, %v144
  %v415 = vadd.f32 %v351, %v145
  %416 = vst [vmem:[%s4] sm:$0xff] %v352
  %417 = vst [vmem:[%s4 + $0x8] sm:$0xff] %v353
  %418 = vst [vmem:[%s4 + $0x10] sm:$0xff] %v354
  %419 = vst [vmem:[%s4 + $0x18] sm:$0xff] %v355
  %420 = vst [vmem:[%s4 + $0x20] sm:$0xff] %v356
  %421 = vst [vmem:[%s4 + $0x28] sm:$0xff] %v357
  %422 = vst [vmem:[%s4 + $0x30] sm:$0xff] %v358
  %423 = vst [vmem:[%s4 + $0x38] sm:$0xff] %v359
  %424 = vst [vmem:[%s4 + $0x40] sm:$0xff] %v360
  %425 = vst [vmem:[%s4 + $0x48] sm:$0xff] %v361
  %426 = vst [vmem:[%s4 + $0x50] sm:$0xff] %v362
  %427 = vst [vmem:[%s4 + $0x58] sm:$0xff] %v363
  %428 = vst [vmem:[%s4 + $0x60] sm:$0xff] %v364
  %429 = vst [vmem:[%s4 + $0x68] sm:$0xff] %v365
  %430 = vst [vmem:[%s4 + $0x70] sm:$0xff] %v366
  %431 = vst [vmem:[%s4 + $0x78] sm:$0xff] %v367
  %432 = vst [vmem:[%s4 + $0x80] sm:$0xff] %v368
  %433 = vst [vmem:[%s4 + $0x88] sm:$0xff] %v369
  %434 = vst [vmem:[%s4 + $0x90] sm:$0xff] %v370
  %435 = vst [vmem:[%s4 + $0x98] sm:$0xff] %v371
  %436 = vst [vmem:[%s4 + $0xa0] sm:$0xff] %v372
  %437 = vst [vmem:[%s4 + $0xa8] sm:$0xff] %v373
  %438 = vst [vmem:[%s4 + $0xb0] sm:$0xff] %v374
  %439 = vst [vmem:[%s4 + $0xb8] sm:$0xff] %v375
  %440 = vst [vmem:[%s4 + $0xc0] sm:$0xff] %v376
  %441 = vst [vmem:[%s4 + $0xc8] sm:$0xff] %v377
  %442 = vst [vmem:[%s4 + $0xd0] sm:$0xff] %v378
  %443 = vst [vmem:[%s4 + $0xd8] sm:$0xff] %v379
  %444 = vst [vmem:[%s4 + $0xe0] sm:$0xff] %v380
  %445 = vst [vmem:[%s4 + $0xe8] sm:$0xff] %v381
  %446 = vst [vmem:[%s4 + $0xf0] sm:$0xff] %v382
  %447 = vst [vmem:[%s4 + $0xf8] sm:$0xff] %v383
  %448 = vst [vmem:[%s4 + $0x100] sm:$0xff] %v384
  %449 = vst [vmem:[%s4 + $0x108] sm:$0xff] %v385
  %450 = vst [vmem:[%s4 + $0x110] sm:$0xff] %v386
  %451 = vst [vmem:[%s4 + $0x118] sm:$0xff] %v387
  %452 = vst [vmem:[%s4 + $0x120] sm:$0xff] %v388
  %453 = vst [vmem:[%s4 + $0x128] sm:$0xff] %v389
  %454 = vst [vmem:[%s4 + $0x130] sm:$0xff] %v390
  %455 = vst [vmem:[%s4 + $0x138] sm:$0xff] %v391
  %456 = vst [vmem:[%s4 + $0x140] sm:$0xff] %v392
  %457 = vst [vmem:[%s4 + $0x148] sm:$0xff] %v393
  %458 = vst [vmem:[%s4 + $0x150] sm:$0xff] %v394
  %459 = vst [vmem:[%s4 + $0x158] sm:$0xff] %v395
  %460 = vst [vmem:[%s4 + $0x160] sm:$0xff] %v396
  %461 = vst [vmem:[%s4 + $0x168] sm:$0xff] %v397
  %462 = vst [vmem:[%s4 + $0x170] sm:$0xff] %v398
  %463 = vst [vmem:[%s4 + $0x178] sm:$0xff] %v399
  %464 = vst [vmem:[%s4 + $0x180] sm:$0xff] %v400
  %465 = vst [vmem:[%s4 + $0x188] sm:$0xff] %v401
  %466 = vst [vmem:[%s4 + $0x190] sm:$0xff] %v402
  %467 = vst [vmem:[%s4 + $0x198] sm:$0xff] %v403
  %468 = vst [vmem:[%s4 + $0x1a0] sm:$0xff] %v404
  %469 = vst [vmem:[%s4 + $0x1a8] sm:$0xff] %v405
  %470 = vst [vmem:[%s4 + $0x1b0] sm:$0xff] %v406
  %471 = vst [vmem:[%s4 + $0x1b8] sm:$0xff] %v407
  %472 = vst [vmem:[%s4 + $0x1c0] sm:$0xff] %v408
  %473 = vst [vmem:[%s4 + $0x1c8] sm:$0xff] %v409
  %474 = vst [vmem:[%s4 + $0x1d0] sm:$0xff] %v410
  %475 = vst [vmem:[%s4 + $0x1d8] sm:$0xff] %v411
  %476 = vst [vmem:[%s4 + $0x1e0] sm:$0xff] %v412
  %477 = vst [vmem:[%s4 + $0x1e8] sm:$0xff] %v413
  %478 = vst [vmem:[%s4 + $0x1f0] sm:$0xff] %v414
  %479 = vst [vmem:[%s4 + $0x1f8] sm:$0xff] %v415
  // Predicated region
  $region18: #{linear_bottleneck_forward.7} parent=0 // pred_check
    _
  $region19: #{linear_bottleneck_forward.7} parent=0 // pred_check_branch
    %481 = sbr.rel (0) target = $region21
  $region20: #{linear_bottleneck_forward.7} parent=0 // pred_region
    _
  $region21: #{linear_bottleneck_forward.7} parent=0 // pred_fallthru
    _
  // Predicated region
  $region22: #{linear_bottleneck_forward.7} parent=0 // pred_check
    _
  $region23: #{linear_bottleneck_forward.7} parent=0 // pred_check_branch
    %483 = sbr.rel (0) target = $region25
  $region24: #{linear_bottleneck_forward.7} parent=0 // pred_region
    _
  $region25: #{linear_bottleneck_forward.7} parent=0 // pred_fallthru
    _

// kernel: linear_bottleneck_forward.6
$region0: #{linear_bottleneck_forward.6}
  #allocation0 [shape = 'u32[]', space=smem, size = 0x4, offset = 0x4, fixed_abs, tag = 'smem constant byte address 0x4 - core index']
  #allocation1 [shape = 'u32[144,128]{1,0:T(1,128)}', space=vmem, size = 0x12000, scoped, tag = 'internal scratch']
  %s0 = inlined_call_operand.vmem [shape: f32[512,128], index: 0, kind: input, shape index: {}]
  %s1 = inlined_call_operand.vmem [shape: f32[1,128], index: 1, kind: input, shape index: {}]
  %s2 = inlined_call_operand.vmem [shape: f32[1,128], index: 2, kind: input, shape index: {}]
  %s3 = inlined_call_operand.vmem [shape: f32[128,128], index: 3, kind: input, shape index: {}]
  %s4 = inlined_call_operand.vmem [shape: f32[512,128], index: 4, kind: output, shape index: {0}]
  %s5 = inlined_call_operand.vmem [shape: f32[1,2,128], index: 5, kind: output, shape index: {1}]
  %6 = xla_tuple %s4, %s5
  %s7 = sld [smem:[#allocation0]]
  $region34: #{linear_bottleneck_forward.6} parent=0
    _
  %s9 = ssub.s32 1, %s7
  %s10 = scalar_select 0, %s9, %s7
  // Predicated region
  $region2: #{linear_bottleneck_forward.6} parent=0 // pred_check
    _
  $region3: #{linear_bottleneck_forward.6} parent=0 // pred_check_branch
    %12 = sbr.rel (0) target = $region5
  $region4: #{linear_bottleneck_forward.6} parent=0 // pred_region
    _
  $region5: #{linear_bottleneck_forward.6} parent=0 // pred_fallthru
    _
  // Predicated region
  $region6: #{linear_bottleneck_forward.6} parent=0 // pred_check
    _
  $region7: #{linear_bottleneck_forward.6} parent=0 // pred_check_branch
    %14 = sbr.rel (0) target = $region9
  $region8: #{linear_bottleneck_forward.6} parent=0 // pred_region
    _
  $region9: #{linear_bottleneck_forward.6} parent=0 // pred_fallthru
    _
  // Predicated region
  $region10: #{linear_bottleneck_forward.6} parent=0 // pred_check
    _
  $region11: #{linear_bottleneck_forward.6} parent=0 // pred_check_branch
    %16 = sbr.rel (0) target = $region13
  $region12: #{linear_bottleneck_forward.6} parent=0 // pred_region
    _
  $region13: #{linear_bottleneck_forward.6} parent=0 // pred_fallthru
    _
  // Predicated region
  $region14: #{linear_bottleneck_forward.6} parent=0 // pred_check
    _
  $region15: #{linear_bottleneck_forward.6} parent=0 // pred_check_branch
    %18 = sbr.rel (0) target = $region17
  $region16: #{linear_bottleneck_forward.6} parent=0 // pred_region
    _
  $region17: #{linear_bottleneck_forward.6} parent=0 // pred_fallthru
    _
  %v19 = vld [vmem:[%s0] sm:$0xff]
  %v20 = vld [vmem:[%s0 + $0x8] sm:$0xff]
  %v21 = vld [vmem:[%s0 + $0x10] sm:$0xff]
  %v22 = vld [vmem:[%s0 + $0x18] sm:$0xff]
  %v23 = vld [vmem:[%s0 + $0x20] sm:$0xff]
  %v24 = vld [vmem:[%s0 + $0x28] sm:$0xff]
  %v25 = vld [vmem:[%s0 + $0x30] sm:$0xff]
  %v26 = vld [vmem:[%s0 + $0x38] sm:$0xff]
  %v27 = vld [vmem:[%s0 + $0x40] sm:$0xff]
  %v28 = vld [vmem:[%s0 + $0x48] sm:$0xff]
  %v29 = vld [vmem:[%s0 + $0x50] sm:$0xff]
  %v30 = vld [vmem:[%s0 + $0x58] sm:$0xff]
  %v31 = vld [vmem:[%s0 + $0x60] sm:$0xff]
  %v32 = vld [vmem:[%s0 + $0x68] sm:$0xff]
  %v33 = vld [vmem:[%s0 + $0x70] sm:$0xff]
  %v34 = vld [vmem:[%s0 + $0x78] sm:$0xff]
  %v35 = vld [vmem:[%s0 + $0x80] sm:$0xff]
  %v36 = vld [vmem:[%s0 + $0x88] sm:$0xff]
  %v37 = vld [vmem:[%s0 + $0x90] sm:$0xff]
  %v38 = vld [vmem:[%s0 + $0x98] sm:$0xff]
  %v39 = vld [vmem:[%s0 + $0xa0] sm:$0xff]
  %v40 = vld [vmem:[%s0 + $0xa8] sm:$0xff]
  %v41 = vld [vmem:[%s0 + $0xb0] sm:$0xff]
  %v42 = vld [vmem:[%s0 + $0xb8] sm:$0xff]
  %v43 = vld [vmem:[%s0 + $0xc0] sm:$0xff]
  %v44 = vld [vmem:[%s0 + $0xc8] sm:$0xff]
  %v45 = vld [vmem:[%s0 + $0xd0] sm:$0xff]
  %v46 = vld [vmem:[%s0 + $0xd8] sm:$0xff]
  %v47 = vld [vmem:[%s0 + $0xe0] sm:$0xff]
  %v48 = vld [vmem:[%s0 + $0xe8] sm:$0xff]
  %v49 = vld [vmem:[%s0 + $0xf0] sm:$0xff]
  %v50 = vld [vmem:[%s0 + $0xf8] sm:$0xff]
  %v51 = vld [vmem:[%s0 + $0x100] sm:$0xff]
  %v52 = vld [vmem:[%s0 + $0x108] sm:$0xff]
  %v53 = vld [vmem:[%s0 + $0x110] sm:$0xff]
  %v54 = vld [vmem:[%s0 + $0x118] sm:$0xff]
  %v55 = vld [vmem:[%s0 + $0x120] sm:$0xff]
  %v56 = vld [vmem:[%s0 + $0x128] sm:$0xff]
  %v57 = vld [vmem:[%s0 + $0x130] sm:$0xff]
  %v58 = vld [vmem:[%s0 + $0x138] sm:$0xff]
  %v59 = vld [vmem:[%s0 + $0x140] sm:$0xff]
  %v60 = vld [vmem:[%s0 + $0x148] sm:$0xff]
  %v61 = vld [vmem:[%s0 + $0x150] sm:$0xff]
  %v62 = vld [vmem:[%s0 + $0x158] sm:$0xff]
  %v63 = vld [vmem:[%s0 + $0x160] sm:$0xff]
  %v64 = vld [vmem:[%s0 + $0x168] sm:$0xff]
  %v65 = vld [vmem:[%s0 + $0x170] sm:$0xff]
  %v66 = vld [vmem:[%s0 + $0x178] sm:$0xff]
  %v67 = vld [vmem:[%s0 + $0x180] sm:$0xff]
  %v68 = vld [vmem:[%s0 + $0x188] sm:$0xff]
  %v69 = vld [vmem:[%s0 + $0x190] sm:$0xff]
  %v70 = vld [vmem:[%s0 + $0x198] sm:$0xff]
  %v71 = vld [vmem:[%s0 + $0x1a0] sm:$0xff]
  %v72 = vld [vmem:[%s0 + $0x1a8] sm:$0xff]
  %v73 = vld [vmem:[%s0 + $0x1b0] sm:$0xff]
  %v74 = vld [vmem:[%s0 + $0x1b8] sm:$0xff]
  %v75 = vld [vmem:[%s0 + $0x1c0] sm:$0xff]
  %v76 = vld [vmem:[%s0 + $0x1c8] sm:$0xff]
  %v77 = vld [vmem:[%s0 + $0x1d0] sm:$0xff]
  %v78 = vld [vmem:[%s0 + $0x1d8] sm:$0xff]
  %v79 = vld [vmem:[%s0 + $0x1e0] sm:$0xff]
  %v80 = vld [vmem:[%s0 + $0x1e8] sm:$0xff]
  %v81 = vld [vmem:[%s0 + $0x1f0] sm:$0xff]
  %v82 = vld [vmem:[%s0 + $0x1f8] sm:$0xff]
  %v83 = vld [vmem:[%s1] sm:$0x1]
  %v85 = vlaneseq
  %v86 = vshrl.u32 %v85, 7
  %v87 = vsub.s32 0, %v86
  %v88 = vrot.slane %v83, %v87
  %v90 = vmul.f32 %v19, %v88
  %v91 = vmul.f32 %v20, %v88
  %v92 = vmul.f32 %v21, %v88
  %v93 = vmul.f32 %v22, %v88
  %v94 = vmul.f32 %v23, %v88
  %v95 = vmul.f32 %v24, %v88
  %v96 = vmul.f32 %v25, %v88
  %v97 = vmul.f32 %v26, %v88
  %v98 = vmul.f32 %v27, %v88
  %v99 = vmul.f32 %v28, %v88
  %v100 = vmul.f32 %v29, %v88
  %v101 = vmul.f32 %v30, %v88
  %v102 = vmul.f32 %v31, %v88
  %v103 = vmul.f32 %v32, %v88
  %v104 = vmul.f32 %v33, %v88
  %v105 = vmul.f32 %v34, %v88
  %v106 = vmul.f32 %v35, %v88
  %v107 = vmul.f32 %v36, %v88
  %v108 = vmul.f32 %v37, %v88
  %v109 = vmul.f32 %v38, %v88
  %v110 = vmul.f32 %v39, %v88
  %v111 = vmul.f32 %v40, %v88
  %v112 = vmul.f32 %v41, %v88
  %v113 = vmul.f32 %v42, %v88
  %v114 = vmul.f32 %v43, %v88
  %v115 = vmul.f32 %v44, %v88
  %v116 = vmul.f32 %v45, %v88
  %v117 = vmul.f32 %v46, %v88
  %v118 = vmul.f32 %v47, %v88
  %v119 = vmul.f32 %v48, %v88
  %v120 = vmul.f32 %v49, %v88
  %v121 = vmul.f32 %v50, %v88
  %v122 = vmul.f32 %v51, %v88
  %v123 = vmul.f32 %v52, %v88
  %v124 = vmul.f32 %v53, %v88
  %v125 = vmul.f32 %v54, %v88
  %v126 = vmul.f32 %v55, %v88
  %v127 = vmul.f32 %v56, %v88
  %v128 = vmul.f32 %v57, %v88
  %v129 = vmul.f32 %v58, %v88
  %v130 = vmul.f32 %v59, %v88
  %v131 = vmul.f32 %v60, %v88
  %v132 = vmul.f32 %v61, %v88
  %v133 = vmul.f32 %v62, %v88
  %v134 = vmul.f32 %v63, %v88
  %v135 = vmul.f32 %v64, %v88
  %v136 = vmul.f32 %v65, %v88
  %v137 = vmul.f32 %v66, %v88
  %v138 = vmul.f32 %v67, %v88
  %v139 = vmul.f32 %v68, %v88
  %v140 = vmul.f32 %v69, %v88
  %v141 = vmul.f32 %v70, %v88
  %v142 = vmul.f32 %v71, %v88
  %v143 = vmul.f32 %v72, %v88
  %v144 = vmul.f32 %v73, %v88
  %v145 = vmul.f32 %v74, %v88
  %v146 = vmul.f32 %v75, %v88
  %v147 = vmul.f32 %v76, %v88
  %v148 = vmul.f32 %v77, %v88
  %v149 = vmul.f32 %v78, %v88
  %v150 = vmul.f32 %v79, %v88
  %v151 = vmul.f32 %v80, %v88
  %v152 = vmul.f32 %v81, %v88
  %v153 = vmul.f32 %v82, %v88
  %v154 = vld [vmem:[%s2] sm:$0x1]
  %v156 = vlaneseq
  %v157 = vshrl.u32 %v156, 7
  %v158 = vsub.s32 0, %v157
  %v159 = vrot.slane %v154, %v158
  %v161 = vadd.f32 %v90, %v159
  %v162 = vadd.f32 %v91, %v159
  %v163 = vadd.f32 %v92, %v159
  %v164 = vadd.f32 %v93, %v159
  %v165 = vadd.f32 %v94, %v159
  %v166 = vadd.f32 %v95, %v159
  %v167 = vadd.f32 %v96, %v159
  %v168 = vadd.f32 %v97, %v159
  %v169 = vadd.f32 %v98, %v159
  %v170 = vadd.f32 %v99, %v159
  %v171 = vadd.f32 %v100, %v159
  %v172 = vadd.f32 %v101, %v159
  %v173 = vadd.f32 %v102, %v159
  %v174 = vadd.f32 %v103, %v159
  %v175 = vadd.f32 %v104, %v159
  %v176 = vadd.f32 %v105, %v159
  %v177 = vadd.f32 %v106, %v159
  %v178 = vadd.f32 %v107, %v159
  %v179 = vadd.f32 %v108, %v159
  %v180 = vadd.f32 %v109, %v159
  %v181 = vadd.f32 %v110, %v159
  %v182 = vadd.f32 %v111, %v159
  %v183 = vadd.f32 %v112, %v159
  %v184 = vadd.f32 %v113, %v159
  %v185 = vadd.f32 %v114, %v159
  %v186 = vadd.f32 %v115, %v159
  %v187 = vadd.f32 %v116, %v159
  %v188 = vadd.f32 %v117, %v159
  %v189 = vadd.f32 %v118, %v159
  %v190 = vadd.f32 %v119, %v159
  %v191 = vadd.f32 %v120, %v159
  %v192 = vadd.f32 %v121, %v159
  %v193 = vadd.f32 %v122, %v159
  %v194 = vadd.f32 %v123, %v159
  %v195 = vadd.f32 %v124, %v159
  %v196 = vadd.f32 %v125, %v159
  %v197 = vadd.f32 %v126, %v159
  %v198 = vadd.f32 %v127, %v159
  %v199 = vadd.f32 %v128, %v159
  %v200 = vadd.f32 %v129, %v159
  %v201 = vadd.f32 %v130, %v159
  %v202 = vadd.f32 %v131, %v159
  %v203 = vadd.f32 %v132, %v159
  %v204 = vadd.f32 %v133, %v159
  %v205 = vadd.f32 %v134, %v159
  %v206 = vadd.f32 %v135, %v159
  %v207 = vadd.f32 %v136, %v159
  %v208 = vadd.f32 %v137, %v159
  %v209 = vadd.f32 %v138, %v159
  %v210 = vadd.f32 %v139, %v159
  %v211 = vadd.f32 %v140, %v159
  %v212 = vadd.f32 %v141, %v159
  %v213 = vadd.f32 %v142, %v159
  %v214 = vadd.f32 %v143, %v159
  %v215 = vadd.f32 %v144, %v159
  %v216 = vadd.f32 %v145, %v159
  %v217 = vadd.f32 %v146, %v159
  %v218 = vadd.f32 %v147, %v159
  %v219 = vadd.f32 %v148, %v159
  %v220 = vadd.f32 %v149, %v159
  %v221 = vadd.f32 %v150, %v159
  %v222 = vadd.f32 %v151, %v159
  %v223 = vadd.f32 %v152, %v159
  %v224 = vadd.f32 %v153, %v159
  %v225 = vmax.f32 %v161, 0.0
  %v226 = vmax.f32 %v162, 0.0
  %v227 = vmax.f32 %v163, 0.0
  %v228 = vmax.f32 %v164, 0.0
  %v229 = vmax.f32 %v165, 0.0
  %v230 = vmax.f32 %v166, 0.0
  %v231 = vmax.f32 %v167, 0.0
  %v232 = vmax.f32 %v168, 0.0
  %v233 = vmax.f32 %v169, 0.0
  %v234 = vmax.f32 %v170, 0.0
  %v235 = vmax.f32 %v171, 0.0
  %v236 = vmax.f32 %v172, 0.0
  %v237 = vmax.f32 %v173, 0.0
  %v238 = vmax.f32 %v174, 0.0
  %v239 = vmax.f32 %v175, 0.0
  %v240 = vmax.f32 %v176, 0.0
  %v241 = vmax.f32 %v177, 0.0
  %v242 = vmax.f32 %v178, 0.0
  %v243 = vmax.f32 %v179, 0.0
  %v244 = vmax.f32 %v180, 0.0
  %v245 = vmax.f32 %v181, 0.0
  %v246 = vmax.f32 %v182, 0.0
  %v247 = vmax.f32 %v183, 0.0
  %v248 = vmax.f32 %v184, 0.0
  %v249 = vmax.f32 %v185, 0.0
  %v250 = vmax.f32 %v186, 0.0
  %v251 = vmax.f32 %v187, 0.0
  %v252 = vmax.f32 %v188, 0.0
  %v253 = vmax.f32 %v189, 0.0
  %v254 = vmax.f32 %v190, 0.0
  %v255 = vmax.f32 %v191, 0.0
  %v256 = vmax.f32 %v192, 0.0
  %v257 = vmax.f32 %v193, 0.0
  %v258 = vmax.f32 %v194, 0.0
  %v259 = vmax.f32 %v195, 0.0
  %v260 = vmax.f32 %v196, 0.0
  %v261 = vmax.f32 %v197, 0.0
  %v262 = vmax.f32 %v198, 0.0
  %v263 = vmax.f32 %v199, 0.0
  %v264 = vmax.f32 %v200, 0.0
  %v265 = vmax.f32 %v201, 0.0
  %v266 = vmax.f32 %v202, 0.0
  %v267 = vmax.f32 %v203, 0.0
  %v268 = vmax.f32 %v204, 0.0
  %v269 = vmax.f32 %v205, 0.0
  %v270 = vmax.f32 %v206, 0.0
  %v271 = vmax.f32 %v207, 0.0
  %v272 = vmax.f32 %v208, 0.0
  %v273 = vmax.f32 %v209, 0.0
  %v274 = vmax.f32 %v210, 0.0
  %v275 = vmax.f32 %v211, 0.0
  %v276 = vmax.f32 %v212, 0.0
  %v277 = vmax.f32 %v213, 0.0
  %v278 = vmax.f32 %v214, 0.0
  %v279 = vmax.f32 %v215, 0.0
  %v280 = vmax.f32 %v216, 0.0
  %v281 = vmax.f32 %v217, 0.0
  %v282 = vmax.f32 %v218, 0.0
  %v283 = vmax.f32 %v219, 0.0
  %v284 = vmax.f32 %v220, 0.0
  %v285 = vmax.f32 %v221, 0.0
  %v286 = vmax.f32 %v222, 0.0
  %v287 = vmax.f32 %v223, 0.0
  %v288 = vmax.f32 %v224, 0.0
  %v289 = vmin.f32 %v225, 6.0
  %v290 = vmin.f32 %v226, 6.0
  %v291 = vmin.f32 %v227, 6.0
  %v292 = vmin.f32 %v228, 6.0
  %v293 = vmin.f32 %v229, 6.0
  %v294 = vmin.f32 %v230, 6.0
  %v295 = vmin.f32 %v231, 6.0
  %v296 = vmin.f32 %v232, 6.0
  %v297 = vmin.f32 %v233, 6.0
  %v298 = vmin.f32 %v234, 6.0
  %v299 = vmin.f32 %v235, 6.0
  %v300 = vmin.f32 %v236, 6.0
  %v301 = vmin.f32 %v237, 6.0
  %v302 = vmin.f32 %v238, 6.0
  %v303 = vmin.f32 %v239, 6.0
  %v304 = vmin.f32 %v240, 6.0
  %v305 = vmin.f32 %v241, 6.0
  %v306 = vmin.f32 %v242, 6.0
  %v307 = vmin.f32 %v243, 6.0
  %v308 = vmin.f32 %v244, 6.0
  %v309 = vmin.f32 %v245, 6.0
  %v310 = vmin.f32 %v246, 6.0
  %v311 = vmin.f32 %v247, 6.0
  %v312 = vmin.f32 %v248, 6.0
  %v313 = vmin.f32 %v249, 6.0
  %v314 = vmin.f32 %v250, 6.0
  %v315 = vmin.f32 %v251, 6.0
  %v316 = vmin.f32 %v252, 6.0
  %v317 = vmin.f32 %v253, 6.0
  %v318 = vmin.f32 %v254, 6.0
  %v319 = vmin.f32 %v255, 6.0
  %v320 = vmin.f32 %v256, 6.0
  %v321 = vmin.f32 %v257, 6.0
  %v322 = vmin.f32 %v258, 6.0
  %v323 = vmin.f32 %v259, 6.0
  %v324 = vmin.f32 %v260, 6.0
  %v325 = vmin.f32 %v261, 6.0
  %v326 = vmin.f32 %v262, 6.0
  %v327 = vmin.f32 %v263, 6.0
  %v328 = vmin.f32 %v264, 6.0
  %v329 = vmin.f32 %v265, 6.0
  %v330 = vmin.f32 %v266, 6.0
  %v331 = vmin.f32 %v267, 6.0
  %v332 = vmin.f32 %v268, 6.0
  %v333 = vmin.f32 %v269, 6.0
  %v334 = vmin.f32 %v270, 6.0
  %v335 = vmin.f32 %v271, 6.0
  %v336 = vmin.f32 %v272, 6.0
  %v337 = vmin.f32 %v273, 6.0
  %v338 = vmin.f32 %v274, 6.0
  %v339 = vmin.f32 %v275, 6.0
  %v340 = vmin.f32 %v276, 6.0
  %v341 = vmin.f32 %v277, 6.0
  %v342 = vmin.f32 %v278, 6.0
  %v343 = vmin.f32 %v279, 6.0
  %v344 = vmin.f32 %v280, 6.0
  %v345 = vmin.f32 %v281, 6.0
  %v346 = vmin.f32 %v282, 6.0
  %v347 = vmin.f32 %v283, 6.0
  %v348 = vmin.f32 %v284, 6.0
  %v349 = vmin.f32 %v285, 6.0
  %v350 = vmin.f32 %v286, 6.0
  %v351 = vmin.f32 %v287, 6.0
  %v352 = vmin.f32 %v288, 6.0
  %v353 = vld [vmem:[%s3] sm:$0xff]
  %v354 = vld [vmem:[%s3 + $0x8] sm:$0xff]
  %v355 = vld [vmem:[%s3 + $0x10] sm:$0xff]
  %v356 = vld [vmem:[%s3 + $0x18] sm:$0xff]
  %v357 = vld [vmem:[%s3 + $0x20] sm:$0xff]
  %v358 = vld [vmem:[%s3 + $0x28] sm:$0xff]
  %v359 = vld [vmem:[%s3 + $0x30] sm:$0xff]
  %v360 = vld [vmem:[%s3 + $0x38] sm:$0xff]
  %v361 = vld [vmem:[%s3 + $0x40] sm:$0xff]
  %v362 = vld [vmem:[%s3 + $0x48] sm:$0xff]
  %v363 = vld [vmem:[%s3 + $0x50] sm:$0xff]
  %v364 = vld [vmem:[%s3 + $0x58] sm:$0xff]
  %v365 = vld [vmem:[%s3 + $0x60] sm:$0xff]
  %v366 = vld [vmem:[%s3 + $0x68] sm:$0xff]
  %v367 = vld [vmem:[%s3 + $0x70] sm:$0xff]
  %v368 = vld [vmem:[%s3 + $0x78] sm:$0xff]
  %369 = vmatprep.subr.mxu0 0.0
  %370 = vmatpush1.msra.mxu0 %v353
  %371 = vmatprep.subr.mxu0 0.0
  %372 = vmatpush1.msra.mxu0 %v354
  %373 = vmatprep.subr.mxu0 0.0
  %374 = vmatpush1.msra.mxu0 %v355
  %375 = vmatprep.subr.mxu0 0.0
  %376 = vmatpush1.msra.mxu0 %v356
  %377 = vmatprep.subr.mxu0 0.0
  %378 = vmatpush1.msra.mxu0 %v357
  %379 = vmatprep.subr.mxu0 0.0
  %380 = vmatpush1.msra.mxu0 %v358
  %381 = vmatprep.subr.mxu0 0.0
  %382 = vmatpush1.msra.mxu0 %v359
  %383 = vmatprep.subr.mxu0 0.0
  %384 = vmatpush1.msra.mxu0 %v360
  %385 = vmatprep.subr.mxu0 0.0
  %386 = vmatpush1.msra.mxu0 %v361
  %387 = vmatprep.subr.mxu0 0.0
  %388 = vmatpush1.msra.mxu0 %v362
  %389 = vmatprep.subr.mxu0 0.0
  %390 = vmatpush1.msra.mxu0 %v363
  %391 = vmatprep.subr.mxu0 0.0
  %392 = vmatpush1.msra.mxu0 %v364
  %393 = vmatprep.subr.mxu0 0.0
  %394 = vmatpush1.msra.mxu0 %v365
  %395 = vmatprep.subr.mxu0 0.0
  %396 = vmatpush1.msra.mxu0 %v366
  %397 = vmatprep.subr.mxu0 0.0
  %398 = vmatpush1.msra.mxu0 %v367
  %399 = vmatprep.subr.mxu0 0.0
  %400 = vmatpush1.msra.mxu0 %v368
  %401 = vmatprep.subr.mxu0 0.0
  %402 = vmatpush1.msra.mxu0 0.0
  %403 = vmatprep.subr.mxu0 0.0
  %404 = vmatpush1.msra.mxu0 0.0
  %405 = vmatprep.subr.mxu0 0.0
  %406 = vmatpush1.msra.mxu0 0.0
  %407 = vmatprep.subr.mxu0 0.0
  %408 = vmatpush1.msra.mxu0 0.0
  %409 = vmatprep.subr.mxu0 0.0
  %410 = vmatpush1.msra.mxu0 0.0
  %411 = vmatprep.subr.mxu0 0.0
  %412 = vmatpush1.msra.mxu0 0.0
  %413 = vmatprep.subr.mxu0 0.0
  %414 = vmatpush1.msra.mxu0 0.0
  %415 = vmatprep.subr.mxu0 0.0
  %416 = vmatpush1.msra.mxu0 0.0
  %417 = vmatprep.subr.mxu0 0.0
  %418 = vmatpush1.msra.mxu0 0.0
  %419 = vmatprep.subr.mxu0 0.0
  %420 = vmatpush1.msra.mxu0 0.0
  %421 = vmatprep.subr.mxu0 0.0
  %422 = vmatpush1.msra.mxu0 0.0
  %423 = vmatprep.subr.mxu0 0.0
  %424 = vmatpush1.msra.mxu0 0.0
  %425 = vmatprep.subr.mxu0 0.0
  %426 = vmatpush1.msra.mxu0 0.0
  %427 = vmatprep.subr.mxu0 0.0
  %428 = vmatpush1.msra.mxu0 0.0
  %429 = vmatprep.subr.mxu0 0.0
  %430 = vmatpush1.msra.mxu0 0.0
  %431 = vmatprep.subr.mxu0 0.0
  %432 = vmatpush1.msra.mxu0 0.0
  %433 = vmatprep.mubr.f32.mxu0 0.0
  %434 = vmatmul.mubr.f32.gmra.mrb[0].mxu0 %v289
  %v435 = vpop.f32.mrb[0].mxu0
  %v436 = vadd.f32 0.0, %v435
  %v437 = vpop.f32.mrb[0].mxu0
  %438 = vmatprep.mubr.f32.mxu0 0.0
  %439 = vmatmul.mubr.f32.gmra.mrb[0].mxu0 %v290
  %v440 = vpop.f32.mrb[0].mxu0
  %v441 = vadd.f32 0.0, %v440
  %v442 = vpop.f32.mrb[0].mxu0
  %443 = vmatprep.mubr.f32.mxu0 0.0
  %444 = vmatmul.mubr.f32.gmra.mrb[0].mxu0 %v291
  %v445 = vpop.f32.mrb[0].mxu0
  %v446 = vadd.f32 0.0, %v445
  %v447 = vpop.f32.mrb[0].mxu0
  %448 = vmatprep.mubr.f32.mxu0 0.0
  %449 = vmatmul.mubr.f32.gmra.mrb[0].mxu0 %v292
  %v450 = vpop.f32.mrb[0].mxu0
  %v451 = vadd.f32 0.0, %v450
  %v452 = vpop.f32.mrb[0].mxu0
  %453 = vmatprep.mubr.f32.mxu0 0.0
  %454 = vmatmul.mubr.f32.gmra.mrb[0].mxu0 %v293
  %v455 = vpop.f32.mrb[0].mxu0
  %v456 = vadd.f32 0.0, %v455
  %v457 = vpop.f32.mrb[0].mxu0
  %458 = vmatprep.mubr.f32.mxu0 0.0
  %459 = vmatmul.mubr.f32.gmra.mrb[0].mxu0 %v294
  %v460 = vpop.f32.mrb[0].mxu0
  %v461 = vadd.f32 0.0, %v460
  %v462 = vpop.f32.mrb[0].mxu0
  %463 = vmatprep.mubr.f32.mxu0 0.0
  %464 = vmatmul.mubr.f32.gmra.mrb[0].mxu0 %v295
  %v465 = vpop.f32.mrb[0].mxu0
  %v466 = vadd.f32 0.0, %v465
  %v467 = vpop.f32.mrb[0].mxu0
  %468 = vmatprep.mubr.f32.mxu0 0.0
  %469 = vmatmul.mubr.f32.gmra.mrb[0].mxu0 %v296
  %v470 = vpop.f32.mrb[0].mxu0
  %v471 = vadd.f32 0.0, %v470
  %v472 = vpop.f32.mrb[0].mxu0
  %473 = vmatprep.mubr.f32.mxu0 0.0
  %474 = vmatmul.mubr.f32.gmra.mrb[0].mxu0 %v297
  %v475 = vpop.f32.mrb[0].mxu0
  %v476 = vadd.f32 0.0, %v475
  %v477 = vpop.f32.mrb[0].mxu0
  %478 = vmatprep.mubr.f32.mxu0 0.0
  %479 = vmatmul.mubr.f32.gmra.mrb[0].mxu0 %v298
  %v480 = vpop.f32.mrb[0].mxu0
  %v481 = vadd.f32 0.0, %v480
  %v482 = vpop.f32.mrb[0].mxu0
  %483 = vmatprep.mubr.f32.mxu0 0.0
  %484 = vmatmul.mubr.f32.gmra.mrb[0].mxu0 %v299
  %v485 = vpop.f32.mrb[0].mxu0
  %v486 = vadd.f32 0.0, %v485
  %v487 = vpop.f32.mrb[0].mxu0
  %488 = vmatprep.mubr.f32.mxu0 0.0
  %489 = vmatmul.mubr.f32.gmra.mrb[0].mxu0 %v300
  %v490 = vpop.f32.mrb[0].mxu0
  %v491 = vadd.f32 0.0, %v490
  %v492 = vpop.f32.mrb[0].mxu0
  %493 = vmatprep.mubr.f32.mxu0 0.0
  %494 = vmatmul.mubr.f32.gmra.mrb[0].mxu0 %v301
  %v495 = vpop.f32.mrb[0].mxu0
  %v496 = vadd.f32 0.0, %v495
  %v497 = vpop.f32.mrb[0].mxu0
  %498 = vmatprep.mubr.f32.mxu0 0.0
  %499 = vmatmul.mubr.f32.gmra.mrb[0].mxu0 %v302
  %v500 = vpop.f32.mrb[0].mxu0
  %v501 = vadd.f32 0.0, %v500
  %v502 = vpop.f32.mrb[0].mxu0
  %503 = vmatprep.mubr.f32.mxu0 0.0
  %504 = vmatmul.mubr.f32.gmra.mrb[0].mxu0 %v303
  %v505 = vpop.f32.mrb[0].mxu0
  %v506 = vadd.f32 0.0, %v505
  %v507 = vpop.f32.mrb[0].mxu0
  %508 = vmatprep.mubr.f32.mxu0 0.0
  %509 = vmatmul.mubr.f32.gmra.mrb[0].mxu0 %v304
  %v510 = vpop.f32.mrb[0].mxu0
  %v511 = vadd.f32 0.0, %v510
  %v512 = vpop.f32.mrb[0].mxu0
  %513 = vmatprep.mubr.f32.mxu0 0.0
  %514 = vmatmul.mubr.f32.gmra.mrb[0].mxu0 %v305
  %v515 = vpop.f32.mrb[0].mxu0
  %v516 = vadd.f32 0.0, %v515
  %v517 = vpop.f32.mrb[0].mxu0
  %518 = vmatprep.mubr.f32.mxu0 0.0
  %519 = vmatmul.mubr.f32.gmra.mrb[0].mxu0 %v306
  %v520 = vpop.f32.mrb[0].mxu0
  %v521 = vadd.f32 0.0, %v520
  %v522 = vpop.f32.mrb[0].mxu0
  %523 = vmatprep.mubr.f32.mxu0 0.0
  %524 = vmatmul.mubr.f32.gmra.mrb[0].mxu0 %v307
  %v525 = vpop.f32.mrb[0].mxu0
  %v526 = vadd.f32 0.0, %v525
  %v527 = vpop.f32.mrb[0].mxu0
  %528 = vmatprep.mubr.f32.mxu0 0.0
  %529 = vmatmul.mubr.f32.gmra.mrb[0].mxu0 %v308
  %v530 = vpop.f32.mrb[0].mxu0
  %v531 = vadd.f32 0.0, %v530
  %v532 = vpop.f32.mrb[0].mxu0
  %533 = vmatprep.mubr.f32.mxu0 0.0
  %534 = vmatmul.mubr.f32.gmra.mrb[0].mxu0 %v309
  %v535 = vpop.f32.mrb[0].mxu0
  %v536 = vadd.f32 0.0, %v535
  %v537 = vpop.f32.mrb[0].mxu0
  %538 = vmatprep.mubr.f32.mxu0 0.0
  %539 = vmatmul.mubr.f32.gmra.mrb[0].mxu0 %v310
  %v540 = vpop.f32.mrb[0].mxu0
  %v541 = vadd.f32 0.0, %v540
  %v542 = vpop.f32.mrb[0].mxu0
  %543 = vmatprep.mubr.f32.mxu0 0.0
  %544 = vmatmul.mubr.f32.gmra.mrb[0].mxu0 %v311
  %v545 = vpop.f32.mrb[0].mxu0
  %v546 = vadd.f32 0.0, %v545
  %v547 = vpop.f32.mrb[0].mxu0
  %548 = vmatprep.mubr.f32.mxu0 0.0
  %549 = vmatmul.mubr.f32.gmra.mrb[0].mxu0 %v312
  %v550 = vpop.f32.mrb[0].mxu0
  %v551 = vadd.f32 0.0, %v550
  %v552 = vpop.f32.mrb[0].mxu0
  %553 = vmatprep.mubr.f32.mxu0 0.0
  %554 = vmatmul.mubr.f32.gmra.mrb[0].mxu0 %v313
  %v555 = vpop.f32.mrb[0].mxu0
  %v556 = vadd.f32 0.0, %v555
  %v557 = vpop.f32.mrb[0].mxu0
  %558 = vmatprep.mubr.f32.mxu0 0.0
  %559 = vmatmul.mubr.f32.gmra.mrb[0].mxu0 %v314
  %v560 = vpop.f32.mrb[0].mxu0
  %v561 = vadd.f32 0.0, %v560
  %v562 = vpop.f32.mrb[0].mxu0
  %563 = vmatprep.mubr.f32.mxu0 0.0
  %564 = vmatmul.mubr.f32.gmra.mrb[0].mxu0 %v315
  %v565 = vpop.f32.mrb[0].mxu0
  %v566 = vadd.f32 0.0, %v565
  %v567 = vpop.f32.mrb[0].mxu0
  %568 = vmatprep.mubr.f32.mxu0 0.0
  %569 = vmatmul.mubr.f32.gmra.mrb[0].mxu0 %v316
  %v570 = vpop.f32.mrb[0].mxu0
  %v571 = vadd.f32 0.0, %v570
  %v572 = vpop.f32.mrb[0].mxu0
  %573 = vmatprep.mubr.f32.mxu0 0.0
  %574 = vmatmul.mubr.f32.gmra.mrb[0].mxu0 %v317
  %v575 = vpop.f32.mrb[0].mxu0
  %v576 = vadd.f32 0.0, %v575
  %v577 = vpop.f32.mrb[0].mxu0
  %578 = vmatprep.mubr.f32.mxu0 0.0
  %579 = vmatmul.mubr.f32.gmra.mrb[0].mxu0 %v318
  %v580 = vpop.f32.mrb[0].mxu0
  %v581 = vadd.f32 0.0, %v580
  %v582 = vpop.f32.mrb[0].mxu0
  %583 = vmatprep.mubr.f32.mxu0 0.0
  %584 = vmatmul.mubr.f32.gmra.mrb[0].mxu0 %v319
  %v585 = vpop.f32.mrb[0].mxu0
  %v586 = vadd.f32 0.0, %v585
  %v587 = vpop.f32.mrb[0].mxu0
  %588 = vmatprep.mubr.f32.mxu0 0.0
  %589 = vmatmul.mubr.f32.gmra.mrb[0].mxu0 %v320
  %v590 = vpop.f32.mrb[0].mxu0
  %v591 = vadd.f32 0.0, %v590
  %v592 = vpop.f32.mrb[0].mxu0
  %593 = vmatprep.mubr.f32.mxu0 0.0
  %594 = vmatmul.mubr.f32.gmra.mrb[0].mxu0 %v321
  %v595 = vpop.f32.mrb[0].mxu0
  %v596 = vadd.f32 0.0, %v595
  %v597 = vpop.f32.mrb[0].mxu0
  %598 = vmatprep.mubr.f32.mxu0 0.0
  %599 = vmatmul.mubr.f32.gmra.mrb[0].mxu0 %v322
  %v600 = vpop.f32.mrb[0].mxu0
  %v601 = vadd.f32 0.0, %v600
  %v602 = vpop.f32.mrb[0].mxu0
  %603 = vmatprep.mubr.f32.mxu0 0.0
  %604 = vmatmul.mubr.f32.gmra.mrb[0].mxu0 %v323
  %v605 = vpop.f32.mrb[0].mxu0
  %v606 = vadd.f32 0.0, %v605
  %v607 = vpop.f32.mrb[0].mxu0
  %608 = vmatprep.mubr.f32.mxu0 0.0
  %609 = vmatmul.mubr.f32.gmra.mrb[0].mxu0 %v324
  %v610 = vpop.f32.mrb[0].mxu0
  %v611 = vadd.f32 0.0, %v610
  %v612 = vpop.f32.mrb[0].mxu0
  %613 = vmatprep.mubr.f32.mxu0 0.0
  %614 = vmatmul.mubr.f32.gmra.mrb[0].mxu0 %v325
  %v615 = vpop.f32.mrb[0].mxu0
  %v616 = vadd.f32 0.0, %v615
  %v617 = vpop.f32.mrb[0].mxu0
  %618 = vmatprep.mubr.f32.mxu0 0.0
  %619 = vmatmul.mubr.f32.gmra.mrb[0].mxu0 %v326
  %v620 = vpop.f32.mrb[0].mxu0
  %v621 = vadd.f32 0.0, %v620
  %v622 = vpop.f32.mrb[0].mxu0
  %623 = vmatprep.mubr.f32.mxu0 0.0
  %624 = vmatmul.mubr.f32.gmra.mrb[0].mxu0 %v327
  %v625 = vpop.f32.mrb[0].mxu0
  %v626 = vadd.f32 0.0, %v625
  %v627 = vpop.f32.mrb[0].mxu0
  %628 = vmatprep.mubr.f32.mxu0 0.0
  %629 = vmatmul.mubr.f32.gmra.mrb[0].mxu0 %v328
  %v630 = vpop.f32.mrb[0].mxu0
  %v631 = vadd.f32 0.0, %v630
  %v632 = vpop.f32.mrb[0].mxu0
  %633 = vmatprep.mubr.f32.mxu0 0.0
  %634 = vmatmul.mubr.f32.gmra.mrb[0].mxu0 %v329
  %v635 = vpop.f32.mrb[0].mxu0
  %v636 = vadd.f32 0.0, %v635
  %v637 = vpop.f32.mrb[0].mxu0
  %638 = vmatprep.mubr.f32.mxu0 0.0
  %639 = vmatmul.mubr.f32.gmra.mrb[0].mxu0 %v330
  %v640 = vpop.f32.mrb[0].mxu0
  %v641 = vadd.f32 0.0, %v640
  %v642 = vpop.f32.mrb[0].mxu0
  %643 = vmatprep.mubr.f32.mxu0 0.0
  %644 = vmatmul.mubr.f32.gmra.mrb[0].mxu0 %v331
  %v645 = vpop.f32.mrb[0].mxu0
  %v646 = vadd.f32 0.0, %v645
  %v647 = vpop.f32.mrb[0].mxu0
  %648 = vmatprep.mubr.f32.mxu0 0.0
  %649 = vmatmul.mubr.f32.gmra.mrb[0].mxu0 %v332
  %v650 = vpop.f32.mrb[0].mxu0
  %v651 = vadd.f32 0.0, %v650
  %v652 = vpop.f32.mrb[0].mxu0
  %653 = vmatprep.mubr.f32.mxu0 0.0
  %654 = vmatmul.mubr.f32.gmra.mrb[0].mxu0 %v333
  %v655 = vpop.f32.mrb[0].mxu0
  %v656 = vadd.f32 0.0, %v655
  %v657 = vpop.f32.mrb[0].mxu0
  %658 = vmatprep.mubr.f32.mxu0 0.0
  %659 = vmatmul.mubr.f32.gmra.mrb[0].mxu0 %v334
  %v660 = vpop.f32.mrb[0].mxu0
  %v661 = vadd.f32 0.0, %v660
  %v662 = vpop.f32.mrb[0].mxu0
  %663 = vmatprep.mubr.f32.mxu0 0.0
  %664 = vmatmul.mubr.f32.gmra.mrb[0].mxu0 %v335
  %v665 = vpop.f32.mrb[0].mxu0
  %v666 = vadd.f32 0.0, %v665
  %v667 = vpop.f32.mrb[0].mxu0
  %668 = vmatprep.mubr.f32.mxu0 0.0
  %669 = vmatmul.mubr.f32.gmra.mrb[0].mxu0 %v336
  %v670 = vpop.f32.mrb[0].mxu0
  %v671 = vadd.f32 0.0, %v670
  %v672 = vpop.f32.mrb[0].mxu0
  %673 = vmatprep.mubr.f32.mxu0 0.0
  %674 = vmatmul.mubr.f32.gmra.mrb[0].mxu0 %v337
  %v675 = vpop.f32.mrb[0].mxu0
  %v676 = vadd.f32 0.0, %v675
  %v677 = vpop.f32.mrb[0].mxu0
  %678 = vmatprep.mubr.f32.mxu0 0.0
  %679 = vmatmul.mubr.f32.gmra.mrb[0].mxu0 %v338
  %v680 = vpop.f32.mrb[0].mxu0
  %v681 = vadd.f32 0.0, %v680
  %v682 = vpop.f32.mrb[0].mxu0
  %683 = vmatprep.mubr.f32.mxu0 0.0
  %684 = vmatmul.mubr.f32.gmra.mrb[0].mxu0 %v339
  %v685 = vpop.f32.mrb[0].mxu0
  %v686 = vadd.f32 0.0, %v685
  %v687 = vpop.f32.mrb[0].mxu0
  %688 = vmatprep.mubr.f32.mxu0 0.0
  %689 = vmatmul.mubr.f32.gmra.mrb[0].mxu0 %v340
  %v690 = vpop.f32.mrb[0].mxu0
  %v691 = vadd.f32 0.0, %v690
  %v692 = vpop.f32.mrb[0].mxu0
  %693 = vmatprep.mubr.f32.mxu0 0.0
  %694 = vmatmul.mubr.f32.gmra.mrb[0].mxu0 %v341
  %v695 = vpop.f32.mrb[0].mxu0
  %v696 = vadd.f32 0.0, %v695
  %v697 = vpop.f32.mrb[0].mxu0
  %698 = vmatprep.mubr.f32.mxu0 0.0
  %699 = vmatmul.mubr.f32.gmra.mrb[0].mxu0 %v342
  %v700 = vpop.f32.mrb[0].mxu0
  %v701 = vadd.f32 0.0, %v700
  %v702 = vpop.f32.mrb[0].mxu0
  %703 = vmatprep.mubr.f32.mxu0 0.0
  %704 = vmatmul.mubr.f32.gmra.mrb[0].mxu0 %v343
  %v705 = vpop.f32.mrb[0].mxu0
  %v706 = vadd.f32 0.0, %v705
  %v707 = vpop.f32.mrb[0].mxu0
  %708 = vmatprep.mubr.f32.mxu0 0.0
  %709 = vmatmul.mubr.f32.gmra.mrb[0].mxu0 %v344
  %v710 = vpop.f32.mrb[0].mxu0
  %v711 = vadd.f32 0.0, %v710
  %v712 = vpop.f32.mrb[0].mxu0
  %713 = vmatprep.mubr.f32.mxu0 0.0
  %714 = vmatmul.mubr.f32.gmra.mrb[0].mxu0 %v345
  %v715 = vpop.f32.mrb[0].mxu0
  %v716 = vadd.f32 0.0, %v715
  %v717 = vpop.f32.mrb[0].mxu0
  %718 = vmatprep.mubr.f32.mxu0 0.0
  %719 = vmatmul.mubr.f32.gmra.mrb[0].mxu0 %v346
  %v720 = vpop.f32.mrb[0].mxu0
  %v721 = vadd.f32 0.0, %v720
  %v722 = vpop.f32.mrb[0].mxu0
  %723 = vmatprep.mubr.f32.mxu0 0.0
  %724 = vmatmul.mubr.f32.gmra.mrb[0].mxu0 %v347
  %v725 = vpop.f32.mrb[0].mxu0
  %v726 = vadd.f32 0.0, %v725
  %v727 = vpop.f32.mrb[0].mxu0
  %728 = vmatprep.mubr.f32.mxu0 0.0
  %729 = vmatmul.mubr.f32.gmra.mrb[0].mxu0 %v348
  %v730 = vpop.f32.mrb[0].mxu0
  %v731 = vadd.f32 0.0, %v730
  %v732 = vpop.f32.mrb[0].mxu0
  %733 = vmatprep.mubr.f32.mxu0 0.0
  %734 = vmatmul.mubr.f32.gmra.mrb[0].mxu0 %v349
  %v735 = vpop.f32.mrb[0].mxu0
  %v736 = vadd.f32 0.0, %v735
  %v737 = vpop.f32.mrb[0].mxu0
  %738 = vmatprep.mubr.f32.mxu0 0.0
  %739 = vmatmul.mubr.f32.gmra.mrb[0].mxu0 %v350
  %v740 = vpop.f32.mrb[0].mxu0
  %v741 = vadd.f32 0.0, %v740
  %v742 = vpop.f32.mrb[0].mxu0
  %743 = vmatprep.mubr.f32.mxu0 0.0
  %744 = vmatmul.mubr.f32.gmra.mrb[0].mxu0 %v351
  %v745 = vpop.f32.mrb[0].mxu0
  %v746 = vadd.f32 0.0, %v745
  %v747 = vpop.f32.mrb[0].mxu0
  %748 = vmatprep.mubr.f32.mxu0 0.0
  %749 = vmatmul.mubr.f32.gmra.mrb[0].mxu0 %v352
  %v750 = vpop.f32.mrb[0].mxu0
  %v751 = vadd.f32 0.0, %v750
  %v752 = vpop.f32.mrb[0].mxu0
  %753 = vdwg.mxu0
  %754 = vst [vmem:[%s4] sm:$0xff] %v436
  %755 = vst [vmem:[%s4 + $0x8] sm:$0xff] %v441
  %756 = vst [vmem:[%s4 + $0x10] sm:$0xff] %v446
  %757 = vst [vmem:[%s4 + $0x18] sm:$0xff] %v451
  %758 = vst [vmem:[%s4 + $0x20] sm:$0xff] %v456
  %759 = vst [vmem:[%s4 + $0x28] sm:$0xff] %v461
  %760 = vst [vmem:[%s4 + $0x30] sm:$0xff] %v466
  %761 = vst [vmem:[%s4 + $0x38] sm:$0xff] %v471
  %762 = vst [vmem:[%s4 + $0x40] sm:$0xff] %v476
  %763 = vst [vmem:[%s4 + $0x48] sm:$0xff] %v481
  %764 = vst [vmem:[%s4 + $0x50] sm:$0xff] %v486
  %765 = vst [vmem:[%s4 + $0x58] sm:$0xff] %v491
  %766 = vst [vmem:[%s4 + $0x60] sm:$0xff] %v496
  %767 = vst [vmem:[%s4 + $0x68] sm:$0xff] %v501
  %768 = vst [vmem:[%s4 + $0x70] sm:$0xff] %v506
  %769 = vst [vmem:[%s4 + $0x78] sm:$0xff] %v511
  %770 = vst [vmem:[%s4 + $0x80] sm:$0xff] %v516
  %771 = vst [vmem:[%s4 + $0x88] sm:$0xff] %v521
  %772 = vst [vmem:[%s4 + $0x90] sm:$0xff] %v526
  %773 = vst [vmem:[%s4 + $0x98] sm:$0xff] %v531
  %774 = vst [vmem:[%s4 + $0xa0] sm:$0xff] %v536
  %775 = vst [vmem:[%s4 + $0xa8] sm:$0xff] %v541
  %776 = vst [vmem:[%s4 + $0xb0] sm:$0xff] %v546
  %777 = vst [vmem:[%s4 + $0xb8] sm:$0xff] %v551
  %778 = vst [vmem:[%s4 + $0xc0] sm:$0xff] %v556
  %779 = vst [vmem:[%s4 + $0xc8] sm:$0xff] %v561
  %780 = vst [vmem:[%s4 + $0xd0] sm:$0xff] %v566
  %781 = vst [vmem:[%s4 + $0xd8] sm:$0xff] %v571
  %782 = vst [vmem:[%s4 + $0xe0] sm:$0xff] %v576
  %783 = vst [vmem:[%s4 + $0xe8] sm:$0xff] %v581
  %784 = vst [vmem:[%s4 + $0xf0] sm:$0xff] %v586
  %785 = vst [vmem:[%s4 + $0xf8] sm:$0xff] %v591
  %786 = vst [vmem:[%s4 + $0x100] sm:$0xff] %v596
  %787 = vst [vmem:[%s4 + $0x108] sm:$0xff] %v601
  %788 = vst [vmem:[%s4 + $0x110] sm:$0xff] %v606
  %789 = vst [vmem:[%s4 + $0x118] sm:$0xff] %v611
  %790 = vst [vmem:[%s4 + $0x120] sm:$0xff] %v616
  %791 = vst [vmem:[%s4 + $0x128] sm:$0xff] %v621
  %792 = vst [vmem:[%s4 + $0x130] sm:$0xff] %v626
  %793 = vst [vmem:[%s4 + $0x138] sm:$0xff] %v631
  %794 = vst [vmem:[%s4 + $0x140] sm:$0xff] %v636
  %795 = vst [vmem:[%s4 + $0x148] sm:$0xff] %v641
  %796 = vst [vmem:[%s4 + $0x150] sm:$0xff] %v646
  %797 = vst [vmem:[%s4 + $0x158] sm:$0xff] %v651
  %798 = vst [vmem:[%s4 + $0x160] sm:$0xff] %v656
  %799 = vst [vmem:[%s4 + $0x168] sm:$0xff] %v661
  %800 = vst [vmem:[%s4 + $0x170] sm:$0xff] %v666
  %801 = vst [vmem:[%s4 + $0x178] sm:$0xff] %v671
  %802 = vst [vmem:[%s4 + $0x180] sm:$0xff] %v676
  %803 = vst [vmem:[%s4 + $0x188] sm:$0xff] %v681
  %804 = vst [vmem:[%s4 + $0x190] sm:$0xff] %v686
  %805 = vst [vmem:[%s4 + $0x198] sm:$0xff] %v691
  %806 = vst [vmem:[%s4 + $0x1a0] sm:$0xff] %v696
  %807 = vst [vmem:[%s4 + $0x1a8] sm:$0xff] %v701
  %808 = vst [vmem:[%s4 + $0x1b0] sm:$0xff] %v706
  %809 = vst [vmem:[%s4 + $0x1b8] sm:$0xff] %v711
  %810 = vst [vmem:[%s4 + $0x1c0] sm:$0xff] %v716
  %811 = vst [vmem:[%s4 + $0x1c8] sm:$0xff] %v721
  %812 = vst [vmem:[%s4 + $0x1d0] sm:$0xff] %v726
  %813 = vst [vmem:[%s4 + $0x1d8] sm:$0xff] %v731
  %814 = vst [vmem:[%s4 + $0x1e0] sm:$0xff] %v736
  %815 = vst [vmem:[%s4 + $0x1e8] sm:$0xff] %v741
  %816 = vst [vmem:[%s4 + $0x1f0] sm:$0xff] %v746
  %817 = vst [vmem:[%s4 + $0x1f8] sm:$0xff] %v751
  %v818 = vadd.f32 %v436, %v441
  %v819 = vadd.f32 %v818, %v446
  %v820 = vadd.f32 %v819, %v451
  %v821 = vadd.f32 %v820, %v456
  %v822 = vadd.f32 %v821, %v461
  %v823 = vadd.f32 %v822, %v466
  %v824 = vadd.f32 %v823, %v471
  %v825 = vadd.f32 %v824, %v476
  %v826 = vadd.f32 %v825, %v481
  %v827 = vadd.f32 %v826, %v486
  %v828 = vadd.f32 %v827, %v491
  %v829 = vadd.f32 %v828, %v496
  %v830 = vadd.f32 %v829, %v501
  %v831 = vadd.f32 %v830, %v506
  %v832 = vadd.f32 %v831, %v511
  %v833 = vadd.f32 %v832, %v516
  %v834 = vadd.f32 %v833, %v521
  %v835 = vadd.f32 %v834, %v526
  %v836 = vadd.f32 %v835, %v531
  %v837 = vadd.f32 %v836, %v536
  %v838 = vadd.f32 %v837, %v541
  %v839 = vadd.f32 %v838, %v546
  %v840 = vadd.f32 %v839, %v551
  %v841 = vadd.f32 %v840, %v556
  %v842 = vadd.f32 %v841, %v561
  %v843 = vadd.f32 %v842, %v566
  %v844 = vadd.f32 %v843, %v571
  %v845 = vadd.f32 %v844, %v576
  %v846 = vadd.f32 %v845, %v581
  %v847 = vadd.f32 %v846, %v586
  %v848 = vadd.f32 %v847, %v591
  %v849 = vadd.f32 %v848, %v596
  %v850 = vadd.f32 %v849, %v601
  %v851 = vadd.f32 %v850, %v606
  %v852 = vadd.f32 %v851, %v611
  %v853 = vadd.f32 %v852, %v616
  %v854 = vadd.f32 %v853, %v621
  %v855 = vadd.f32 %v854, %v626
  %v856 = vadd.f32 %v855, %v631
  %v857 = vadd.f32 %v856, %v636
  %v858 = vadd.f32 %v857, %v641
  %v859 = vadd.f32 %v858, %v646
  %v860 = vadd.f32 %v859, %v651
  %v861 = vadd.f32 %v860, %v656
  %v862 = vadd.f32 %v861, %v661
  %v863 = vadd.f32 %v862, %v666
  %v864 = vadd.f32 %v863, %v671
  %v865 = vadd.f32 %v864, %v676
  %v866 = vadd.f32 %v865, %v681
  %v867 = vadd.f32 %v866, %v686
  %v868 = vadd.f32 %v867, %v691
  %v869 = vadd.f32 %v868, %v696
  %v870 = vadd.f32 %v869, %v701
  %v871 = vadd.f32 %v870, %v706
  %v872 = vadd.f32 %v871, %v711
  %v873 = vadd.f32 %v872, %v716
  %v874 = vadd.f32 %v873, %v721
  %v875 = vadd.f32 %v874, %v726
  %v876 = vadd.f32 %v875, %v731
  %v877 = vadd.f32 %v876, %v736
  %v878 = vadd.f32 %v877, %v741
  %v879 = vadd.f32 %v878, %v746
  %v880 = vadd.f32 %v879, %v751
  %v881 = vrot.slane %v880, 4
  %v882 = vadd.f32 %v880, %v881
  %v883 = vrot.slane %v882, 2
  %v884 = vadd.f32 %v882, %v883
  %v885 = vrot.slane %v884, 1
  %v886 = vadd.f32 %v884, %v885
  %887 = vst [vmem:[%s5] sm:$0x1] %v886
  %v888 = vmul.f32 %v436, %v436
  %v889 = vmul.f32 %v441, %v441
  %v890 = vmul.f32 %v446, %v446
  %v891 = vmul.f32 %v451, %v451
  %v892 = vmul.f32 %v456, %v456
  %v893 = vmul.f32 %v461, %v461
  %v894 = vmul.f32 %v466, %v466
  %v895 = vmul.f32 %v471, %v471
  %v896 = vmul.f32 %v476, %v476
  %v897 = vmul.f32 %v481, %v481
  %v898 = vmul.f32 %v486, %v486
  %v899 = vmul.f32 %v491, %v491
  %v900 = vmul.f32 %v496, %v496
  %v901 = vmul.f32 %v501, %v501
  %v902 = vmul.f32 %v506, %v506
  %v903 = vmul.f32 %v511, %v511
  %v904 = vmul.f32 %v516, %v516
  %v905 = vmul.f32 %v521, %v521
  %v906 = vmul.f32 %v526, %v526
  %v907 = vmul.f32 %v531, %v531
  %v908 = vmul.f32 %v536, %v536
  %v909 = vmul.f32 %v541, %v541
  %v910 = vmul.f32 %v546, %v546
  %v911 = vmul.f32 %v551, %v551
  %v912 = vmul.f32 %v556, %v556
  %v913 = vmul.f32 %v561, %v561
  %v914 = vmul.f32 %v566, %v566
  %v915 = vmul.f32 %v571, %v571
  %v916 = vmul.f32 %v576, %v576
  %v917 = vmul.f32 %v581, %v581
  %v918 = vmul.f32 %v586, %v586
  %v919 = vmul.f32 %v591, %v591
  %v920 = vmul.f32 %v596, %v596
  %v921 = vmul.f32 %v601, %v601
  %v922 = vmul.f32 %v606, %v606
  %v923 = vmul.f32 %v611, %v611
  %v924 = vmul.f32 %v616, %v616
  %v925 = vmul.f32 %v621, %v621
  %v926 = vmul.f32 %v626, %v626
  %v927 = vmul.f32 %v631, %v631
  %v928 = vmul.f32 %v636, %v636
  %v929 = vmul.f32 %v641, %v641
  %v930 = vmul.f32 %v646, %v646
  %v931 = vmul.f32 %v651, %v651
  %v932 = vmul.f32 %v656, %v656
  %v933 = vmul.f32 %v661, %v661
  %v934 = vmul.f32 %v666, %v666
  %v935 = vmul.f32 %v671, %v671
  %v936 = vmul.f32 %v676, %v676
  %v937 = vmul.f32 %v681, %v681
  %v938 = vmul.f32 %v686, %v686
  %v939 = vmul.f32 %v691, %v691
  %v940 = vmul.f32 %v696, %v696
  %v941 = vmul.f32 %v701, %v701
  %v942 = vmul.f32 %v706, %v706
  %v943 = vmul.f32 %v711, %v711
  %v944 = vmul.f32 %v716, %v716
  %v945 = vmul.f32 %v721, %v721
  %v946 = vmul.f32 %v726, %v726
  %v947 = vmul.f32 %v731, %v731
  %v948 = vmul.f32 %v736, %v736
  %v949 = vmul.f32 %v741, %v741
  %v950 = vmul.f32 %v746, %v746
  %v951 = vmul.f32 %v751, %v751
  %v952 = vadd.f32 %v888, %v889
  %v953 = vadd.f32 %v952, %v890
  %v954 = vadd.f32 %v953, %v891
  %v955 = vadd.f32 %v954, %v892
  %v956 = vadd.f32 %v955, %v893
  %v957 = vadd.f32 %v956, %v894
  %v958 = vadd.f32 %v957, %v895
  %v959 = vadd.f32 %v958, %v896
  %v960 = vadd.f32 %v959, %v897
  %v961 = vadd.f32 %v960, %v898
  %v962 = vadd.f32 %v961, %v899
  %v963 = vadd.f32 %v962, %v900
  %v964 = vadd.f32 %v963, %v901
  %v965 = vadd.f32 %v964, %v902
  %v966 = vadd.f32 %v965, %v903
  %v967 = vadd.f32 %v966, %v904
  %v968 = vadd.f32 %v967, %v905
  %v969 = vadd.f32 %v968, %v906
  %v970 = vadd.f32 %v969, %v907
  %v971 = vadd.f32 %v970, %v908
  %v972 = vadd.f32 %v971, %v909
  %v973 = vadd.f32 %v972, %v910
  %v974 = vadd.f32 %v973, %v911
  %v975 = vadd.f32 %v974, %v912
  %v976 = vadd.f32 %v975, %v913
  %v977 = vadd.f32 %v976, %v914
  %v978 = vadd.f32 %v977, %v915
  %v979 = vadd.f32 %v978, %v916
  %v980 = vadd.f32 %v979, %v917
  %v981 = vadd.f32 %v980, %v918
  %v982 = vadd.f32 %v981, %v919
  %v983 = vadd.f32 %v982, %v920
  %v984 = vadd.f32 %v983, %v921
  %v985 = vadd.f32 %v984, %v922
  %v986 = vadd.f32 %v985, %v923
  %v987 = vadd.f32 %v986, %v924
  %v988 = vadd.f32 %v987, %v925
  %v989 = vadd.f32 %v988, %v926
  %v990 = vadd.f32 %v989, %v927
  %v991 = vadd.f32 %v990, %v928
  %v992 = vadd.f32 %v991, %v929
  %v993 = vadd.f32 %v992, %v930
  %v994 = vadd.f32 %v993, %v931
  %v995 = vadd.f32 %v994, %v932
  %v996 = vadd.f32 %v995, %v933
  %v997 = vadd.f32 %v996, %v934
  %v998 = vadd.f32 %v997, %v935
  %v999 = vadd.f32 %v998, %v936
  %v1000 = vadd.f32 %v999, %v937
  %v1001 = vadd.f32 %v1000, %v938
  %v1002 = vadd.f32 %v1001, %v939
  %v1003 = vadd.f32 %v1002, %v940
  %v1004 = vadd.f32 %v1003, %v941
  %v1005 = vadd.f32 %v1004, %v942
  %v1006 = vadd.f32 %v1005, %v943
  %v1007 = vadd.f32 %v1006, %v944
  %v1008 = vadd.f32 %v1007, %v945
  %v1009 = vadd.f32 %v1008, %v946
  %v1010 = vadd.f32 %v1009, %v947
  %v1011 = vadd.f32 %v1010, %v948
  %v1012 = vadd.f32 %v1011, %v949
  %v1013 = vadd.f32 %v1012, %v950
  %v1014 = vadd.f32 %v1013, %v951
  %v1015 = vrot.slane %v1014, 4
  %v1016 = vadd.f32 %v1014, %v1015
  %v1017 = vrot.slane %v1016, 2
  %v1018 = vadd.f32 %v1016, %v1017
  %v1019 = vrot.slane %v1018, 1
  %v1020 = vadd.f32 %v1018, %v1019
  %1021 = vst [vmem:[%s5 + $0x1] sm:$0x1] %v1020
  // Predicated region
  $region18: #{linear_bottleneck_forward.6} parent=0 // pred_check
    _
  $region19: #{linear_bottleneck_forward.6} parent=0 // pred_check_branch
    %1023 = sbr.rel (0) target = $region21
  $region20: #{linear_bottleneck_forward.6} parent=0 // pred_region
    _
  $region21: #{linear_bottleneck_forward.6} parent=0 // pred_fallthru
    _
  // Predicated region
  $region22: #{linear_bottleneck_forward.6} parent=0 // pred_check
    _
  $region23: #{linear_bottleneck_forward.6} parent=0 // pred_check_branch
    %1025 = sbr.rel (0) target = $region25
  $region24: #{linear_bottleneck_forward.6} parent=0 // pred_region
    _
  $region25: #{linear_bottleneck_forward.6} parent=0 // pred_fallthru
    _
  // Predicated region
  $region26: #{linear_bottleneck_forward.6} parent=0 // pred_check
    _
  $region27: #{linear_bottleneck_forward.6} parent=0 // pred_check_branch
    %1027 = sbr.rel (0) target = $region29
  $region28: #{linear_bottleneck_forward.6} parent=0 // pred_region
    _
  $region29: #{linear_bottleneck_forward.6} parent=0 // pred_fallthru
    _
  // Predicated region
  $region30: #{linear_bottleneck_forward.6} parent=0 // pred_check
    _
  $region31: #{linear_bottleneck_forward.6} parent=0 // pred_check_branch
    %1029 = sbr.rel (0) target = $region33
  $region32: #{linear_bottleneck_forward.6} parent=0 // pred_region
    _
  $region33: #{linear_bottleneck_forward.6} parent=0 // pred_fallthru
    _

// kernel: linear_bottleneck_forward.5
$region0: #{linear_bottleneck_forward.5}
  #allocation0 [shape = 'u32[]', space=smem, size = 0x4, offset = 0x4, fixed_abs, tag = 'smem constant byte address 0x4 - core index']
  #allocation1 [shape = 'u32[144,128]{1,0:T(1,128)}', space=vmem, size = 0x12000, scoped, tag = 'internal scratch']
  #allocation2 [shape = 'f32[18,18,128]{2,1,0:T(8,128)}', space=vmem, size = 0x36000, scoped, tag = 'scratch operand']
  %s0 = inlined_call_operand.vmem [shape: f32[2,16,16,128], index: 0, kind: input, shape index: {}]
  %s1 = inlined_call_operand.vmem [shape: f32[1,128], index: 1, kind: input, shape index: {}]
  %s2 = inlined_call_operand.vmem [shape: f32[1,128], index: 2, kind: input, shape index: {}]
  %s3 = inlined_call_operand.vmem [shape: f32[9,128], index: 3, kind: input, shape index: {}]
  %s4 = inlined_call_operand.vmem [shape: f32[2,16,16,128], index: 4, kind: output, shape index: {0}]
  %s5 = inlined_call_operand.vmem [shape: f32[2,1,2,128], index: 5, kind: output, shape index: {1}]
  %6 = xla_tuple %s4, %s5
  %s7 = sld [smem:[#allocation0]]
  $region57: #{linear_bottleneck_forward.5} parent=0
    _
  %s9 = ssub.s32 1, %s7
  %s10 = scalar_select 0, %s9, %s7
  loop: start=0, step=1, limit=4
  $region2: #{linear_bottleneck_forward.5} parent=0 // loop_pre_header
    _
  $region3: #{linear_bottleneck_forward.5} parent=0 // loop_header
    %s12 = sphi 0, %s16
    %p13 = scmp.ge.s32.totalorder %s12, 4
    %s19 = sphi 0, %s31
    %s20 = sphi 0, %s27
    %s21 = sphi 0, %s19
    %s22 = sphi 0, %s20
    %s23 = sphi 0, %s21
    %s24 = sphi 0, %s22
    %s36 = sphi 0, %s38
    %s39 = sphi 0, %s36
    %s40 = sphi 0, %s39
    %s56 = sphi 0, %s40
    %s62 = sphi 0, %s64
    %s65 = sphi 0, %s62
    %s66 = sphi 0, %s65
    %s82 = sphi 0, %s66
    %s88 = sphi 0, %s90
    %s91 = sphi 0, %s88
    %s92 = sphi 0, %s91
    %s108 = sphi 0, %s92
    %s114 = sphi 0, %s116
    %s117 = sphi 0, %s114
    %s118 = sphi 0, %s117
    %s134 = sphi 0, %s118
    %s142 = sphi 0, %s144
    %s145 = sphi 0, %s142
    %s146 = sphi 0, %s145
    %s162 = sphi 0, %s146
    %s170 = sphi 0, %s172
    %s173 = sphi 0, %s170
    %s174 = sphi 0, %s173
    %s190 = sphi 0, %s174
  $region4: #{linear_bottleneck_forward.5} parent=0 // loop_header_branch
    %15 = sbr.rel (%p13) target = $region8
  $region5: #{linear_bottleneck_forward.5} parent=0 // loop_body
    %s17 = ssub.s32 %s12, 1
    %s18 = ssub.s32 %s12, 2
    %s25 = sadd.s32 1, %s20
    %p26 = scmp.ge.s32.totalorder %s25, 1
    %s27 = scalar_select %p26, 0, %s25
    %s28 = sadd.s32 1, %s19
    %s29 = scalar_select %p26, %s28, %s19
    %p30 = scmp.ge.s32.totalorder %s29, 2
    %s31 = scalar_select %p30, 0, %s29
    %s32 = ssub.s32 %s19, %s31
    %s33 = ssub.s32 %s20, %s27
    %s34 = sor.u32 %s32, %s33
    %p35 = scmp.eq.s32.totalorder %s34, 0
    %s37 = sadd.s32 %s36, 1
    %s38 = scalar_select %p35, %s36, %s37
    %p41 = pneg %p35
    %p42 = scmp.eq.s32.totalorder %s12, 1
    %p43 = por %p41, %p42
    %p44 = scmp.ne.s32.totalorder %s36, %s39
    %p45 = scmp.eq.s32.totalorder %s12, 0
    %p46 = por %p44, %p45
    %p47 = scmp.ne.s32.totalorder %s36, %s39
    %p48 = scmp.eq.s32.totalorder %s17, 1
    %p49 = por %p47, %p48
    %p50 = scmp.ne.s32.totalorder %s39, %s40
    %p51 = scmp.eq.s32.totalorder %s17, 0
    %p52 = por %p50, %p51
    %p53 = scmp.ne.s32.totalorder %s39, %s40
    %p54 = scmp.eq.s32.totalorder %s18, 1
    %p55 = por %p53, %p54
    %p57 = scmp.ne.s32.totalorder %s40, %s56
    %p58 = scmp.eq.s32.totalorder %s18, 0
    %p59 = por %p57, %p58
    %s60 = ssub.s32 %s20, %s27
    %p61 = scmp.eq.s32.totalorder %s60, 0
    %s63 = sadd.s32 %s62, 1
    %s64 = scalar_select %p61, %s62, %s63
    %p67 = pneg %p61
    %p68 = scmp.eq.s32.totalorder %s12, 1
    %p69 = por %p67, %p68
    %p70 = scmp.ne.s32.totalorder %s62, %s65
    %p71 = scmp.eq.s32.totalorder %s12, 0
    %p72 = por %p70, %p71
    %p73 = scmp.ne.s32.totalorder %s62, %s65
    %p74 = scmp.eq.s32.totalorder %s17, 1
    %p75 = por %p73, %p74
    %p76 = scmp.ne.s32.totalorder %s65, %s66
    %p77 = scmp.eq.s32.totalorder %s17, 0
    %p78 = por %p76, %p77
    %p79 = scmp.ne.s32.totalorder %s65, %s66
    %p80 = scmp.eq.s32.totalorder %s18, 1
    %p81 = por %p79, %p80
    %p83 = scmp.ne.s32.totalorder %s66, %s82
    %p84 = scmp.eq.s32.totalorder %s18, 0
    %p85 = por %p83, %p84
    %s86 = ssub.s32 %s20, %s27
    %p87 = scmp.eq.s32.totalorder %s86, 0
    %s89 = sadd.s32 %s88, 1
    %s90 = scalar_select %p87, %s88, %s89
    %p93 = pneg %p87
    %p94 = scmp.eq.s32.totalorder %s12, 1
    %p95 = por %p93, %p94
    %p96 = scmp.ne.s32.totalorder %s88, %s91
    %p97 = scmp.eq.s32.totalorder %s12, 0
    %p98 = por %p96, %p97
    %p99 = scmp.ne.s32.totalorder %s88, %s91
    %p100 = scmp.eq.s32.totalorder %s17, 1
    %p101 = por %p99, %p100
    %p102 = scmp.ne.s32.totalorder %s91, %s92
    %p103 = scmp.eq.s32.totalorder %s17, 0
    %p104 = por %p102, %p103
    %p105 = scmp.ne.s32.totalorder %s91, %s92
    %p106 = scmp.eq.s32.totalorder %s18, 1
    %p107 = por %p105, %p106
    %p109 = scmp.ne.s32.totalorder %s92, %s108
    %p110 = scmp.eq.s32.totalorder %s18, 0
    %p111 = por %p109, %p110
    %s112 = ssub.s32 %s20, %s27
    %p113 = scmp.eq.s32.totalorder %s112, 0
    %s115 = sadd.s32 %s114, 1
    %s116 = scalar_select %p113, %s114, %s115
    %p119 = pneg %p113
    %p120 = scmp.eq.s32.totalorder %s12, 1
    %p121 = por %p119, %p120
    %p122 = scmp.ne.s32.totalorder %s114, %s117
    %p123 = scmp.eq.s32.totalorder %s12, 0
    %p124 = por %p122, %p123
    %p125 = scmp.ne.s32.totalorder %s114, %s117
    %p126 = scmp.eq.s32.totalorder %s17, 1
    %p127 = por %p125, %p126
    %p128 = scmp.ne.s32.totalorder %s117, %s118
    %p129 = scmp.eq.s32.totalorder %s17, 0
    %p130 = por %p128, %p129
    %p131 = scmp.ne.s32.totalorder %s117, %s118
    %p132 = scmp.eq.s32.totalorder %s18, 1
    %p133 = por %p131, %p132
    %p135 = scmp.ne.s32.totalorder %s118, %s134
    %p136 = scmp.eq.s32.totalorder %s18, 0
    %p137 = por %p135, %p136
    %s138 = ssub.s32 %s19, %s31
    %s139 = ssub.s32 %s20, %s27
    %s140 = sor.u32 %s138, %s139
    %p141 = scmp.eq.s32.totalorder %s140, 0
    %s143 = sadd.s32 %s142, 1
    %s144 = scalar_select %p141, %s142, %s143
    %p147 = pneg %p141
    %p148 = scmp.eq.s32.totalorder %s12, 1
    %p149 = por %p147, %p148
    %p150 = scmp.ne.s32.totalorder %s142, %s145
    %p151 = scmp.eq.s32.totalorder %s12, 0
    %p152 = por %p150, %p151
    %p153 = scmp.ne.s32.totalorder %s142, %s145
    %p154 = scmp.eq.s32.totalorder %s17, 1
    %p155 = por %p153, %p154
    %p156 = scmp.ne.s32.totalorder %s145, %s146
    %p157 = scmp.eq.s32.totalorder %s17, 0
    %p158 = por %p156, %p157
    %p159 = scmp.ne.s32.totalorder %s145, %s146
    %p160 = scmp.eq.s32.totalorder %s18, 1
    %p161 = por %p159, %p160
    %p163 = scmp.ne.s32.totalorder %s146, %s162
    %p164 = scmp.eq.s32.totalorder %s18, 0
    %p165 = por %p163, %p164
    %s166 = ssub.s32 %s19, %s31
    %s167 = ssub.s32 %s20, %s27
    %s168 = sor.u32 %s166, %s167
    %p169 = scmp.eq.s32.totalorder %s168, 0
    %s171 = sadd.s32 %s170, 1
    %s172 = scalar_select %p169, %s170, %s171
    %p175 = pneg %p169
    %p176 = scmp.eq.s32.totalorder %s12, 1
    %p177 = por %p175, %p176
    %p178 = scmp.ne.s32.totalorder %s170, %s173
    %p179 = scmp.eq.s32.totalorder %s12, 0
    %p180 = por %p178, %p179
    %p181 = scmp.ne.s32.totalorder %s170, %s173
    %p182 = scmp.eq.s32.totalorder %s17, 1
    %p183 = por %p181, %p182
    %p184 = scmp.ne.s32.totalorder %s173, %s174
    %p185 = scmp.eq.s32.totalorder %s17, 0
    %p186 = por %p184, %p185
    %p187 = scmp.ne.s32.totalorder %s173, %s174
    %p188 = scmp.eq.s32.totalorder %s18, 1
    %p189 = por %p187, %p188
    %p191 = scmp.ne.s32.totalorder %s174, %s190
    %p192 = scmp.eq.s32.totalorder %s18, 0
    %p193 = por %p191, %p192
    %p194 = scmp.le.s32.totalorder 1, %s12
    %p195 = scmp.lt.s32.totalorder %s12, 3
    %p196 = pnand %p194, %p195
    %p197 = pneg %p196
    // Predicated region
    $region9: #{linear_bottleneck_forward.5} parent=5 // pred_check
      _
    $region10: #{linear_bottleneck_forward.5} parent=5 // pred_check_branch
      %199 = sbr.rel (%p196) target = $region12
    $region11: #{linear_bottleneck_forward.5} parent=5 // pred_region
      %s200 = ssub.s32 %s12, 1
      // Predicated region
      $region13: #{linear_bottleneck_forward.5} parent=11 // pred_check
        %p201 = pneg %p78
      $region14: #{linear_bottleneck_forward.5} parent=11 // pred_check_branch
        %203 = sbr.rel (%p201) target = $region16
      $region15: #{linear_bottleneck_forward.5} parent=11 // pred_region
        %p204 = scmp.lt.s32.totalorder %s22, 0
        %s205 = scalar_select %p204, %s22, 0
        %s206 = scalar_lea.vmem %s1, %s205
      $region16: #{linear_bottleneck_forward.5} parent=11 // pred_fallthru
        _
      // Predicated region
      $region17: #{linear_bottleneck_forward.5} parent=11 // pred_check
        %p207 = pneg %p104
      $region18: #{linear_bottleneck_forward.5} parent=11 // pred_check_branch
        %209 = sbr.rel (%p207) target = $region20
      $region19: #{linear_bottleneck_forward.5} parent=11 // pred_region
        %p210 = scmp.lt.s32.totalorder %s22, 0
        %s211 = scalar_select %p210, %s22, 0
        %s212 = scalar_lea.vmem %s2, %s211
      $region20: #{linear_bottleneck_forward.5} parent=11 // pred_fallthru
        _
      // Predicated region
      $region21: #{linear_bottleneck_forward.5} parent=11 // pred_check
        %p213 = pneg %p130
      $region22: #{linear_bottleneck_forward.5} parent=11 // pred_check_branch
        %215 = sbr.rel (%p213) target = $region24
      $region23: #{linear_bottleneck_forward.5} parent=11 // pred_region
        %p216 = scmp.lt.s32.totalorder %s22, 0
        %s217 = scalar_select %p216, %s22, 0
        %s218 = smul.addr %s217, 8
        %s219 = scalar_lea.vmem %s3, %s218
      $region24: #{linear_bottleneck_forward.5} parent=11 // pred_fallthru
        _
    $region12: #{linear_bottleneck_forward.5} parent=5 // pred_fallthru
      _
    %p220 = scmp.lt.s32.totalorder %s12, 2
    // Predicated region
    $region25: #{linear_bottleneck_forward.5} parent=5 // pred_check
      %p221 = pneg %p220
    $region26: #{linear_bottleneck_forward.5} parent=5 // pred_check_branch
      %223 = sbr.rel (%p221) target = $region28
    $region27: #{linear_bottleneck_forward.5} parent=5 // pred_region
      // Predicated region
      $region29: #{linear_bottleneck_forward.5} parent=27 // pred_check
        %p224 = pneg %p46
      $region30: #{linear_bottleneck_forward.5} parent=27 // pred_check_branch
        %226 = sbr.rel (%p224) target = $region32
      $region31: #{linear_bottleneck_forward.5} parent=27 // pred_region
        %p227 = scmp.lt.s32.totalorder %s19, 1
        %s228 = scalar_select %p227, %s19, 1
        %p229 = scmp.lt.s32.totalorder %s20, 0
        %s230 = scalar_select %p229, %s20, 0
        %s231 = smul.addr %s228, 32
        %s232 = sadd.s32 %s230, %s231
        %s233 = smul.addr %s232, 8
        %s234 = scalar_lea.vmem %s0, %s233
      $region32: #{linear_bottleneck_forward.5} parent=27 // pred_fallthru
        _
    $region28: #{linear_bottleneck_forward.5} parent=5 // pred_fallthru
      _
    %p235 = scmp.le.s32.totalorder 1, %s12
    %p236 = scmp.lt.s32.totalorder %s12, 3
    %p237 = pnand %p235, %p236
    %p238 = pneg %p237
    // Predicated region
    $region33: #{linear_bottleneck_forward.5} parent=5 // pred_check
      _
    $region34: #{linear_bottleneck_forward.5} parent=5 // pred_check_branch
      %240 = sbr.rel (%p237) target = $region36
    $region35: #{linear_bottleneck_forward.5} parent=5 // pred_region
      %s241 = ssub.s32 %s12, 1
      %p242 = scmp.lt.s32.totalorder %s21, 1
      %s243 = scalar_select %p242, %s21, 1
      %p244 = scmp.lt.s32.totalorder %s22, 0
      %s245 = scalar_select %p244, %s22, 0
      %s246 = smul.addr %s243, 32
      %s247 = sadd.s32 %s245, %s246
      %s248 = smul.addr %s247, 8
      %s249 = scalar_lea.vmem %s0, %s248
      %p250 = pneg %p52
      %p251 = pneg %p49
      %p252 = scmp.lt.s32.totalorder %s22, 0
      %s253 = scalar_select %p252, %s22, 0
      %s254 = scalar_lea.vmem %s1, %s253
      %p255 = pneg %p78
      %p256 = pneg %p75
      %p257 = scmp.lt.s32.totalorder %s22, 0
      %s258 = scalar_select %p257, %s22, 0
      %s259 = scalar_lea.vmem %s2, %s258
      %p260 = pneg %p104
      %p261 = pneg %p101
      %p262 = scmp.lt.s32.totalorder %s22, 0
      %s263 = scalar_select %p262, %s22, 0
      %s264 = smul.addr %s263, 8
      %s265 = scalar_lea.vmem %s3, %s264
      %p266 = pneg %p130
      %p267 = pneg %p127
      %p268 = pneg %p158
      %p269 = pneg %p155
      %p270 = scmp.lt.s32.totalorder %s21, 1
      %s271 = scalar_select %p270, %s21, 1
      %p272 = scmp.lt.s32.totalorder %s22, 0
      %s273 = scalar_select %p272, %s22, 0
      %s274 = smul.addr %s271, 32
      %s275 = sadd.s32 %s273, %s274
      %s276 = smul.addr %s275, 8
      %s277 = scalar_lea.vmem %s4, %s276
      %p278 = pneg %p186
      %p279 = pneg %p183
      %p280 = scmp.lt.s32.totalorder %s21, 1
      %s281 = scalar_select %p280, %s21, 1
      %p282 = scmp.lt.s32.totalorder %s22, 0
      %s283 = scalar_select %p282, %s22, 0
      %s284 = sadd.s32 %s283, %s281
      %s285 = smul.addr %s284, 2
      %s286 = scalar_lea.vmem %s5, %s285
      %p287 = scmp.lt.s32.totalorder %s21, 1
      %s288 = scalar_select %p287, %s21, 1
      %p289 = scmp.lt.s32.totalorder %s22, 0
      %s290 = scalar_select %p289, %s22, 0
      %s291 = smul.addr %s288, 32
      %s292 = sadd.s32 %s290, %s291
      %s293 = smul.addr %s292, 8
      %s294 = scalar_lea.vmem %s0, %s293
      %p295 = scmp.lt.s32.totalorder %s22, 0
      %s296 = scalar_select %p295, %s22, 0
      %s297 = scalar_lea.vmem %s1, %s296
      %p298 = scmp.lt.s32.totalorder %s22, 0
      %s299 = scalar_select %p298, %s22, 0
      %s300 = scalar_lea.vmem %s2, %s299
      %p301 = scmp.lt.s32.totalorder %s22, 0
      %s302 = scalar_select %p301, %s22, 0
      %s303 = smul.addr %s302, 8
      %s304 = scalar_lea.vmem %s3, %s303
      %p305 = scmp.lt.s32.totalorder %s21, 1
      %s306 = scalar_select %p305, %s21, 1
      %p307 = scmp.lt.s32.totalorder %s22, 0
      %s308 = scalar_select %p307, %s22, 0
      %s309 = smul.addr %s306, 32
      %s310 = sadd.s32 %s308, %s309
      %s311 = smul.addr %s310, 8
      %s312 = scalar_lea.vmem %s4, %s311
      %p313 = scmp.lt.s32.totalorder %s21, 1
      %s314 = scalar_select %p313, %s21, 1
      %p315 = scmp.lt.s32.totalorder %s22, 0
      %s316 = scalar_select %p315, %s22, 0
      %s317 = sadd.s32 %s316, %s314
      %s318 = smul.addr %s317, 2
      %s319 = scalar_lea.vmem %s5, %s318
      %v320 = vld [vmem:[%s297] sm:$0x1]
      %v321 = vld [vmem:[%s300] sm:$0x1]
      %v322 = vld [vmem:[%s294] sm:$0xff]
      %v323 = vld [vmem:[%s294 + $0x8] sm:$0xff]
      %v324 = vld [vmem:[%s294 + $0x10] sm:$0xff]
      %v325 = vld [vmem:[%s294 + $0x18] sm:$0xff]
      %v326 = vld [vmem:[%s294 + $0x20] sm:$0xff]
      %v327 = vld [vmem:[%s294 + $0x28] sm:$0xff]
      %v328 = vld [vmem:[%s294 + $0x30] sm:$0xff]
      %v329 = vld [vmem:[%s294 + $0x38] sm:$0xff]
      %v330 = vld [vmem:[%s294 + $0x40] sm:$0xff]
      %v331 = vld [vmem:[%s294 + $0x48] sm:$0xff]
      %v332 = vld [vmem:[%s294 + $0x50] sm:$0xff]
      %v333 = vld [vmem:[%s294 + $0x58] sm:$0xff]
      %v334 = vld [vmem:[%s294 + $0x60] sm:$0xff]
      %v335 = vld [vmem:[%s294 + $0x68] sm:$0xff]
      %v336 = vld [vmem:[%s294 + $0x70] sm:$0xff]
      %v337 = vld [vmem:[%s294 + $0x78] sm:$0xff]
      %v338 = vld [vmem:[%s294 + $0x80] sm:$0xff]
      %v339 = vld [vmem:[%s294 + $0x88] sm:$0xff]
      %v340 = vld [vmem:[%s294 + $0x90] sm:$0xff]
      %v341 = vld [vmem:[%s294 + $0x98] sm:$0xff]
      %v342 = vld [vmem:[%s294 + $0xa0] sm:$0xff]
      %v343 = vld [vmem:[%s294 + $0xa8] sm:$0xff]
      %v344 = vld [vmem:[%s294 + $0xb0] sm:$0xff]
      %v345 = vld [vmem:[%s294 + $0xb8] sm:$0xff]
      %v346 = vld [vmem:[%s294 + $0xc0] sm:$0xff]
      %v347 = vld [vmem:[%s294 + $0xc8] sm:$0xff]
      %v348 = vld [vmem:[%s294 + $0xd0] sm:$0xff]
      %v349 = vld [vmem:[%s294 + $0xd8] sm:$0xff]
      %v350 = vld [vmem:[%s294 + $0xe0] sm:$0xff]
      %v351 = vld [vmem:[%s294 + $0xe8] sm:$0xff]
      %v352 = vld [vmem:[%s294 + $0xf0] sm:$0xff]
      %v353 = vld [vmem:[%s294 + $0xf8] sm:$0xff]
      %v355 = vlaneseq
      %v356 = vshrl.u32 %v355, 7
      %v357 = vsub.s32 0, %v356
      %v358 = vrot.slane %v320, %v357
      %v360 = vmul.f32 %v322, %v358
      %v361 = vmul.f32 %v323, %v358
      %v362 = vmul.f32 %v324, %v358
      %v363 = vmul.f32 %v325, %v358
      %v364 = vmul.f32 %v326, %v358
      %v365 = vmul.f32 %v327, %v358
      %v366 = vmul.f32 %v328, %v358
      %v367 = vmul.f32 %v329, %v358
      %v368 = vmul.f32 %v330, %v358
      %v369 = vmul.f32 %v331, %v358
      %v370 = vmul.f32 %v332, %v358
      %v371 = vmul.f32 %v333, %v358
      %v372 = vmul.f32 %v334, %v358
      %v373 = vmul.f32 %v335, %v358
      %v374 = vmul.f32 %v336, %v358
      %v375 = vmul.f32 %v337, %v358
      %v376 = vmul.f32 %v338, %v358
      %v377 = vmul.f32 %v339, %v358
      %v378 = vmul.f32 %v340, %v358
      %v379 = vmul.f32 %v341, %v358
      %v380 = vmul.f32 %v342, %v358
      %v381 = vmul.f32 %v343, %v358
      %v382 = vmul.f32 %v344, %v358
      %v383 = vmul.f32 %v345, %v358
      %v384 = vmul.f32 %v346, %v358
      %v385 = vmul.f32 %v347, %v358
      %v386 = vmul.f32 %v348, %v358
      %v387 = vmul.f32 %v349, %v358
      %v388 = vmul.f32 %v350, %v358
      %v389 = vmul.f32 %v351, %v358
      %v390 = vmul.f32 %v352, %v358
      %v391 = vmul.f32 %v353, %v358
      %v393 = vlaneseq
      %v394 = vshrl.u32 %v393, 7
      %v395 = vsub.s32 0, %v394
      %v396 = vrot.slane %v321, %v395
      %v398 = vadd.f32 %v360, %v396
      %v399 = vadd.f32 %v361, %v396
      %v400 = vadd.f32 %v362, %v396
      %v401 = vadd.f32 %v363, %v396
      %v402 = vadd.f32 %v364, %v396
      %v403 = vadd.f32 %v365, %v396
      %v404 = vadd.f32 %v366, %v396
      %v405 = vadd.f32 %v367, %v396
      %v406 = vadd.f32 %v368, %v396
      %v407 = vadd.f32 %v369, %v396
      %v408 = vadd.f32 %v370, %v396
      %v409 = vadd.f32 %v371, %v396
      %v410 = vadd.f32 %v372, %v396
      %v411 = vadd.f32 %v373, %v396
      %v412 = vadd.f32 %v374, %v396
      %v413 = vadd.f32 %v375, %v396
      %v414 = vadd.f32 %v376, %v396
      %v415 = vadd.f32 %v377, %v396
      %v416 = vadd.f32 %v378, %v396
      %v417 = vadd.f32 %v379, %v396
      %v418 = vadd.f32 %v380, %v396
      %v419 = vadd.f32 %v381, %v396
      %v420 = vadd.f32 %v382, %v396
      %v421 = vadd.f32 %v383, %v396
      %v422 = vadd.f32 %v384, %v396
      %v423 = vadd.f32 %v385, %v396
      %v424 = vadd.f32 %v386, %v396
      %v425 = vadd.f32 %v387, %v396
      %v426 = vadd.f32 %v388, %v396
      %v427 = vadd.f32 %v389, %v396
      %v428 = vadd.f32 %v390, %v396
      %v429 = vadd.f32 %v391, %v396
      %v430 = vmax.f32 %v398, 0.0
      %v431 = vmax.f32 %v399, 0.0
      %v432 = vmax.f32 %v400, 0.0
      %v433 = vmax.f32 %v401, 0.0
      %v434 = vmax.f32 %v402, 0.0
      %v435 = vmax.f32 %v403, 0.0
      %v436 = vmax.f32 %v404, 0.0
      %v437 = vmax.f32 %v405, 0.0
      %v438 = vmax.f32 %v406, 0.0
      %v439 = vmax.f32 %v407, 0.0
      %v440 = vmax.f32 %v408, 0.0
      %v441 = vmax.f32 %v409, 0.0
      %v442 = vmax.f32 %v410, 0.0
      %v443 = vmax.f32 %v411, 0.0
      %v444 = vmax.f32 %v412, 0.0
      %v445 = vmax.f32 %v413, 0.0
      %v446 = vmax.f32 %v414, 0.0
      %v447 = vmax.f32 %v415, 0.0
      %v448 = vmax.f32 %v416, 0.0
      %v449 = vmax.f32 %v417, 0.0
      %v450 = vmax.f32 %v418, 0.0
      %v451 = vmax.f32 %v419, 0.0
      %v452 = vmax.f32 %v420, 0.0
      %v453 = vmax.f32 %v421, 0.0
      %v454 = vmax.f32 %v422, 0.0
      %v455 = vmax.f32 %v423, 0.0
      %v456 = vmax.f32 %v424, 0.0
      %v457 = vmax.f32 %v425, 0.0
      %v458 = vmax.f32 %v426, 0.0
      %v459 = vmax.f32 %v427, 0.0
      %v460 = vmax.f32 %v428, 0.0
      %v461 = vmax.f32 %v429, 0.0
      %v462 = vmin.f32 %v430, 6.0
      %v463 = vmin.f32 %v431, 6.0
      %v464 = vmin.f32 %v432, 6.0
      %v465 = vmin.f32 %v433, 6.0
      %v466 = vmin.f32 %v434, 6.0
      %v467 = vmin.f32 %v435, 6.0
      %v468 = vmin.f32 %v436, 6.0
      %v469 = vmin.f32 %v437, 6.0
      %v470 = vmin.f32 %v438, 6.0
      %v471 = vmin.f32 %v439, 6.0
      %v472 = vmin.f32 %v440, 6.0
      %v473 = vmin.f32 %v441, 6.0
      %v474 = vmin.f32 %v442, 6.0
      %v475 = vmin.f32 %v443, 6.0
      %v476 = vmin.f32 %v444, 6.0
      %v477 = vmin.f32 %v445, 6.0
      %v478 = vmin.f32 %v446, 6.0
      %v479 = vmin.f32 %v447, 6.0
      %v480 = vmin.f32 %v448, 6.0
      %v481 = vmin.f32 %v449, 6.0
      %v482 = vmin.f32 %v450, 6.0
      %v483 = vmin.f32 %v451, 6.0
      %v484 = vmin.f32 %v452, 6.0
      %v485 = vmin.f32 %v453, 6.0
      %v486 = vmin.f32 %v454, 6.0
      %v487 = vmin.f32 %v455, 6.0
      %v488 = vmin.f32 %v456, 6.0
      %v489 = vmin.f32 %v457, 6.0
      %v490 = vmin.f32 %v458, 6.0
      %v491 = vmin.f32 %v459, 6.0
      %v492 = vmin.f32 %v460, 6.0
      %v493 = vmin.f32 %v461, 6.0
      %494 = vst [vmem:[#allocation2] sm:$0xff] 0.0
      %495 = vst [vmem:[#allocation2 + $0x8] sm:$0xff] 0.0
      %496 = vst [vmem:[#allocation2 + $0x10] sm:$0x3] 0.0
      %s497 = scalar_lea.vmem [#allocation2], 408
      %498 = vst [vmem:[%s497] sm:$0xff] 0.0
      %499 = vst [vmem:[%s497 + $0x8] sm:$0xff] 0.0
      %500 = vst [vmem:[%s497 + $0x10] sm:$0x3] 0.0
      %501 = vst [vmem:[#allocation2] sm:$0x1] 0.0
      %502 = vst [vmem:[#allocation2 + $0x18] sm:$0x1] 0.0
      %503 = vst [vmem:[#allocation2 + $0x30] sm:$0x1] 0.0
      %504 = vst [vmem:[#allocation2 + $0x48] sm:$0x1] 0.0
      %505 = vst [vmem:[#allocation2 + $0x60] sm:$0x1] 0.0
      %506 = vst [vmem:[#allocation2 + $0x78] sm:$0x1] 0.0
      %507 = vst [vmem:[#allocation2 + $0x90] sm:$0x1] 0.0
      %508 = vst [vmem:[#allocation2 + $0xa8] sm:$0x1] 0.0
      %509 = vst [vmem:[#allocation2 + $0xc0] sm:$0x1] 0.0
      %510 = vst [vmem:[#allocation2 + $0xd8] sm:$0x1] 0.0
      %511 = vst [vmem:[#allocation2 + $0xf0] sm:$0x1] 0.0
      %512 = vst [vmem:[#allocation2 + $0x108] sm:$0x1] 0.0
      %513 = vst [vmem:[#allocation2 + $0x120] sm:$0x1] 0.0
      %514 = vst [vmem:[#allocation2 + $0x138] sm:$0x1] 0.0
      %515 = vst [vmem:[#allocation2 + $0x150] sm:$0x1] 0.0
      %516 = vst [vmem:[#allocation2 + $0x168] sm:$0x1] 0.0
      %517 = vst [vmem:[#allocation2 + $0x180] sm:$0x1] 0.0
      %518 = vst [vmem:[#allocation2 + $0x198] sm:$0x1] 0.0
      %519 = vst [vmem:[#allocation2 + $0x11] sm:$0x1] 0.0
      %520 = vst [vmem:[#allocation2 + $0x29] sm:$0x1] 0.0
      %521 = vst [vmem:[#allocation2 + $0x41] sm:$0x1] 0.0
      %522 = vst [vmem:[#allocation2 + $0x59] sm:$0x1] 0.0
      %523 = vst [vmem:[#allocation2 + $0x71] sm:$0x1] 0.0
      %524 = vst [vmem:[#allocation2 + $0x89] sm:$0x1] 0.0
      %525 = vst [vmem:[#allocation2 + $0xa1] sm:$0x1] 0.0
      %526 = vst [vmem:[#allocation2 + $0xb9] sm:$0x1] 0.0
      %527 = vst [vmem:[#allocation2 + $0xd1] sm:$0x1] 0.0
      %528 = vst [vmem:[#allocation2 + $0xe9] sm:$0x1] 0.0
      %529 = vst [vmem:[#allocation2 + $0x101] sm:$0x1] 0.0
      %530 = vst [vmem:[#allocation2 + $0x119] sm:$0x1] 0.0
      %531 = vst [vmem:[#allocation2 + $0x131] sm:$0x1] 0.0
      %532 = vst [vmem:[#allocation2 + $0x149] sm:$0x1] 0.0
      %533 = vst [vmem:[#allocation2 + $0x161] sm:$0x1] 0.0
      %534 = vst [vmem:[#allocation2 + $0x179] sm:$0x1] 0.0
      %535 = vst [vmem:[#allocation2 + $0x191] sm:$0x1] 0.0
      %536 = vst [vmem:[#allocation2 + $0x1a9] sm:$0x1] 0.0
      %s537 = scalar_lea.vmem [#allocation2], 24
      %538 = vst [vmem:[%s537 + $0x1] sm:$0xff] %v462
      %539 = vst [vmem:[%s537 + $0x9] sm:$0xff] %v463
      %540 = vst [vmem:[%s537 + $0x19] sm:$0xff] %v464
      %541 = vst [vmem:[%s537 + $0x21] sm:$0xff] %v465
      %542 = vst [vmem:[%s537 + $0x31] sm:$0xff] %v466
      %543 = vst [vmem:[%s537 + $0x39] sm:$0xff] %v467
      %544 = vst [vmem:[%s537 + $0x49] sm:$0xff] %v468
      %545 = vst [vmem:[%s537 + $0x51] sm:$0xff] %v469
      %546 = vst [vmem:[%s537 + $0x61] sm:$0xff] %v470
      %547 = vst [vmem:[%s537 + $0x69] sm:$0xff] %v471
      %548 = vst [vmem:[%s537 + $0x79] sm:$0xff] %v472
      %549 = vst [vmem:[%s537 + $0x81] sm:$0xff] %v473
      %550 = vst [vmem:[%s537 + $0x91] sm:$0xff] %v474
      %551 = vst [vmem:[%s537 + $0x99] sm:$0xff] %v475
      %552 = vst [vmem:[%s537 + $0xa9] sm:$0xff] %v476
      %553 = vst [vmem:[%s537 + $0xb1] sm:$0xff] %v477
      %554 = vst [vmem:[%s537 + $0xc1] sm:$0xff] %v478
      %555 = vst [vmem:[%s537 + $0xc9] sm:$0xff] %v479
      %556 = vst [vmem:[%s537 + $0xd9] sm:$0xff] %v480
      %557 = vst [vmem:[%s537 + $0xe1] sm:$0xff] %v481
      %558 = vst [vmem:[%s537 + $0xf1] sm:$0xff] %v482
      %559 = vst [vmem:[%s537 + $0xf9] sm:$0xff] %v483
      %560 = vst [vmem:[%s537 + $0x109] sm:$0xff] %v484
      %561 = vst [vmem:[%s537 + $0x111] sm:$0xff] %v485
      %562 = vst [vmem:[%s537 + $0x121] sm:$0xff] %v486
      %563 = vst [vmem:[%s537 + $0x129] sm:$0xff] %v487
      %564 = vst [vmem:[%s537 + $0x139] sm:$0xff] %v488
      %565 = vst [vmem:[%s537 + $0x141] sm:$0xff] %v489
      %566 = vst [vmem:[%s537 + $0x151] sm:$0xff] %v490
      %567 = vst [vmem:[%s537 + $0x159] sm:$0xff] %v491
      %568 = vst [vmem:[%s537 + $0x169] sm:$0xff] %v492
      %569 = vst [vmem:[%s537 + $0x171] sm:$0xff] %v493
      %v570 = vld [vmem:[%s304] sm:$0xff]
      %v571 = vld [vmem:[%s304 + $0x8] sm:$0x1]
      %v572 = vld [vmem:[#allocation2] sm:$0xff]
      %v573 = vld [vmem:[#allocation2 + $0x8] sm:$0xff]
      %v574 = vld [vmem:[#allocation2 + $0x18] sm:$0xff]
      %v575 = vld [vmem:[#allocation2 + $0x20] sm:$0xff]
      %v576 = vld [vmem:[#allocation2 + $0x30] sm:$0xff]
      %v577 = vld [vmem:[#allocation2 + $0x38] sm:$0xff]
      %v578 = vld [vmem:[#allocation2 + $0x48] sm:$0xff]
      %v579 = vld [vmem:[#allocation2 + $0x50] sm:$0xff]
      %v580 = vld [vmem:[#allocation2 + $0x60] sm:$0xff]
      %v581 = vld [vmem:[#allocation2 + $0x68] sm:$0xff]
      %v582 = vld [vmem:[#allocation2 + $0x78] sm:$0xff]
      %v583 = vld [vmem:[#allocation2 + $0x80] sm:$0xff]
      %v584 = vld [vmem:[#allocation2 + $0x90] sm:$0xff]
      %v585 = vld [vmem:[#allocation2 + $0x98] sm:$0xff]
      %v586 = vld [vmem:[#allocation2 + $0xa8] sm:$0xff]
      %v587 = vld [vmem:[#allocation2 + $0xb0] sm:$0xff]
      %v588 = vld [vmem:[#allocation2 + $0xc0] sm:$0xff]
      %v589 = vld [vmem:[#allocation2 + $0xc8] sm:$0xff]
      %v590 = vld [vmem:[#allocation2 + $0xd8] sm:$0xff]
      %v591 = vld [vmem:[#allocation2 + $0xe0] sm:$0xff]
      %v592 = vld [vmem:[#allocation2 + $0xf0] sm:$0xff]
      %v593 = vld [vmem:[#allocation2 + $0xf8] sm:$0xff]
      %v594 = vld [vmem:[#allocation2 + $0x108] sm:$0xff]
      %v595 = vld [vmem:[#allocation2 + $0x110] sm:$0xff]
      %v596 = vld [vmem:[#allocation2 + $0x120] sm:$0xff]
      %v597 = vld [vmem:[#allocation2 + $0x128] sm:$0xff]
      %v598 = vld [vmem:[#allocation2 + $0x138] sm:$0xff]
      %v599 = vld [vmem:[#allocation2 + $0x140] sm:$0xff]
      %v600 = vld [vmem:[#allocation2 + $0x150] sm:$0xff]
      %v601 = vld [vmem:[#allocation2 + $0x158] sm:$0xff]
      %v602 = vld [vmem:[#allocation2 + $0x168] sm:$0xff]
      %v603 = vld [vmem:[#allocation2 + $0x170] sm:$0xff]
      %v604 = vlaneseq
      %v605 = vshrl.u32 %v604, 7
      %v606 = vsub.s32 0, %v605
      %v607 = vrot.slane %v570, %v606
      %v608 = vmul.f32 %v572, %v607
      %v609 = vmul.f32 %v573, %v607
      %v610 = vmul.f32 %v574, %v607
      %v611 = vmul.f32 %v575, %v607
      %v612 = vmul.f32 %v576, %v607
      %v613 = vmul.f32 %v577, %v607
      %v614 = vmul.f32 %v578, %v607
      %v615 = vmul.f32 %v579, %v607
      %v616 = vmul.f32 %v580, %v607
      %v617 = vmul.f32 %v581, %v607
      %v618 = vmul.f32 %v582, %v607
      %v619 = vmul.f32 %v583, %v607
      %v620 = vmul.f32 %v584, %v607
      %v621 = vmul.f32 %v585, %v607
      %v622 = vmul.f32 %v586, %v607
      %v623 = vmul.f32 %v587, %v607
      %v624 = vmul.f32 %v588, %v607
      %v625 = vmul.f32 %v589, %v607
      %v626 = vmul.f32 %v590, %v607
      %v627 = vmul.f32 %v591, %v607
      %v628 = vmul.f32 %v592, %v607
      %v629 = vmul.f32 %v593, %v607
      %v630 = vmul.f32 %v594, %v607
      %v631 = vmul.f32 %v595, %v607
      %v632 = vmul.f32 %v596, %v607
      %v633 = vmul.f32 %v597, %v607
      %v634 = vmul.f32 %v598, %v607
      %v635 = vmul.f32 %v599, %v607
      %v636 = vmul.f32 %v600, %v607
      %v637 = vmul.f32 %v601, %v607
      %v638 = vmul.f32 %v602, %v607
      %v639 = vmul.f32 %v603, %v607
      %v640 = vld [vmem:[%s537] sm:$0xff]
      %v641 = vld [vmem:[%s537 + $0x8] sm:$0xff]
      %v642 = vld [vmem:[%s537 + $0x18] sm:$0xff]
      %v643 = vld [vmem:[%s537 + $0x20] sm:$0xff]
      %v644 = vld [vmem:[%s537 + $0x30] sm:$0xff]
      %v645 = vld [vmem:[%s537 + $0x38] sm:$0xff]
      %v646 = vld [vmem:[%s537 + $0x48] sm:$0xff]
      %v647 = vld [vmem:[%s537 + $0x50] sm:$0xff]
      %v648 = vld [vmem:[%s537 + $0x60] sm:$0xff]
      %v649 = vld [vmem:[%s537 + $0x68] sm:$0xff]
      %v650 = vld [vmem:[%s537 + $0x78] sm:$0xff]
      %v651 = vld [vmem:[%s537 + $0x80] sm:$0xff]
      %v652 = vld [vmem:[%s537 + $0x90] sm:$0xff]
      %v653 = vld [vmem:[%s537 + $0x98] sm:$0xff]
      %v654 = vld [vmem:[%s537 + $0xa8] sm:$0xff]
      %v655 = vld [vmem:[%s537 + $0xb0] sm:$0xff]
      %v656 = vld [vmem:[%s537 + $0xc0] sm:$0xff]
      %v657 = vld [vmem:[%s537 + $0xc8] sm:$0xff]
      %v658 = vld [vmem:[%s537 + $0xd8] sm:$0xff]
      %v659 = vld [vmem:[%s537 + $0xe0] sm:$0xff]
      %v660 = vld [vmem:[%s537 + $0xf0] sm:$0xff]
      %v661 = vld [vmem:[%s537 + $0xf8] sm:$0xff]
      %v662 = vld [vmem:[%s537 + $0x108] sm:$0xff]
      %v663 = vld [vmem:[%s537 + $0x110] sm:$0xff]
      %v664 = vld [vmem:[%s537 + $0x120] sm:$0xff]
      %v665 = vld [vmem:[%s537 + $0x128] sm:$0xff]
      %v666 = vld [vmem:[%s537 + $0x138] sm:$0xff]
      %v667 = vld [vmem:[%s537 + $0x140] sm:$0xff]
      %v668 = vld [vmem:[%s537 + $0x150] sm:$0xff]
      %v669 = vld [vmem:[%s537 + $0x158] sm:$0xff]
      %v670 = vld [vmem:[%s537 + $0x168] sm:$0xff]
      %v671 = vld [vmem:[%s537 + $0x170] sm:$0xff]
      %v672 = vlaneseq
      %v673 = vshrl.u32 %v672, 7
      %v674 = vsub.s32 3, %v673
      %v675 = vrot.slane %v570, %v674
      %v676 = vmul.f32 %v640, %v675
      %v677 = vmul.f32 %v641, %v675
      %v678 = vmul.f32 %v642, %v675
      %v679 = vmul.f32 %v643, %v675
      %v680 = vmul.f32 %v644, %v675
      %v681 = vmul.f32 %v645, %v675
      %v682 = vmul.f32 %v646, %v675
      %v683 = vmul.f32 %v647, %v675
      %v684 = vmul.f32 %v648, %v675
      %v685 = vmul.f32 %v649, %v675
      %v686 = vmul.f32 %v650, %v675
      %v687 = vmul.f32 %v651, %v675
      %v688 = vmul.f32 %v652, %v675
      %v689 = vmul.f32 %v653, %v675
      %v690 = vmul.f32 %v654, %v675
      %v691 = vmul.f32 %v655, %v675
      %v692 = vmul.f32 %v656, %v675
      %v693 = vmul.f32 %v657, %v675
      %v694 = vmul.f32 %v658, %v675
      %v695 = vmul.f32 %v659, %v675
      %v696 = vmul.f32 %v660, %v675
      %v697 = vmul.f32 %v661, %v675
      %v698 = vmul.f32 %v662, %v675
      %v699 = vmul.f32 %v663, %v675
      %v700 = vmul.f32 %v664, %v675
      %v701 = vmul.f32 %v665, %v675
      %v702 = vmul.f32 %v666, %v675
      %v703 = vmul.f32 %v667, %v675
      %v704 = vmul.f32 %v668, %v675
      %v705 = vmul.f32 %v669, %v675
      %v706 = vmul.f32 %v670, %v675
      %v707 = vmul.f32 %v671, %v675
      %v708 = vadd.f32 %v608, %v676
      %v709 = vadd.f32 %v609, %v677
      %v710 = vadd.f32 %v610, %v678
      %v711 = vadd.f32 %v611, %v679
      %v712 = vadd.f32 %v612, %v680
      %v713 = vadd.f32 %v613, %v681
      %v714 = vadd.f32 %v614, %v682
      %v715 = vadd.f32 %v615, %v683
      %v716 = vadd.f32 %v616, %v684
      %v717 = vadd.f32 %v617, %v685
      %v718 = vadd.f32 %v618, %v686
      %v719 = vadd.f32 %v619, %v687
      %v720 = vadd.f32 %v620, %v688
      %v721 = vadd.f32 %v621, %v689
      %v722 = vadd.f32 %v622, %v690
      %v723 = vadd.f32 %v623, %v691
      %v724 = vadd.f32 %v624, %v692
      %v725 = vadd.f32 %v625, %v693
      %v726 = vadd.f32 %v626, %v694
      %v727 = vadd.f32 %v627, %v695
      %v728 = vadd.f32 %v628, %v696
      %v729 = vadd.f32 %v629, %v697
      %v730 = vadd.f32 %v630, %v698
      %v731 = vadd.f32 %v631, %v699
      %v732 = vadd.f32 %v632, %v700
      %v733 = vadd.f32 %v633, %v701
      %v734 = vadd.f32 %v634, %v702
      %v735 = vadd.f32 %v635, %v703
      %v736 = vadd.f32 %v636, %v704
      %v737 = vadd.f32 %v637, %v705
      %v738 = vadd.f32 %v638, %v706
      %v739 = vadd.f32 %v639, %v707
      %s740 = scalar_lea.vmem [#allocation2], 48
      %v741 = vld [vmem:[%s740] sm:$0xff]
      %v742 = vld [vmem:[%s740 + $0x8] sm:$0xff]
      %v743 = vld [vmem:[%s740 + $0x18] sm:$0xff]
      %v744 = vld [vmem:[%s740 + $0x20] sm:$0xff]
      %v745 = vld [vmem:[%s740 + $0x30] sm:$0xff]
      %v746 = vld [vmem:[%s740 + $0x38] sm:$0xff]
      %v747 = vld [vmem:[%s740 + $0x48] sm:$0xff]
      %v748 = vld [vmem:[%s740 + $0x50] sm:$0xff]
      %v749 = vld [vmem:[%s740 + $0x60] sm:$0xff]
      %v750 = vld [vmem:[%s740 + $0x68] sm:$0xff]
      %v751 = vld [vmem:[%s740 + $0x78] sm:$0xff]
      %v752 = vld [vmem:[%s740 + $0x80] sm:$0xff]
      %v753 = vld [vmem:[%s740 + $0x90] sm:$0xff]
      %v754 = vld [vmem:[%s740 + $0x98] sm:$0xff]
      %v755 = vld [vmem:[%s740 + $0xa8] sm:$0xff]
      %v756 = vld [vmem:[%s740 + $0xb0] sm:$0xff]
      %v757 = vld [vmem:[%s740 + $0xc0] sm:$0xff]
      %v758 = vld [vmem:[%s740 + $0xc8] sm:$0xff]
      %v759 = vld [vmem:[%s740 + $0xd8] sm:$0xff]
      %v760 = vld [vmem:[%s740 + $0xe0] sm:$0xff]
      %v761 = vld [vmem:[%s740 + $0xf0] sm:$0xff]
      %v762 = vld [vmem:[%s740 + $0xf8] sm:$0xff]
      %v763 = vld [vmem:[%s740 + $0x108] sm:$0xff]
      %v764 = vld [vmem:[%s740 + $0x110] sm:$0xff]
      %v765 = vld [vmem:[%s740 + $0x120] sm:$0xff]
      %v766 = vld [vmem:[%s740 + $0x128] sm:$0xff]
      %v767 = vld [vmem:[%s740 + $0x138] sm:$0xff]
      %v768 = vld [vmem:[%s740 + $0x140] sm:$0xff]
      %v769 = vld [vmem:[%s740 + $0x150] sm:$0xff]
      %v770 = vld [vmem:[%s740 + $0x158] sm:$0xff]
      %v771 = vld [vmem:[%s740 + $0x168] sm:$0xff]
      %v772 = vld [vmem:[%s740 + $0x170] sm:$0xff]
      %v773 = vlaneseq
      %v774 = vshrl.u32 %v773, 7
      %v775 = vsub.s32 6, %v774
      %v776 = vrot.slane %v570, %v775
      %v777 = vmul.f32 %v741, %v776
      %v778 = vmul.f32 %v742, %v776
      %v779 = vmul.f32 %v743, %v776
      %v780 = vmul.f32 %v744, %v776
      %v781 = vmul.f32 %v745, %v776
      %v782 = vmul.f32 %v746, %v776
      %v783 = vmul.f32 %v747, %v776
      %v784 = vmul.f32 %v748, %v776
      %v785 = vmul.f32 %v749, %v776
      %v786 = vmul.f32 %v750, %v776
      %v787 = vmul.f32 %v751, %v776
      %v788 = vmul.f32 %v752, %v776
      %v789 = vmul.f32 %v753, %v776
      %v790 = vmul.f32 %v754, %v776
      %v791 = vmul.f32 %v755, %v776
      %v792 = vmul.f32 %v756, %v776
      %v793 = vmul.f32 %v757, %v776
      %v794 = vmul.f32 %v758, %v776
      %v795 = vmul.f32 %v759, %v776
      %v796 = vmul.f32 %v760, %v776
      %v797 = vmul.f32 %v761, %v776
      %v798 = vmul.f32 %v762, %v776
      %v799 = vmul.f32 %v763, %v776
      %v800 = vmul.f32 %v764, %v776
      %v801 = vmul.f32 %v765, %v776
      %v802 = vmul.f32 %v766, %v776
      %v803 = vmul.f32 %v767, %v776
      %v804 = vmul.f32 %v768, %v776
      %v805 = vmul.f32 %v769, %v776
      %v806 = vmul.f32 %v770, %v776
      %v807 = vmul.f32 %v771, %v776
      %v808 = vmul.f32 %v772, %v776
      %v809 = vadd.f32 %v708, %v777
      %v810 = vadd.f32 %v709, %v778
      %v811 = vadd.f32 %v710, %v779
      %v812 = vadd.f32 %v711, %v780
      %v813 = vadd.f32 %v712, %v781
      %v814 = vadd.f32 %v713, %v782
      %v815 = vadd.f32 %v714, %v783
      %v816 = vadd.f32 %v715, %v784
      %v817 = vadd.f32 %v716, %v785
      %v818 = vadd.f32 %v717, %v786
      %v819 = vadd.f32 %v718, %v787
      %v820 = vadd.f32 %v719, %v788
      %v821 = vadd.f32 %v720, %v789
      %v822 = vadd.f32 %v721, %v790
      %v823 = vadd.f32 %v722, %v791
      %v824 = vadd.f32 %v723, %v792
      %v825 = vadd.f32 %v724, %v793
      %v826 = vadd.f32 %v725, %v794
      %v827 = vadd.f32 %v726, %v795
      %v828 = vadd.f32 %v727, %v796
      %v829 = vadd.f32 %v728, %v797
      %v830 = vadd.f32 %v729, %v798
      %v831 = vadd.f32 %v730, %v799
      %v832 = vadd.f32 %v731, %v800
      %v833 = vadd.f32 %v732, %v801
      %v834 = vadd.f32 %v733, %v802
      %v835 = vadd.f32 %v734, %v803
      %v836 = vadd.f32 %v735, %v804
      %v837 = vadd.f32 %v736, %v805
      %v838 = vadd.f32 %v737, %v806
      %v839 = vadd.f32 %v738, %v807
      %v840 = vadd.f32 %v739, %v808
      %v841 = vld [vmem:[#allocation2 + $0x1] sm:$0xff]
      %v842 = vld [vmem:[#allocation2 + $0x9] sm:$0xff]
      %v843 = vld [vmem:[#allocation2 + $0x19] sm:$0xff]
      %v844 = vld [vmem:[#allocation2 + $0x21] sm:$0xff]
      %v845 = vld [vmem:[#allocation2 + $0x31] sm:$0xff]
      %v846 = vld [vmem:[#allocation2 + $0x39] sm:$0xff]
      %v847 = vld [vmem:[#allocation2 + $0x49] sm:$0xff]
      %v848 = vld [vmem:[#allocation2 + $0x51] sm:$0xff]
      %v849 = vld [vmem:[#allocation2 + $0x61] sm:$0xff]
      %v850 = vld [vmem:[#allocation2 + $0x69] sm:$0xff]
      %v851 = vld [vmem:[#allocation2 + $0x79] sm:$0xff]
      %v852 = vld [vmem:[#allocation2 + $0x81] sm:$0xff]
      %v853 = vld [vmem:[#allocation2 + $0x91] sm:$0xff]
      %v854 = vld [vmem:[#allocation2 + $0x99] sm:$0xff]
      %v855 = vld [vmem:[#allocation2 + $0xa9] sm:$0xff]
      %v856 = vld [vmem:[#allocation2 + $0xb1] sm:$0xff]
      %v857 = vld [vmem:[#allocation2 + $0xc1] sm:$0xff]
      %v858 = vld [vmem:[#allocation2 + $0xc9] sm:$0xff]
      %v859 = vld [vmem:[#allocation2 + $0xd9] sm:$0xff]
      %v860 = vld [vmem:[#allocation2 + $0xe1] sm:$0xff]
      %v861 = vld [vmem:[#allocation2 + $0xf1] sm:$0xff]
      %v862 = vld [vmem:[#allocation2 + $0xf9] sm:$0xff]
      %v863 = vld [vmem:[#allocation2 + $0x109] sm:$0xff]
      %v864 = vld [vmem:[#allocation2 + $0x111] sm:$0xff]
      %v865 = vld [vmem:[#allocation2 + $0x121] sm:$0xff]
      %v866 = vld [vmem:[#allocation2 + $0x129] sm:$0xff]
      %v867 = vld [vmem:[#allocation2 + $0x139] sm:$0xff]
      %v868 = vld [vmem:[#allocation2 + $0x141] sm:$0xff]
      %v869 = vld [vmem:[#allocation2 + $0x151] sm:$0xff]
      %v870 = vld [vmem:[#allocation2 + $0x159] sm:$0xff]
      %v871 = vld [vmem:[#allocation2 + $0x169] sm:$0xff]
      %v872 = vld [vmem:[#allocation2 + $0x171] sm:$0xff]
      %v873 = vlaneseq
      %v874 = vshrl.u32 %v873, 7
      %v875 = vsub.s32 1, %v874
      %v876 = vrot.slane %v570, %v875
      %v877 = vmul.f32 %v841, %v876
      %v878 = vmul.f32 %v842, %v876
      %v879 = vmul.f32 %v843, %v876
      %v880 = vmul.f32 %v844, %v876
      %v881 = vmul.f32 %v845, %v876
      %v882 = vmul.f32 %v846, %v876
      %v883 = vmul.f32 %v847, %v876
      %v884 = vmul.f32 %v848, %v876
      %v885 = vmul.f32 %v849, %v876
      %v886 = vmul.f32 %v850, %v876
      %v887 = vmul.f32 %v851, %v876
      %v888 = vmul.f32 %v852, %v876
      %v889 = vmul.f32 %v853, %v876
      %v890 = vmul.f32 %v854, %v876
      %v891 = vmul.f32 %v855, %v876
      %v892 = vmul.f32 %v856, %v876
      %v893 = vmul.f32 %v857, %v876
      %v894 = vmul.f32 %v858, %v876
      %v895 = vmul.f32 %v859, %v876
      %v896 = vmul.f32 %v860, %v876
      %v897 = vmul.f32 %v861, %v876
      %v898 = vmul.f32 %v862, %v876
      %v899 = vmul.f32 %v863, %v876
      %v900 = vmul.f32 %v864, %v876
      %v901 = vmul.f32 %v865, %v876
      %v902 = vmul.f32 %v866, %v876
      %v903 = vmul.f32 %v867, %v876
      %v904 = vmul.f32 %v868, %v876
      %v905 = vmul.f32 %v869, %v876
      %v906 = vmul.f32 %v870, %v876
      %v907 = vmul.f32 %v871, %v876
      %v908 = vmul.f32 %v872, %v876
      %v909 = vld [vmem:[%s537 + $0x1] sm:$0xff]
      %v910 = vld [vmem:[%s537 + $0x9] sm:$0xff]
      %v911 = vld [vmem:[%s537 + $0x19] sm:$0xff]
      %v912 = vld [vmem:[%s537 + $0x21] sm:$0xff]
      %v913 = vld [vmem:[%s537 + $0x31] sm:$0xff]
      %v914 = vld [vmem:[%s537 + $0x39] sm:$0xff]
      %v915 = vld [vmem:[%s537 + $0x49] sm:$0xff]
      %v916 = vld [vmem:[%s537 + $0x51] sm:$0xff]
      %v917 = vld [vmem:[%s537 + $0x61] sm:$0xff]
      %v918 = vld [vmem:[%s537 + $0x69] sm:$0xff]
      %v919 = vld [vmem:[%s537 + $0x79] sm:$0xff]
      %v920 = vld [vmem:[%s537 + $0x81] sm:$0xff]
      %v921 = vld [vmem:[%s537 + $0x91] sm:$0xff]
      %v922 = vld [vmem:[%s537 + $0x99] sm:$0xff]
      %v923 = vld [vmem:[%s537 + $0xa9] sm:$0xff]
      %v924 = vld [vmem:[%s537 + $0xb1] sm:$0xff]
      %v925 = vld [vmem:[%s537 + $0xc1] sm:$0xff]
      %v926 = vld [vmem:[%s537 + $0xc9] sm:$0xff]
      %v927 = vld [vmem:[%s537 + $0xd9] sm:$0xff]
      %v928 = vld [vmem:[%s537 + $0xe1] sm:$0xff]
      %v929 = vld [vmem:[%s537 + $0xf1] sm:$0xff]
      %v930 = vld [vmem:[%s537 + $0xf9] sm:$0xff]
      %v931 = vld [vmem:[%s537 + $0x109] sm:$0xff]
      %v932 = vld [vmem:[%s537 + $0x111] sm:$0xff]
      %v933 = vld [vmem:[%s537 + $0x121] sm:$0xff]
      %v934 = vld [vmem:[%s537 + $0x129] sm:$0xff]
      %v935 = vld [vmem:[%s537 + $0x139] sm:$0xff]
      %v936 = vld [vmem:[%s537 + $0x141] sm:$0xff]
      %v937 = vld [vmem:[%s537 + $0x151] sm:$0xff]
      %v938 = vld [vmem:[%s537 + $0x159] sm:$0xff]
      %v939 = vld [vmem:[%s537 + $0x169] sm:$0xff]
      %v940 = vld [vmem:[%s537 + $0x171] sm:$0xff]
      %v941 = vlaneseq
      %v942 = vshrl.u32 %v941, 7
      %v943 = vsub.s32 4, %v942
      %v944 = vrot.slane %v570, %v943
      %v945 = vmul.f32 %v909, %v944
      %v946 = vmul.f32 %v910, %v944
      %v947 = vmul.f32 %v911, %v944
      %v948 = vmul.f32 %v912, %v944
      %v949 = vmul.f32 %v913, %v944
      %v950 = vmul.f32 %v914, %v944
      %v951 = vmul.f32 %v915, %v944
      %v952 = vmul.f32 %v916, %v944
      %v953 = vmul.f32 %v917, %v944
      %v954 = vmul.f32 %v918, %v944
      %v955 = vmul.f32 %v919, %v944
      %v956 = vmul.f32 %v920, %v944
      %v957 = vmul.f32 %v921, %v944
      %v958 = vmul.f32 %v922, %v944
      %v959 = vmul.f32 %v923, %v944
      %v960 = vmul.f32 %v924, %v944
      %v961 = vmul.f32 %v925, %v944
      %v962 = vmul.f32 %v926, %v944
      %v963 = vmul.f32 %v927, %v944
      %v964 = vmul.f32 %v928, %v944
      %v965 = vmul.f32 %v929, %v944
      %v966 = vmul.f32 %v930, %v944
      %v967 = vmul.f32 %v931, %v944
      %v968 = vmul.f32 %v932, %v944
      %v969 = vmul.f32 %v933, %v944
      %v970 = vmul.f32 %v934, %v944
      %v971 = vmul.f32 %v935, %v944
      %v972 = vmul.f32 %v936, %v944
      %v973 = vmul.f32 %v937, %v944
      %v974 = vmul.f32 %v938, %v944
      %v975 = vmul.f32 %v939, %v944
      %v976 = vmul.f32 %v940, %v944
      %v977 = vadd.f32 %v877, %v945
      %v978 = vadd.f32 %v878, %v946
      %v979 = vadd.f32 %v879, %v947
      %v980 = vadd.f32 %v880, %v948
      %v981 = vadd.f32 %v881, %v949
      %v982 = vadd.f32 %v882, %v950
      %v983 = vadd.f32 %v883, %v951
      %v984 = vadd.f32 %v884, %v952
      %v985 = vadd.f32 %v885, %v953
      %v986 = vadd.f32 %v886, %v954
      %v987 = vadd.f32 %v887, %v955
      %v988 = vadd.f32 %v888, %v956
      %v989 = vadd.f32 %v889, %v957
      %v990 = vadd.f32 %v890, %v958
      %v991 = vadd.f32 %v891, %v959
      %v992 = vadd.f32 %v892, %v960
      %v993 = vadd.f32 %v893, %v961
      %v994 = vadd.f32 %v894, %v962
      %v995 = vadd.f32 %v895, %v963
      %v996 = vadd.f32 %v896, %v964
      %v997 = vadd.f32 %v897, %v965
      %v998 = vadd.f32 %v898, %v966
      %v999 = vadd.f32 %v899, %v967
      %v1000 = vadd.f32 %v900, %v968
      %v1001 = vadd.f32 %v901, %v969
      %v1002 = vadd.f32 %v902, %v970
      %v1003 = vadd.f32 %v903, %v971
      %v1004 = vadd.f32 %v904, %v972
      %v1005 = vadd.f32 %v905, %v973
      %v1006 = vadd.f32 %v906, %v974
      %v1007 = vadd.f32 %v907, %v975
      %v1008 = vadd.f32 %v908, %v976
      %v1009 = vld [vmem:[%s740 + $0x1] sm:$0xff]
      %v1010 = vld [vmem:[%s740 + $0x9] sm:$0xff]
      %v1011 = vld [vmem:[%s740 + $0x19] sm:$0xff]
      %v1012 = vld [vmem:[%s740 + $0x21] sm:$0xff]
      %v1013 = vld [vmem:[%s740 + $0x31] sm:$0xff]
      %v1014 = vld [vmem:[%s740 + $0x39] sm:$0xff]
      %v1015 = vld [vmem:[%s740 + $0x49] sm:$0xff]
      %v1016 = vld [vmem:[%s740 + $0x51] sm:$0xff]
      %v1017 = vld [vmem:[%s740 + $0x61] sm:$0xff]
      %v1018 = vld [vmem:[%s740 + $0x69] sm:$0xff]
      %v1019 = vld [vmem:[%s740 + $0x79] sm:$0xff]
      %v1020 = vld [vmem:[%s740 + $0x81] sm:$0xff]
      %v1021 = vld [vmem:[%s740 + $0x91] sm:$0xff]
      %v1022 = vld [vmem:[%s740 + $0x99] sm:$0xff]
      %v1023 = vld [vmem:[%s740 + $0xa9] sm:$0xff]
      %v1024 = vld [vmem:[%s740 + $0xb1] sm:$0xff]
      %v1025 = vld [vmem:[%s740 + $0xc1] sm:$0xff]
      %v1026 = vld [vmem:[%s740 + $0xc9] sm:$0xff]
      %v1027 = vld [vmem:[%s740 + $0xd9] sm:$0xff]
      %v1028 = vld [vmem:[%s740 + $0xe1] sm:$0xff]
      %v1029 = vld [vmem:[%s740 + $0xf1] sm:$0xff]
      %v1030 = vld [vmem:[%s740 + $0xf9] sm:$0xff]
      %v1031 = vld [vmem:[%s740 + $0x109] sm:$0xff]
      %v1032 = vld [vmem:[%s740 + $0x111] sm:$0xff]
      %v1033 = vld [vmem:[%s740 + $0x121] sm:$0xff]
      %v1034 = vld [vmem:[%s740 + $0x129] sm:$0xff]
      %v1035 = vld [vmem:[%s740 + $0x139] sm:$0xff]
      %v1036 = vld [vmem:[%s740 + $0x141] sm:$0xff]
      %v1037 = vld [vmem:[%s740 + $0x151] sm:$0xff]
      %v1038 = vld [vmem:[%s740 + $0x159] sm:$0xff]
      %v1039 = vld [vmem:[%s740 + $0x169] sm:$0xff]
      %v1040 = vld [vmem:[%s740 + $0x171] sm:$0xff]
      %v1041 = vlaneseq
      %v1042 = vshrl.u32 %v1041, 7
      %v1043 = vsub.s32 7, %v1042
      %v1044 = vrot.slane %v570, %v1043
      %v1045 = vmul.f32 %v1009, %v1044
      %v1046 = vmul.f32 %v1010, %v1044
      %v1047 = vmul.f32 %v1011, %v1044
      %v1048 = vmul.f32 %v1012, %v1044
      %v1049 = vmul.f32 %v1013, %v1044
      %v1050 = vmul.f32 %v1014, %v1044
      %v1051 = vmul.f32 %v1015, %v1044
      %v1052 = vmul.f32 %v1016, %v1044
      %v1053 = vmul.f32 %v1017, %v1044
      %v1054 = vmul.f32 %v1018, %v1044
      %v1055 = vmul.f32 %v1019, %v1044
      %v1056 = vmul.f32 %v1020, %v1044
      %v1057 = vmul.f32 %v1021, %v1044
      %v1058 = vmul.f32 %v1022, %v1044
      %v1059 = vmul.f32 %v1023, %v1044
      %v1060 = vmul.f32 %v1024, %v1044
      %v1061 = vmul.f32 %v1025, %v1044
      %v1062 = vmul.f32 %v1026, %v1044
      %v1063 = vmul.f32 %v1027, %v1044
      %v1064 = vmul.f32 %v1028, %v1044
      %v1065 = vmul.f32 %v1029, %v1044
      %v1066 = vmul.f32 %v1030, %v1044
      %v1067 = vmul.f32 %v1031, %v1044
      %v1068 = vmul.f32 %v1032, %v1044
      %v1069 = vmul.f32 %v1033, %v1044
      %v1070 = vmul.f32 %v1034, %v1044
      %v1071 = vmul.f32 %v1035, %v1044
      %v1072 = vmul.f32 %v1036, %v1044
      %v1073 = vmul.f32 %v1037, %v1044
      %v1074 = vmul.f32 %v1038, %v1044
      %v1075 = vmul.f32 %v1039, %v1044
      %v1076 = vmul.f32 %v1040, %v1044
      %v1077 = vadd.f32 %v977, %v1045
      %v1078 = vadd.f32 %v978, %v1046
      %v1079 = vadd.f32 %v979, %v1047
      %v1080 = vadd.f32 %v980, %v1048
      %v1081 = vadd.f32 %v981, %v1049
      %v1082 = vadd.f32 %v982, %v1050
      %v1083 = vadd.f32 %v983, %v1051
      %v1084 = vadd.f32 %v984, %v1052
      %v1085 = vadd.f32 %v985, %v1053
      %v1086 = vadd.f32 %v986, %v1054
      %v1087 = vadd.f32 %v987, %v1055
      %v1088 = vadd.f32 %v988, %v1056
      %v1089 = vadd.f32 %v989, %v1057
      %v1090 = vadd.f32 %v990, %v1058
      %v1091 = vadd.f32 %v991, %v1059
      %v1092 = vadd.f32 %v992, %v1060
      %v1093 = vadd.f32 %v993, %v1061
      %v1094 = vadd.f32 %v994, %v1062
      %v1095 = vadd.f32 %v995, %v1063
      %v1096 = vadd.f32 %v996, %v1064
      %v1097 = vadd.f32 %v997, %v1065
      %v1098 = vadd.f32 %v998, %v1066
      %v1099 = vadd.f32 %v999, %v1067
      %v1100 = vadd.f32 %v1000, %v1068
      %v1101 = vadd.f32 %v1001, %v1069
      %v1102 = vadd.f32 %v1002, %v1070
      %v1103 = vadd.f32 %v1003, %v1071
      %v1104 = vadd.f32 %v1004, %v1072
      %v1105 = vadd.f32 %v1005, %v1073
      %v1106 = vadd.f32 %v1006, %v1074
      %v1107 = vadd.f32 %v1007, %v1075
      %v1108 = vadd.f32 %v1008, %v1076
      %v1109 = vld [vmem:[#allocation2 + $0x2] sm:$0xff]
      %v1110 = vld [vmem:[#allocation2 + $0xa] sm:$0xff]
      %v1111 = vld [vmem:[#allocation2 + $0x1a] sm:$0xff]
      %v1112 = vld [vmem:[#allocation2 + $0x22] sm:$0xff]
      %v1113 = vld [vmem:[#allocation2 + $0x32] sm:$0xff]
      %v1114 = vld [vmem:[#allocation2 + $0x3a] sm:$0xff]
      %v1115 = vld [vmem:[#allocation2 + $0x4a] sm:$0xff]
      %v1116 = vld [vmem:[#allocation2 + $0x52] sm:$0xff]
      %v1117 = vld [vmem:[#allocation2 + $0x62] sm:$0xff]
      %v1118 = vld [vmem:[#allocation2 + $0x6a] sm:$0xff]
      %v1119 = vld [vmem:[#allocation2 + $0x7a] sm:$0xff]
      %v1120 = vld [vmem:[#allocation2 + $0x82] sm:$0xff]
      %v1121 = vld [vmem:[#allocation2 + $0x92] sm:$0xff]
      %v1122 = vld [vmem:[#allocation2 + $0x9a] sm:$0xff]
      %v1123 = vld [vmem:[#allocation2 + $0xaa] sm:$0xff]
      %v1124 = vld [vmem:[#allocation2 + $0xb2] sm:$0xff]
      %v1125 = vld [vmem:[#allocation2 + $0xc2] sm:$0xff]
      %v1126 = vld [vmem:[#allocation2 + $0xca] sm:$0xff]
      %v1127 = vld [vmem:[#allocation2 + $0xda] sm:$0xff]
      %v1128 = vld [vmem:[#allocation2 + $0xe2] sm:$0xff]
      %v1129 = vld [vmem:[#allocation2 + $0xf2] sm:$0xff]
      %v1130 = vld [vmem:[#allocation2 + $0xfa] sm:$0xff]
      %v1131 = vld [vmem:[#allocation2 + $0x10a] sm:$0xff]
      %v1132 = vld [vmem:[#allocation2 + $0x112] sm:$0xff]
      %v1133 = vld [vmem:[#allocation2 + $0x122] sm:$0xff]
      %v1134 = vld [vmem:[#allocation2 + $0x12a] sm:$0xff]
      %v1135 = vld [vmem:[#allocation2 + $0x13a] sm:$0xff]
      %v1136 = vld [vmem:[#allocation2 + $0x142] sm:$0xff]
      %v1137 = vld [vmem:[#allocation2 + $0x152] sm:$0xff]
      %v1138 = vld [vmem:[#allocation2 + $0x15a] sm:$0xff]
      %v1139 = vld [vmem:[#allocation2 + $0x16a] sm:$0xff]
      %v1140 = vld [vmem:[#allocation2 + $0x172] sm:$0xff]
      %v1141 = vlaneseq
      %v1142 = vshrl.u32 %v1141, 7
      %v1143 = vsub.s32 2, %v1142
      %v1144 = vrot.slane %v570, %v1143
      %v1145 = vmul.f32 %v1109, %v1144
      %v1146 = vmul.f32 %v1110, %v1144
      %v1147 = vmul.f32 %v1111, %v1144
      %v1148 = vmul.f32 %v1112, %v1144
      %v1149 = vmul.f32 %v1113, %v1144
      %v1150 = vmul.f32 %v1114, %v1144
      %v1151 = vmul.f32 %v1115, %v1144
      %v1152 = vmul.f32 %v1116, %v1144
      %v1153 = vmul.f32 %v1117, %v1144
      %v1154 = vmul.f32 %v1118, %v1144
      %v1155 = vmul.f32 %v1119, %v1144
      %v1156 = vmul.f32 %v1120, %v1144
      %v1157 = vmul.f32 %v1121, %v1144
      %v1158 = vmul.f32 %v1122, %v1144
      %v1159 = vmul.f32 %v1123, %v1144
      %v1160 = vmul.f32 %v1124, %v1144
      %v1161 = vmul.f32 %v1125, %v1144
      %v1162 = vmul.f32 %v1126, %v1144
      %v1163 = vmul.f32 %v1127, %v1144
      %v1164 = vmul.f32 %v1128, %v1144
      %v1165 = vmul.f32 %v1129, %v1144
      %v1166 = vmul.f32 %v1130, %v1144
      %v1167 = vmul.f32 %v1131, %v1144
      %v1168 = vmul.f32 %v1132, %v1144
      %v1169 = vmul.f32 %v1133, %v1144
      %v1170 = vmul.f32 %v1134, %v1144
      %v1171 = vmul.f32 %v1135, %v1144
      %v1172 = vmul.f32 %v1136, %v1144
      %v1173 = vmul.f32 %v1137, %v1144
      %v1174 = vmul.f32 %v1138, %v1144
      %v1175 = vmul.f32 %v1139, %v1144
      %v1176 = vmul.f32 %v1140, %v1144
      %v1177 = vld [vmem:[%s537 + $0x2] sm:$0xff]
      %v1178 = vld [vmem:[%s537 + $0xa] sm:$0xff]
      %v1179 = vld [vmem:[%s537 + $0x1a] sm:$0xff]
      %v1180 = vld [vmem:[%s537 + $0x22] sm:$0xff]
      %v1181 = vld [vmem:[%s537 + $0x32] sm:$0xff]
      %v1182 = vld [vmem:[%s537 + $0x3a] sm:$0xff]
      %v1183 = vld [vmem:[%s537 + $0x4a] sm:$0xff]
      %v1184 = vld [vmem:[%s537 + $0x52] sm:$0xff]
      %v1185 = vld [vmem:[%s537 + $0x62] sm:$0xff]
      %v1186 = vld [vmem:[%s537 + $0x6a] sm:$0xff]
      %v1187 = vld [vmem:[%s537 + $0x7a] sm:$0xff]
      %v1188 = vld [vmem:[%s537 + $0x82] sm:$0xff]
      %v1189 = vld [vmem:[%s537 + $0x92] sm:$0xff]
      %v1190 = vld [vmem:[%s537 + $0x9a] sm:$0xff]
      %v1191 = vld [vmem:[%s537 + $0xaa] sm:$0xff]
      %v1192 = vld [vmem:[%s537 + $0xb2] sm:$0xff]
      %v1193 = vld [vmem:[%s537 + $0xc2] sm:$0xff]
      %v1194 = vld [vmem:[%s537 + $0xca] sm:$0xff]
      %v1195 = vld [vmem:[%s537 + $0xda] sm:$0xff]
      %v1196 = vld [vmem:[%s537 + $0xe2] sm:$0xff]
      %v1197 = vld [vmem:[%s537 + $0xf2] sm:$0xff]
      %v1198 = vld [vmem:[%s537 + $0xfa] sm:$0xff]
      %v1199 = vld [vmem:[%s537 + $0x10a] sm:$0xff]
      %v1200 = vld [vmem:[%s537 + $0x112] sm:$0xff]
      %v1201 = vld [vmem:[%s537 + $0x122] sm:$0xff]
      %v1202 = vld [vmem:[%s537 + $0x12a] sm:$0xff]
      %v1203 = vld [vmem:[%s537 + $0x13a] sm:$0xff]
      %v1204 = vld [vmem:[%s537 + $0x142] sm:$0xff]
      %v1205 = vld [vmem:[%s537 + $0x152] sm:$0xff]
      %v1206 = vld [vmem:[%s537 + $0x15a] sm:$0xff]
      %v1207 = vld [vmem:[%s537 + $0x16a] sm:$0xff]
      %v1208 = vld [vmem:[%s537 + $0x172] sm:$0xff]
      %v1209 = vlaneseq
      %v1210 = vshrl.u32 %v1209, 7
      %v1211 = vsub.s32 5, %v1210
      %v1212 = vrot.slane %v570, %v1211
      %v1213 = vmul.f32 %v1177, %v1212
      %v1214 = vmul.f32 %v1178, %v1212
      %v1215 = vmul.f32 %v1179, %v1212
      %v1216 = vmul.f32 %v1180, %v1212
      %v1217 = vmul.f32 %v1181, %v1212
      %v1218 = vmul.f32 %v1182, %v1212
      %v1219 = vmul.f32 %v1183, %v1212
      %v1220 = vmul.f32 %v1184, %v1212
      %v1221 = vmul.f32 %v1185, %v1212
      %v1222 = vmul.f32 %v1186, %v1212
      %v1223 = vmul.f32 %v1187, %v1212
      %v1224 = vmul.f32 %v1188, %v1212
      %v1225 = vmul.f32 %v1189, %v1212
      %v1226 = vmul.f32 %v1190, %v1212
      %v1227 = vmul.f32 %v1191, %v1212
      %v1228 = vmul.f32 %v1192, %v1212
      %v1229 = vmul.f32 %v1193, %v1212
      %v1230 = vmul.f32 %v1194, %v1212
      %v1231 = vmul.f32 %v1195, %v1212
      %v1232 = vmul.f32 %v1196, %v1212
      %v1233 = vmul.f32 %v1197, %v1212
      %v1234 = vmul.f32 %v1198, %v1212
      %v1235 = vmul.f32 %v1199, %v1212
      %v1236 = vmul.f32 %v1200, %v1212
      %v1237 = vmul.f32 %v1201, %v1212
      %v1238 = vmul.f32 %v1202, %v1212
      %v1239 = vmul.f32 %v1203, %v1212
      %v1240 = vmul.f32 %v1204, %v1212
      %v1241 = vmul.f32 %v1205, %v1212
      %v1242 = vmul.f32 %v1206, %v1212
      %v1243 = vmul.f32 %v1207, %v1212
      %v1244 = vmul.f32 %v1208, %v1212
      %v1245 = vadd.f32 %v1145, %v1213
      %v1246 = vadd.f32 %v1146, %v1214
      %v1247 = vadd.f32 %v1147, %v1215
      %v1248 = vadd.f32 %v1148, %v1216
      %v1249 = vadd.f32 %v1149, %v1217
      %v1250 = vadd.f32 %v1150, %v1218
      %v1251 = vadd.f32 %v1151, %v1219
      %v1252 = vadd.f32 %v1152, %v1220
      %v1253 = vadd.f32 %v1153, %v1221
      %v1254 = vadd.f32 %v1154, %v1222
      %v1255 = vadd.f32 %v1155, %v1223
      %v1256 = vadd.f32 %v1156, %v1224
      %v1257 = vadd.f32 %v1157, %v1225
      %v1258 = vadd.f32 %v1158, %v1226
      %v1259 = vadd.f32 %v1159, %v1227
      %v1260 = vadd.f32 %v1160, %v1228
      %v1261 = vadd.f32 %v1161, %v1229
      %v1262 = vadd.f32 %v1162, %v1230
      %v1263 = vadd.f32 %v1163, %v1231
      %v1264 = vadd.f32 %v1164, %v1232
      %v1265 = vadd.f32 %v1165, %v1233
      %v1266 = vadd.f32 %v1166, %v1234
      %v1267 = vadd.f32 %v1167, %v1235
      %v1268 = vadd.f32 %v1168, %v1236
      %v1269 = vadd.f32 %v1169, %v1237
      %v1270 = vadd.f32 %v1170, %v1238
      %v1271 = vadd.f32 %v1171, %v1239
      %v1272 = vadd.f32 %v1172, %v1240
      %v1273 = vadd.f32 %v1173, %v1241
      %v1274 = vadd.f32 %v1174, %v1242
      %v1275 = vadd.f32 %v1175, %v1243
      %v1276 = vadd.f32 %v1176, %v1244
      %v1277 = vld [vmem:[%s740 + $0x2] sm:$0xff]
      %v1278 = vld [vmem:[%s740 + $0xa] sm:$0xff]
      %v1279 = vld [vmem:[%s740 + $0x1a] sm:$0xff]
      %v1280 = vld [vmem:[%s740 + $0x22] sm:$0xff]
      %v1281 = vld [vmem:[%s740 + $0x32] sm:$0xff]
      %v1282 = vld [vmem:[%s740 + $0x3a] sm:$0xff]
      %v1283 = vld [vmem:[%s740 + $0x4a] sm:$0xff]
      %v1284 = vld [vmem:[%s740 + $0x52] sm:$0xff]
      %v1285 = vld [vmem:[%s740 + $0x62] sm:$0xff]
      %v1286 = vld [vmem:[%s740 + $0x6a] sm:$0xff]
      %v1287 = vld [vmem:[%s740 + $0x7a] sm:$0xff]
      %v1288 = vld [vmem:[%s740 + $0x82] sm:$0xff]
      %v1289 = vld [vmem:[%s740 + $0x92] sm:$0xff]
      %v1290 = vld [vmem:[%s740 + $0x9a] sm:$0xff]
      %v1291 = vld [vmem:[%s740 + $0xaa] sm:$0xff]
      %v1292 = vld [vmem:[%s740 + $0xb2] sm:$0xff]
      %v1293 = vld [vmem:[%s740 + $0xc2] sm:$0xff]
      %v1294 = vld [vmem:[%s740 + $0xca] sm:$0xff]
      %v1295 = vld [vmem:[%s740 + $0xda] sm:$0xff]
      %v1296 = vld [vmem:[%s740 + $0xe2] sm:$0xff]
      %v1297 = vld [vmem:[%s740 + $0xf2] sm:$0xff]
      %v1298 = vld [vmem:[%s740 + $0xfa] sm:$0xff]
      %v1299 = vld [vmem:[%s740 + $0x10a] sm:$0xff]
      %v1300 = vld [vmem:[%s740 + $0x112] sm:$0xff]
      %v1301 = vld [vmem:[%s740 + $0x122] sm:$0xff]
      %v1302 = vld [vmem:[%s740 + $0x12a] sm:$0xff]
      %v1303 = vld [vmem:[%s740 + $0x13a] sm:$0xff]
      %v1304 = vld [vmem:[%s740 + $0x142] sm:$0xff]
      %v1305 = vld [vmem:[%s740 + $0x152] sm:$0xff]
      %v1306 = vld [vmem:[%s740 + $0x15a] sm:$0xff]
      %v1307 = vld [vmem:[%s740 + $0x16a] sm:$0xff]
      %v1308 = vld [vmem:[%s740 + $0x172] sm:$0xff]
      %v1309 = vlaneseq
      %v1310 = vshrl.u32 %v1309, 7
      %v1311 = vsub.s32 0, %v1310
      %v1312 = vrot.slane %v571, %v1311
      %v1313 = vmul.f32 %v1277, %v1312
      %v1314 = vmul.f32 %v1278, %v1312
      %v1315 = vmul.f32 %v1279, %v1312
      %v1316 = vmul.f32 %v1280, %v1312
      %v1317 = vmul.f32 %v1281, %v1312
      %v1318 = vmul.f32 %v1282, %v1312
      %v1319 = vmul.f32 %v1283, %v1312
      %v1320 = vmul.f32 %v1284, %v1312
      %v1321 = vmul.f32 %v1285, %v1312
      %v1322 = vmul.f32 %v1286, %v1312
      %v1323 = vmul.f32 %v1287, %v1312
      %v1324 = vmul.f32 %v1288, %v1312
      %v1325 = vmul.f32 %v1289, %v1312
      %v1326 = vmul.f32 %v1290, %v1312
      %v1327 = vmul.f32 %v1291, %v1312
      %v1328 = vmul.f32 %v1292, %v1312
      %v1329 = vmul.f32 %v1293, %v1312
      %v1330 = vmul.f32 %v1294, %v1312
      %v1331 = vmul.f32 %v1295, %v1312
      %v1332 = vmul.f32 %v1296, %v1312
      %v1333 = vmul.f32 %v1297, %v1312
      %v1334 = vmul.f32 %v1298, %v1312
      %v1335 = vmul.f32 %v1299, %v1312
      %v1336 = vmul.f32 %v1300, %v1312
      %v1337 = vmul.f32 %v1301, %v1312
      %v1338 = vmul.f32 %v1302, %v1312
      %v1339 = vmul.f32 %v1303, %v1312
      %v1340 = vmul.f32 %v1304, %v1312
      %v1341 = vmul.f32 %v1305, %v1312
      %v1342 = vmul.f32 %v1306, %v1312
      %v1343 = vmul.f32 %v1307, %v1312
      %v1344 = vmul.f32 %v1308, %v1312
      %v1345 = vadd.f32 %v1245, %v1313
      %v1346 = vadd.f32 %v1246, %v1314
      %v1347 = vadd.f32 %v1247, %v1315
      %v1348 = vadd.f32 %v1248, %v1316
      %v1349 = vadd.f32 %v1249, %v1317
      %v1350 = vadd.f32 %v1250, %v1318
      %v1351 = vadd.f32 %v1251, %v1319
      %v1352 = vadd.f32 %v1252, %v1320
      %v1353 = vadd.f32 %v1253, %v1321
      %v1354 = vadd.f32 %v1254, %v1322
      %v1355 = vadd.f32 %v1255, %v1323
      %v1356 = vadd.f32 %v1256, %v1324
      %v1357 = vadd.f32 %v1257, %v1325
      %v1358 = vadd.f32 %v1258, %v1326
      %v1359 = vadd.f32 %v1259, %v1327
      %v1360 = vadd.f32 %v1260, %v1328
      %v1361 = vadd.f32 %v1261, %v1329
      %v1362 = vadd.f32 %v1262, %v1330
      %v1363 = vadd.f32 %v1263, %v1331
      %v1364 = vadd.f32 %v1264, %v1332
      %v1365 = vadd.f32 %v1265, %v1333
      %v1366 = vadd.f32 %v1266, %v1334
      %v1367 = vadd.f32 %v1267, %v1335
      %v1368 = vadd.f32 %v1268, %v1336
      %v1369 = vadd.f32 %v1269, %v1337
      %v1370 = vadd.f32 %v1270, %v1338
      %v1371 = vadd.f32 %v1271, %v1339
      %v1372 = vadd.f32 %v1272, %v1340
      %v1373 = vadd.f32 %v1273, %v1341
      %v1374 = vadd.f32 %v1274, %v1342
      %v1375 = vadd.f32 %v1275, %v1343
      %v1376 = vadd.f32 %v1276, %v1344
      %v1377 = vadd.f32 %v809, %v1077
      %v1378 = vadd.f32 %v810, %v1078
      %v1379 = vadd.f32 %v811, %v1079
      %v1380 = vadd.f32 %v812, %v1080
      %v1381 = vadd.f32 %v813, %v1081
      %v1382 = vadd.f32 %v814, %v1082
      %v1383 = vadd.f32 %v815, %v1083
      %v1384 = vadd.f32 %v816, %v1084
      %v1385 = vadd.f32 %v817, %v1085
      %v1386 = vadd.f32 %v818, %v1086
      %v1387 = vadd.f32 %v819, %v1087
      %v1388 = vadd.f32 %v820, %v1088
      %v1389 = vadd.f32 %v821, %v1089
      %v1390 = vadd.f32 %v822, %v1090
      %v1391 = vadd.f32 %v823, %v1091
      %v1392 = vadd.f32 %v824, %v1092
      %v1393 = vadd.f32 %v825, %v1093
      %v1394 = vadd.f32 %v826, %v1094
      %v1395 = vadd.f32 %v827, %v1095
      %v1396 = vadd.f32 %v828, %v1096
      %v1397 = vadd.f32 %v829, %v1097
      %v1398 = vadd.f32 %v830, %v1098
      %v1399 = vadd.f32 %v831, %v1099
      %v1400 = vadd.f32 %v832, %v1100
      %v1401 = vadd.f32 %v833, %v1101
      %v1402 = vadd.f32 %v834, %v1102
      %v1403 = vadd.f32 %v835, %v1103
      %v1404 = vadd.f32 %v836, %v1104
      %v1405 = vadd.f32 %v837, %v1105
      %v1406 = vadd.f32 %v838, %v1106
      %v1407 = vadd.f32 %v839, %v1107
      %v1408 = vadd.f32 %v840, %v1108
      %v1409 = vadd.f32 %v1377, %v1345
      %v1410 = vadd.f32 %v1378, %v1346
      %v1411 = vadd.f32 %v1379, %v1347
      %v1412 = vadd.f32 %v1380, %v1348
      %v1413 = vadd.f32 %v1381, %v1349
      %v1414 = vadd.f32 %v1382, %v1350
      %v1415 = vadd.f32 %v1383, %v1351
      %v1416 = vadd.f32 %v1384, %v1352
      %v1417 = vadd.f32 %v1385, %v1353
      %v1418 = vadd.f32 %v1386, %v1354
      %v1419 = vadd.f32 %v1387, %v1355
      %v1420 = vadd.f32 %v1388, %v1356
      %v1421 = vadd.f32 %v1389, %v1357
      %v1422 = vadd.f32 %v1390, %v1358
      %v1423 = vadd.f32 %v1391, %v1359
      %v1424 = vadd.f32 %v1392, %v1360
      %v1425 = vadd.f32 %v1393, %v1361
      %v1426 = vadd.f32 %v1394, %v1362
      %v1427 = vadd.f32 %v1395, %v1363
      %v1428 = vadd.f32 %v1396, %v1364
      %v1429 = vadd.f32 %v1397, %v1365
      %v1430 = vadd.f32 %v1398, %v1366
      %v1431 = vadd.f32 %v1399, %v1367
      %v1432 = vadd.f32 %v1400, %v1368
      %v1433 = vadd.f32 %v1401, %v1369
      %v1434 = vadd.f32 %v1402, %v1370
      %v1435 = vadd.f32 %v1403, %v1371
      %v1436 = vadd.f32 %v1404, %v1372
      %v1437 = vadd.f32 %v1405, %v1373
      %v1438 = vadd.f32 %v1406, %v1374
      %v1439 = vadd.f32 %v1407, %v1375
      %v1440 = vadd.f32 %v1408, %v1376
      %1441 = vst [vmem:[%s312] sm:$0xff] %v1409
      %1442 = vst [vmem:[%s312 + $0x8] sm:$0xff] %v1410
      %1443 = vst [vmem:[%s312 + $0x10] sm:$0xff] %v1411
      %1444 = vst [vmem:[%s312 + $0x18] sm:$0xff] %v1412
      %1445 = vst [vmem:[%s312 + $0x20] sm:$0xff] %v1413
      %1446 = vst [vmem:[%s312 + $0x28] sm:$0xff] %v1414
      %1447 = vst [vmem:[%s312 + $0x30] sm:$0xff] %v1415
      %1448 = vst [vmem:[%s312 + $0x38] sm:$0xff] %v1416
      %1449 = vst [vmem:[%s312 + $0x40] sm:$0xff] %v1417
      %1450 = vst [vmem:[%s312 + $0x48] sm:$0xff] %v1418
      %1451 = vst [vmem:[%s312 + $0x50] sm:$0xff] %v1419
      %1452 = vst [vmem:[%s312 + $0x58] sm:$0xff] %v1420
      %1453 = vst [vmem:[%s312 + $0x60] sm:$0xff] %v1421
      %1454 = vst [vmem:[%s312 + $0x68] sm:$0xff] %v1422
      %1455 = vst [vmem:[%s312 + $0x70] sm:$0xff] %v1423
      %1456 = vst [vmem:[%s312 + $0x78] sm:$0xff] %v1424
      %1457 = vst [vmem:[%s312 + $0x80] sm:$0xff] %v1425
      %1458 = vst [vmem:[%s312 + $0x88] sm:$0xff] %v1426
      %1459 = vst [vmem:[%s312 + $0x90] sm:$0xff] %v1427
      %1460 = vst [vmem:[%s312 + $0x98] sm:$0xff] %v1428
      %1461 = vst [vmem:[%s312 + $0xa0] sm:$0xff] %v1429
      %1462 = vst [vmem:[%s312 + $0xa8] sm:$0xff] %v1430
      %1463 = vst [vmem:[%s312 + $0xb0] sm:$0xff] %v1431
      %1464 = vst [vmem:[%s312 + $0xb8] sm:$0xff] %v1432
      %1465 = vst [vmem:[%s312 + $0xc0] sm:$0xff] %v1433
      %1466 = vst [vmem:[%s312 + $0xc8] sm:$0xff] %v1434
      %1467 = vst [vmem:[%s312 + $0xd0] sm:$0xff] %v1435
      %1468 = vst [vmem:[%s312 + $0xd8] sm:$0xff] %v1436
      %1469 = vst [vmem:[%s312 + $0xe0] sm:$0xff] %v1437
      %1470 = vst [vmem:[%s312 + $0xe8] sm:$0xff] %v1438
      %1471 = vst [vmem:[%s312 + $0xf0] sm:$0xff] %v1439
      %1472 = vst [vmem:[%s312 + $0xf8] sm:$0xff] %v1440
      %v1473 = vadd.f32 %v1409, %v1411
      %v1474 = vadd.f32 %v1473, %v1413
      %v1475 = vadd.f32 %v1474, %v1415
      %v1476 = vadd.f32 %v1475, %v1417
      %v1477 = vadd.f32 %v1476, %v1419
      %v1478 = vadd.f32 %v1477, %v1421
      %v1479 = vadd.f32 %v1478, %v1423
      %v1480 = vadd.f32 %v1479, %v1425
      %v1481 = vadd.f32 %v1480, %v1427
      %v1482 = vadd.f32 %v1481, %v1429
      %v1483 = vadd.f32 %v1482, %v1431
      %v1484 = vadd.f32 %v1483, %v1433
      %v1485 = vadd.f32 %v1484, %v1435
      %v1486 = vadd.f32 %v1485, %v1437
      %v1487 = vadd.f32 %v1486, %v1439
      %v1488 = vadd.f32 %v1410, %v1412
      %v1489 = vadd.f32 %v1488, %v1414
      %v1490 = vadd.f32 %v1489, %v1416
      %v1491 = vadd.f32 %v1490, %v1418
      %v1492 = vadd.f32 %v1491, %v1420
      %v1493 = vadd.f32 %v1492, %v1422
      %v1494 = vadd.f32 %v1493, %v1424
      %v1495 = vadd.f32 %v1494, %v1426
      %v1496 = vadd.f32 %v1495, %v1428
      %v1497 = vadd.f32 %v1496, %v1430
      %v1498 = vadd.f32 %v1497, %v1432
      %v1499 = vadd.f32 %v1498, %v1434
      %v1500 = vadd.f32 %v1499, %v1436
      %v1501 = vadd.f32 %v1500, %v1438
      %v1502 = vadd.f32 %v1501, %v1440
      %v1503 = vadd.f32 %v1487, %v1502
      %v1504 = vrot.slane %v1503, 4
      %v1505 = vadd.f32 %v1503, %v1504
      %v1506 = vrot.slane %v1505, 2
      %v1507 = vadd.f32 %v1505, %v1506
      %v1508 = vrot.slane %v1507, 1
      %v1509 = vadd.f32 %v1507, %v1508
      %1510 = vst [vmem:[%s319] sm:$0x1] %v1509
      %v1511 = vmul.f32 %v1409, %v1409
      %v1512 = vmul.f32 %v1410, %v1410
      %v1513 = vmul.f32 %v1411, %v1411
      %v1514 = vmul.f32 %v1412, %v1412
      %v1515 = vmul.f32 %v1413, %v1413
      %v1516 = vmul.f32 %v1414, %v1414
      %v1517 = vmul.f32 %v1415, %v1415
      %v1518 = vmul.f32 %v1416, %v1416
      %v1519 = vmul.f32 %v1417, %v1417
      %v1520 = vmul.f32 %v1418, %v1418
      %v1521 = vmul.f32 %v1419, %v1419
      %v1522 = vmul.f32 %v1420, %v1420
      %v1523 = vmul.f32 %v1421, %v1421
      %v1524 = vmul.f32 %v1422, %v1422
      %v1525 = vmul.f32 %v1423, %v1423
      %v1526 = vmul.f32 %v1424, %v1424
      %v1527 = vmul.f32 %v1425, %v1425
      %v1528 = vmul.f32 %v1426, %v1426
      %v1529 = vmul.f32 %v1427, %v1427
      %v1530 = vmul.f32 %v1428, %v1428
      %v1531 = vmul.f32 %v1429, %v1429
      %v1532 = vmul.f32 %v1430, %v1430
      %v1533 = vmul.f32 %v1431, %v1431
      %v1534 = vmul.f32 %v1432, %v1432
      %v1535 = vmul.f32 %v1433, %v1433
      %v1536 = vmul.f32 %v1434, %v1434
      %v1537 = vmul.f32 %v1435, %v1435
      %v1538 = vmul.f32 %v1436, %v1436
      %v1539 = vmul.f32 %v1437, %v1437
      %v1540 = vmul.f32 %v1438, %v1438
      %v1541 = vmul.f32 %v1439, %v1439
      %v1542 = vmul.f32 %v1440, %v1440
      %v1543 = vadd.f32 %v1511, %v1513
      %v1544 = vadd.f32 %v1543, %v1515
      %v1545 = vadd.f32 %v1544, %v1517
      %v1546 = vadd.f32 %v1545, %v1519
      %v1547 = vadd.f32 %v1546, %v1521
      %v1548 = vadd.f32 %v1547, %v1523
      %v1549 = vadd.f32 %v1548, %v1525
      %v1550 = vadd.f32 %v1549, %v1527
      %v1551 = vadd.f32 %v1550, %v1529
      %v1552 = vadd.f32 %v1551, %v1531
      %v1553 = vadd.f32 %v1552, %v1533
      %v1554 = vadd.f32 %v1553, %v1535
      %v1555 = vadd.f32 %v1554, %v1537
      %v1556 = vadd.f32 %v1555, %v1539
      %v1557 = vadd.f32 %v1556, %v1541
      %v1558 = vadd.f32 %v1512, %v1514
      %v1559 = vadd.f32 %v1558, %v1516
      %v1560 = vadd.f32 %v1559, %v1518
      %v1561 = vadd.f32 %v1560, %v1520
      %v1562 = vadd.f32 %v1561, %v1522
      %v1563 = vadd.f32 %v1562, %v1524
      %v1564 = vadd.f32 %v1563, %v1526
      %v1565 = vadd.f32 %v1564, %v1528
      %v1566 = vadd.f32 %v1565, %v1530
      %v1567 = vadd.f32 %v1566, %v1532
      %v1568 = vadd.f32 %v1567, %v1534
      %v1569 = vadd.f32 %v1568, %v1536
      %v1570 = vadd.f32 %v1569, %v1538
      %v1571 = vadd.f32 %v1570, %v1540
      %v1572 = vadd.f32 %v1571, %v1542
      %v1573 = vadd.f32 %v1557, %v1572
      %v1574 = vrot.slane %v1573, 4
      %v1575 = vadd.f32 %v1573, %v1574
      %v1576 = vrot.slane %v1575, 2
      %v1577 = vadd.f32 %v1575, %v1576
      %v1578 = vrot.slane %v1577, 1
      %v1579 = vadd.f32 %v1577, %v1578
      %1580 = vst [vmem:[%s319 + $0x1] sm:$0x1] %v1579
      %p1581 = scmp.lt.s32.totalorder %s21, 1
      %s1582 = scalar_select %p1581, %s21, 1
      %p1583 = scmp.lt.s32.totalorder %s22, 0
      %s1584 = scalar_select %p1583, %s22, 0
      %s1585 = smul.addr %s1582, 32
      %s1586 = sadd.s32 %s1584, %s1585
      %s1587 = smul.addr %s1586, 8
      %s1588 = scalar_lea.vmem %s4, %s1587
      %p1589 = scmp.lt.s32.totalorder %s21, 1
      %s1590 = scalar_select %p1589, %s21, 1
      %p1591 = scmp.lt.s32.totalorder %s22, 0
      %s1592 = scalar_select %p1591, %s22, 0
      %s1593 = sadd.s32 %s1592, %s1590
      %s1594 = smul.addr %s1593, 2
      %s1595 = scalar_lea.vmem %s5, %s1594
      // Predicated region
      $region37: #{linear_bottleneck_forward.5} parent=35 // pred_check
        %p1596 = pneg %p155
      $region38: #{linear_bottleneck_forward.5} parent=35 // pred_check_branch
        %1598 = sbr.rel (%p1596) target = $region40
      $region39: #{linear_bottleneck_forward.5} parent=35 // pred_region
        _
      $region40: #{linear_bottleneck_forward.5} parent=35 // pred_fallthru
        _
      // Predicated region
      $region41: #{linear_bottleneck_forward.5} parent=35 // pred_check
        %p1599 = pneg %p183
      $region42: #{linear_bottleneck_forward.5} parent=35 // pred_check_branch
        %1601 = sbr.rel (%p1599) target = $region44
      $region43: #{linear_bottleneck_forward.5} parent=35 // pred_region
        _
      $region44: #{linear_bottleneck_forward.5} parent=35 // pred_fallthru
        _
    $region36: #{linear_bottleneck_forward.5} parent=5 // pred_fallthru
      _
    %p1602 = scmp.le.s32.totalorder 2, %s12
    // Predicated region
    $region45: #{linear_bottleneck_forward.5} parent=5 // pred_check
      %p1603 = pneg %p1602
    $region46: #{linear_bottleneck_forward.5} parent=5 // pred_check_branch
      %1605 = sbr.rel (%p1603) target = $region48
    $region47: #{linear_bottleneck_forward.5} parent=5 // pred_region
      %s1606 = ssub.s32 %s12, 2
      // Predicated region
      $region49: #{linear_bottleneck_forward.5} parent=47 // pred_check
        %p1607 = pneg %p161
      $region50: #{linear_bottleneck_forward.5} parent=47 // pred_check_branch
        %1609 = sbr.rel (%p1607) target = $region52
      $region51: #{linear_bottleneck_forward.5} parent=47 // pred_region
        %p1610 = scmp.lt.s32.totalorder %s23, 1
        %s1611 = scalar_select %p1610, %s23, 1
        %p1612 = scmp.lt.s32.totalorder %s24, 0
        %s1613 = scalar_select %p1612, %s24, 0
        %s1614 = smul.addr %s1611, 32
        %s1615 = sadd.s32 %s1613, %s1614
        %s1616 = smul.addr %s1615, 8
        %s1617 = scalar_lea.vmem %s4, %s1616
      $region52: #{linear_bottleneck_forward.5} parent=47 // pred_fallthru
        _
      // Predicated region
      $region53: #{linear_bottleneck_forward.5} parent=47 // pred_check
        %p1618 = pneg %p189
      $region54: #{linear_bottleneck_forward.5} parent=47 // pred_check_branch
        %1620 = sbr.rel (%p1618) target = $region56
      $region55: #{linear_bottleneck_forward.5} parent=47 // pred_region
        %p1621 = scmp.lt.s32.totalorder %s23, 1
        %s1622 = scalar_select %p1621, %s23, 1
        %p1623 = scmp.lt.s32.totalorder %s24, 0
        %s1624 = scalar_select %p1623, %s24, 0
        %s1625 = sadd.s32 %s1624, %s1622
        %s1626 = smul.addr %s1625, 2
        %s1627 = scalar_lea.vmem %s5, %s1626
      $region56: #{linear_bottleneck_forward.5} parent=47 // pred_fallthru
        _
    $region48: #{linear_bottleneck_forward.5} parent=5 // pred_fallthru
      _
  $region6: #{linear_bottleneck_forward.5} parent=0 // loop_footer
    %s16 = sadd.s32 1, %s12
  $region7: #{linear_bottleneck_forward.5} parent=0 // loop_footer_branch
    %11 = sbr.rel target = $region3
  $region8: #{linear_bottleneck_forward.5} parent=0 // loop_exit
    _

</llo_original>
